<compile_context>
chip_gen: v7x
topology: tpu7x:2x2x1
jax: 0.10.0
libtpu: 0.0.40
codegen_flags: <defaults>
</compile_context>

<pallas_src>
import functools

import jax
import jax.numpy as jnp
from jax.experimental import pallas as pl
from jax.experimental.pallas import tpu as pltpu  # noqa: F401  (TPU backend)


# ----------------------------------------------------------------------------
# Pallas kernels: Y = act( X @ W' + shift [+ residual] )
#   X, W' are bf16; accumulation and epilogue run in f32.
# ----------------------------------------------------------------------------
def _activate(acc, activation, relu_cols):
    if activation == "relu":
        return jnp.maximum(acc, 0.0)
    if activation == "tanh":
        return jnp.tanh(acc)
    if activation == "relu_cols":
        # ReLU only on the first `relu_cols` output channels (the conv1 half
        # of a fused conv1+shortcut call); the shortcut half stays linear.
        col = jax.lax.broadcasted_iota(jnp.int32, acc.shape, 1)
        return jnp.where(col < relu_cols, jnp.maximum(acc, 0.0), acc)
    return acc


def _fused_matmul_kernel(x_ref, w_ref, b_ref, o_ref, *, activation, relu_cols):
    acc = jnp.dot(x_ref[...], w_ref[...], preferred_element_type=jnp.float32)
    acc = acc + b_ref[...]
    o_ref[...] = _activate(acc, activation, relu_cols).astype(o_ref.dtype)


def _fused_matmul_res_kernel(x_ref, w_ref, b_ref, r_ref, o_ref, *,
                             activation, relu_cols):
    acc = jnp.dot(x_ref[...], w_ref[...], preferred_element_type=jnp.float32)
    acc = acc + b_ref[...] + r_ref[...]
    o_ref[...] = _activate(acc, activation, relu_cols).astype(o_ref.dtype)


def fused_matmul(x, w, shift, residual=None, activation="none", relu_cols=0):
    """x: (M, K), w: (K, N) with BN scale pre-folded, shift: (N,),
    residual: (M, N) f32 or None."""
    M, K = x.shape
    K2, N = w.shape
    assert K == K2
    x_bf = x.astype(jnp.bfloat16)
    w_bf = w.astype(jnp.bfloat16)
    b2 = shift.reshape(1, N).astype(jnp.float32)

    in_specs = [
        pl.BlockSpec((M, K), lambda i: (0, 0)),
        pl.BlockSpec((K, N), lambda i: (0, 0)),
        pl.BlockSpec((1, N), lambda i: (0, 0)),
    ]
    args = [x_bf, w_bf, b2]
    if residual is None:
        kernel = functools.partial(
            _fused_matmul_kernel, activation=activation, relu_cols=relu_cols)
    else:
        kernel = functools.partial(
            _fused_matmul_res_kernel, activation=activation, relu_cols=relu_cols)
        in_specs.append(pl.BlockSpec((M, N), lambda i: (0, 0)))
        args.append(residual.astype(jnp.float32))

    # Problem sizes are tiny (M<=512, K<=576, N<=128): every operand fits as a
    # single full-array VMEM block; a 1-step grid keeps per-call overhead low.
    return pl.pallas_call(
        kernel,
        out_shape=jax.ShapeDtypeStruct((M, N), jnp.float32),
        grid=(1,),
        in_specs=in_specs,
        out_specs=pl.BlockSpec((M, N), lambda i: (0, 0)),
    )(*args)


# ----------------------------------------------------------------------------
# Plain-JAX glue: im2col, dilation+pad (conv transpose), BN folding.
# ----------------------------------------------------------------------------
def im2col(x_nhwc, kh, kw, stride, pad):
    N, H, W, C = x_nhwc.shape
    xp = jnp.pad(x_nhwc, ((0, 0), (pad, pad), (pad, pad), (0, 0)))
    Ho = (H + 2 * pad - kh) // stride + 1
    Wo = (W + 2 * pad - kw) // stride + 1
    cols = []
    for i in range(kh):
        for j in range(kw):
            cols.append(xp[:, i:i + stride * Ho:stride, j:j + stride * Wo:stride, :])
    X = jnp.concatenate(cols, axis=-1)  # (N, Ho, Wo, kh*kw*C), (i, j, c) order
    return X.reshape(N * Ho * Wo, kh * kw * C), (N, Ho, Wo)


def dilate_and_pad(x_nhwc, stride, p_lo, p_hi):
    """Fused zero-dilation (stride insertion) + asymmetric spatial padding."""
    N, H, W, C = x_nhwc.shape
    Hd = (H - 1) * stride + 1
    Wd = (W - 1) * stride + 1
    out = jnp.zeros((N, Hd + p_lo + p_hi, Wd + p_lo + p_hi, C), x_nhwc.dtype)
    return out.at[:, p_lo:p_lo + Hd:stride, p_lo:p_lo + Wd:stride, :].set(x_nhwc)


def bn_fold(gamma, beta, mean, var, eps=1e-5):
    scale = gamma / jnp.sqrt(var + eps)
    shift = beta - mean * scale
    return scale, shift


def conv_weight_matrix(w_oihw, scale):
    """(Cout, Cin, kh, kw) -> (kh*kw*Cin, Cout) with the BN scale folded in."""
    Cout, Cin, kh, kw = w_oihw.shape
    W = jnp.transpose(w_oihw, (2, 3, 1, 0)).reshape(kh * kw * Cin, Cout)
    return W * scale.reshape(1, Cout)


def conv2d(x_nhwc, w_mat, kh, kw, stride, pad, shift, residual=None,
           activation="none", relu_cols=0):
    X, (N, Ho, Wo) = im2col(x_nhwc.astype(jnp.bfloat16), kh, kw, stride, pad)
    Cout = w_mat.shape[1]
    r = None if residual is None else residual.reshape(N * Ho * Wo, Cout)
    Y = fused_matmul(X, w_mat, shift, r, activation, relu_cols)
    return Y.reshape(N, Ho, Wo, Cout)


def conv_transpose2d(x_nhwc, w_iohw, stride, pad, out_pad, scale, shift,
                     activation="none"):
    Cin, Cout, kh, kw = w_iohw.shape
    p_lo = kh - 1 - pad
    p_hi = kh - 1 - pad + out_pad
    xp = dilate_and_pad(x_nhwc.astype(jnp.bfloat16), stride, p_lo, p_hi)
    # equivalent direct conv: flip kernel spatially and swap in/out channels
    w_conv = jnp.transpose(jnp.flip(w_iohw, axis=(2, 3)), (1, 0, 2, 3))
    w_mat = conv_weight_matrix(w_conv, scale)
    return conv2d(xp, w_mat, kh, kw, 1, 0, shift, None, activation)


# ----------------------------------------------------------------------------
# Deterministic parameter initialization (matching the nn.Module shapes).
# ----------------------------------------------------------------------------
def _bn_params(key, c):
    k1, k2, k3, k4 = jax.random.split(key, 4)
    gamma = 1.0 + 0.1 * jax.random.normal(k1, (c,), jnp.float32)
    beta = 0.1 * jax.random.normal(k2, (c,), jnp.float32)
    mean = 0.1 * jax.random.normal(k3, (c,), jnp.float32)
    var = jax.random.uniform(k4, (c,), jnp.float32, 0.5, 1.5)
    return (gamma, beta, mean, var)


def init_params(key):
    keys = iter(jax.random.split(key, 40))
    nrm = lambda k, s: 0.1 * jax.random.normal(k, s, jnp.float32)
    p = {}
    # encoder head: Conv2d(1,16,3,s=1,p=1) + BN + ReLU
    p["enc_conv1_w"] = nrm(next(keys), (16, 1, 3, 3))
    p["enc_conv1_b"] = nrm(next(keys), (16,))
    p["enc_bn1"] = _bn_params(next(keys), 16)

    def res_block(cin, cout):
        return {
            "conv1_w": nrm(next(keys), (cout, cin, 3, 3)),
            "bn1": _bn_params(next(keys), cout),
            "conv2_w": nrm(next(keys), (cout, cout, 3, 3)),
            "bn2": _bn_params(next(keys), cout),
            "sc_w": nrm(next(keys), (cout, cin, 1, 1)),
            "sc_bn": _bn_params(next(keys), cout),
        }

    p["block1"] = res_block(16, 32)   # stride 2
    p["block2"] = res_block(32, 64)   # stride 2

    # decoder
    p["dec_tconv1_w"] = nrm(next(keys), (64, 32, 3, 3))  # (Cin, Cout, kh, kw)
    p["dec_tconv1_b"] = nrm(next(keys), (32,))
    p["dec_bn1"] = _bn_params(next(keys), 32)
    p["dec_tconv2_w"] = nrm(next(keys), (32, 16, 3, 3))
    p["dec_tconv2_b"] = nrm(next(keys), (16,))
    p["dec_bn2"] = _bn_params(next(keys), 16)
    p["dec_conv_w"] = nrm(next(keys), (1, 16, 3, 3))
    p["dec_conv_b"] = nrm(next(keys), (1,))
    return p


# ----------------------------------------------------------------------------
# Forward pass
# ----------------------------------------------------------------------------
def residual_block(x, blk, stride):
    Cout = blk["conv1_w"].shape[0]
    s1, b1 = bn_fold(*blk["bn1"])
    s_sc, b_sc = bn_fold(*blk["sc_bn"])
    # conv1 (3x3, pad=1) and the 1x1 shortcut read the same stride-s im2col
    # patches once the 1x1 weight is zero-padded to a centered 3x3 tap, so the
    # two convs (and both folded BNs) run in ONE kernel call with 2*Cout
    # output channels; ReLU is applied to the conv1 half only.
    sc_w3 = jnp.pad(blk["sc_w"], ((0, 0), (0, 0), (1, 1), (1, 1)))
    w_cat = jnp.concatenate(
        [conv_weight_matrix(blk["conv1_w"], s1),
         conv_weight_matrix(sc_w3, s_sc)], axis=1)
    b_cat = jnp.concatenate([b1, b_sc])
    y = conv2d(x, w_cat, 3, 3, stride, 1, b_cat,
               activation="relu_cols", relu_cols=Cout)
    out1, shortcut = y[..., :Cout], y[..., Cout:]

    # conv2 + BN2 + residual add + ReLU, fused in the second kernel call.
    s2, b2 = bn_fold(*blk["bn2"])
    w2 = conv_weight_matrix(blk["conv2_w"], s2)
    return conv2d(out1, w2, 3, 3, 1, 1, b2, shortcut, "relu")


def resnet_autoencoder(x_nchw, p):
    x = jnp.transpose(x_nchw, (0, 2, 3, 1))  # NCHW -> NHWC

    # encoder: Conv(1->16) + BN + ReLU (conv bias folded into the BN shift)
    s, b = bn_fold(*p["enc_bn1"])
    w = conv_weight_matrix(p["enc_conv1_w"], s)
    h = conv2d(x, w, 3, 3, 1, 1, b + p["enc_conv1_b"] * s, None, "relu")
    h = residual_block(h, p["block1"], 2)   # 16x16 -> 8x8, 32 ch
    h = residual_block(h, p["block2"], 2)   # 8x8  -> 4x4, 64 ch
    # (the encoder's trailing ReLU is a no-op after the block's ReLU: dropped)

    # decoder
    s, b = bn_fold(*p["dec_bn1"])
    h = conv_transpose2d(h, p["dec_tconv1_w"], 2, 1, 1,
                         s, b + p["dec_tconv1_b"] * s, "relu")   # 4x4 -> 8x8
    s, b = bn_fold(*p["dec_bn2"])
    h = conv_transpose2d(h, p["dec_tconv2_w"], 2, 1, 1,
                         s, b + p["dec_tconv2_b"] * s, "relu")   # 8x8 -> 16x16
    w = conv_weight_matrix(p["dec_conv_w"], jnp.ones((1,), jnp.float32))
    h = conv2d(h, w, 3, 3, 1, 1, p["dec_conv_b"], None, "tanh")  # -> 1 ch

    return jnp.transpose(h, (0, 3, 1, 2))  # NHWC -> NCHW


if __name__ == "__main__":
    key = jax.random.PRNGKey(0)
    k_param, k_input = jax.random.split(key)
    params = init_params(k_param)
    x = jax.random.normal(k_input, (2, 1, 16, 16), jnp.float32)  # NCHW, like PyTorch

    fwd = jax.jit(resnet_autoencoder)
    y = fwd(x, params)
    jax.block_until_ready(y)

    assert y.shape == (2, 1, 16, 16), y.shape
    assert bool(jnp.all(jnp.isfinite(y)))
    assert bool(jnp.all(jnp.abs(y) <= 1.0 + 1e-6))  # tanh output range
    print("KERNEL_OK")
</pallas_src>

<mosaic_0001>
module attributes {stable_mosaic.version = 11 : i64} {
  func.func @_fused_matmul_kernel(%arg0: i32, %arg1: memref<512x9xbf16, #tpu.memory_space<vmem>>, %arg2: memref<9x16xbf16, #tpu.memory_space<vmem>>, %arg3: memref<1x16xf32, #tpu.memory_space<vmem>>, %arg4: memref<512x16xf32, #tpu.memory_space<vmem>>) attributes {dimension_semantics = [#tpu.dimension_semantics<arbitrary>], iteration_bounds = array<i64: 1>, scalar_prefetch = 0 : i64, scratch_operands = 0 : i64, tpu.core_type = #tpu.core_type<tc>, window_params = [{pipeline_mode = #tpu.pipeline_mode<synchronous>, transform_indices = @transform_0, window_bounds = array<i64: 512, 9>}, {pipeline_mode = #tpu.pipeline_mode<synchronous>, transform_indices = @transform_1, window_bounds = array<i64: 9, 16>}, {pipeline_mode = #tpu.pipeline_mode<synchronous>, transform_indices = @transform_2, window_bounds = array<i64: 1, 16>}, {pipeline_mode = #tpu.pipeline_mode<synchronous>, transform_indices = @transform_3, window_bounds = array<i64: 512, 16>}]} {
    %c0 = arith.constant 0 : index
    %c0_0 = arith.constant 0 : index
    %0 = vector.load %arg1[%c0, %c0_0] : memref<512x9xbf16, #tpu.memory_space<vmem>>, vector<512x9xbf16>
    %c0_1 = arith.constant 0 : index
    %c0_2 = arith.constant 0 : index
    %1 = vector.load %arg2[%c0_1, %c0_2] : memref<9x16xbf16, #tpu.memory_space<vmem>>, vector<9x16xbf16>
    %cst = arith.constant dense<0.000000e+00> : vector<512x16xf32>
    %2 = tpu.matmul %0, %1, %cst {dimension_numbers = #tpu.dot_dimension_numbers<[1], [0], [0], [1], [0, 0, 1, 1], [], []>} : vector<512x9xbf16>, vector<9x16xbf16>, vector<512x16xf32> -> vector<512x16xf32>
    %c0_3 = arith.constant 0 : index
    %c0_4 = arith.constant 0 : index
    %3 = vector.load %arg3[%c0_3, %c0_4] : memref<1x16xf32, #tpu.memory_space<vmem>>, vector<1x16xf32>
    %4 = vector.broadcast %3 : vector<1x16xf32> to vector<512x16xf32>
    %5 = arith.addf %2, %4 : vector<512x16xf32>
    %cst_5 = arith.constant 0.000000e+00 : f32
    %6 = vector.broadcast %cst_5 : f32 to vector<512x16xf32>
    %7 = arith.maximumf %5, %6 : vector<512x16xf32>
    %c0_6 = arith.constant 0 : index
    %c0_7 = arith.constant 0 : index
    %8 = vector.load %arg4[%c0_6, %c0_7] : memref<512x16xf32, #tpu.memory_space<vmem>>, vector<512x16xf32>
    tpu.vector_store %arg4[%c0_6, %c0_7], %7 {strides = array<i32>} : memref<512x16xf32, #tpu.memory_space<vmem>>, vector<512x16xf32>,
    return
  }
  func.func @transform_0(%arg0: i32) -> (i32, i32) {
    %c0_i32 = arith.constant 0 : i32
    %c0_i32_0 = arith.constant 0 : i32
    %c0_i32_1 = arith.constant 0 : i32
    return %c0_i32, %c0_i32_0 : i32, i32
  }
  func.func @transform_1(%arg0: i32) -> (i32, i32) {
    %c0_i32 = arith.constant 0 : i32
    %c0_i32_0 = arith.constant 0 : i32
    %c0_i32_1 = arith.constant 0 : i32
    return %c0_i32, %c0_i32_0 : i32, i32
  }
  func.func @transform_2(%arg0: i32) -> (i32, i32) {
    %c0_i32 = arith.constant 0 : i32
    %c0_i32_0 = arith.constant 0 : i32
    %c0_i32_1 = arith.constant 0 : i32
    return %c0_i32, %c0_i32_0 : i32, i32
  }
  func.func @transform_3(%arg0: i32) -> (i32, i32) {
    %c0_i32 = arith.constant 0 : i32
    %c0_i32_0 = arith.constant 0 : i32
    %c0_i32_1 = arith.constant 0 : i32
    return %c0_i32, %c0_i32_0 : i32, i32
  }
}

module attributes {stable_mosaic.version = 11 : i64} {
  func.func @_fused_matmul_kernel(%arg0: i32, %arg1: memref<128x144xbf16, #tpu.memory_space<vmem>>, %arg2: memref<144x64xbf16, #tpu.memory_space<vmem>>, %arg3: memref<1x64xf32, #tpu.memory_space<vmem>>, %arg4: memref<128x64xf32, #tpu.memory_space<vmem>>) attributes {dimension_semantics = [#tpu.dimension_semantics<arbitrary>], iteration_bounds = array<i64: 1>, scalar_prefetch = 0 : i64, scratch_operands = 0 : i64, tpu.core_type = #tpu.core_type<tc>, window_params = [{pipeline_mode = #tpu.pipeline_mode<synchronous>, transform_indices = @transform_0, window_bounds = array<i64: 128, 144>}, {pipeline_mode = #tpu.pipeline_mode<synchronous>, transform_indices = @transform_1, window_bounds = array<i64: 144, 64>}, {pipeline_mode = #tpu.pipeline_mode<synchronous>, transform_indices = @transform_2, window_bounds = array<i64: 1, 64>}, {pipeline_mode = #tpu.pipeline_mode<synchronous>, transform_indices = @transform_3, window_bounds = array<i64: 128, 64>}]} {
    %c0 = arith.constant 0 : index
    %c0_0 = arith.constant 0 : index
    %0 = vector.load %arg1[%c0, %c0_0] : memref<128x144xbf16, #tpu.memory_space<vmem>>, vector<128x144xbf16>
    %c0_1 = arith.constant 0 : index
    %c0_2 = arith.constant 0 : index
    %1 = vector.load %arg2[%c0_1, %c0_2] : memref<144x64xbf16, #tpu.memory_space<vmem>>, vector<144x64xbf16>
    %cst = arith.constant dense<0.000000e+00> : vector<128x64xf32>
    %2 = tpu.matmul %0, %1, %cst {dimension_numbers = #tpu.dot_dimension_numbers<[1], [0], [0], [1], [0, 0, 1, 1], [], []>} : vector<128x144xbf16>, vector<144x64xbf16>, vector<128x64xf32> -> vector<128x64xf32>
    %c0_3 = arith.constant 0 : index
    %c0_4 = arith.constant 0 : index
    %3 = vector.load %arg3[%c0_3, %c0_4] : memref<1x64xf32, #tpu.memory_space<vmem>>, vector<1x64xf32>
    %4 = vector.broadcast %3 : vector<1x64xf32> to vector<128x64xf32>
    %5 = arith.addf %2, %4 : vector<128x64xf32>
    %6 = tpu.iota {dimensions = array<i32: 1>} : vector<128x64xi32>
    %c32_i32 = arith.constant 32 : i32
    %7 = vector.broadcast %c32_i32 : i32 to vector<128x64xi32>
    %8 = arith.cmpi slt, %6, %7 : vector<128x64xi32>
    %cst_5 = arith.constant 0.000000e+00 : f32
    %9 = vector.broadcast %cst_5 : f32 to vector<128x64xf32>
    %10 = arith.maximumf %5, %9 : vector<128x64xf32>
    %11 = arith.select %8, %10, %5 : vector<128x64xi1>, vector<128x64xf32>
    %c0_6 = arith.constant 0 : index
    %c0_7 = arith.constant 0 : index
    %12 = vector.load %arg4[%c0_6, %c0_7] : memref<128x64xf32, #tpu.memory_space<vmem>>, vector<128x64xf32>
    tpu.vector_store %arg4[%c0_6, %c0_7], %11 {strides = array<i32>} : memref<128x64xf32, #tpu.memory_space<vmem>>, vector<128x64xf32>,
    return
  }
  func.func @transform_0(%arg0: i32) -> (i32, i32) {
    %c0_i32 = arith.constant 0 : i32
    %c0_i32_0 = arith.constant 0 : i32
    %c0_i32_1 = arith.constant 0 : i32
    return %c0_i32, %c0_i32_0 : i32, i32
  }
  func.func @transform_1(%arg0: i32) -> (i32, i32) {
    %c0_i32 = arith.constant 0 : i32
    %c0_i32_0 = arith.constant 0 : i32
    %c0_i32_1 = arith.constant 0 : i32
    return %c0_i32, %c0_i32_0 : i32, i32
  }
  func.func @transform_2(%arg0: i32) -> (i32, i32) {
    %c0_i32 = arith.constant 0 : i32
    %c0_i32_0 = arith.constant 0 : i32
    %c0_i32_1 = arith.constant 0 : i32
    return %c0_i32, %c0_i32_0 : i32, i32
  }
  func.func @transform_3(%arg0: i32) -> (i32, i32) {
    %c0_i32 = arith.constant 0 : i32
    %c0_i32_0 = arith.constant 0 : i32
    %c0_i32_1 = arith.constant 0 : i32
    return %c0_i32, %c0_i32_0 : i32, i32
  }
}

module attributes {stable_mosaic.version = 11 : i64} {
  func.func @_fused_matmul_res_kernel(%arg0: i32, %arg1: memref<128x288xbf16, #tpu.memory_space<vmem>>, %arg2: memref<288x32xbf16, #tpu.memory_space<vmem>>, %arg3: memref<1x32xf32, #tpu.memory_space<vmem>>, %arg4: memref<128x32xf32, #tpu.memory_space<vmem>>, %arg5: memref<128x32xf32, #tpu.memory_space<vmem>>) attributes {dimension_semantics = [#tpu.dimension_semantics<arbitrary>], iteration_bounds = array<i64: 1>, scalar_prefetch = 0 : i64, scratch_operands = 0 : i64, tpu.core_type = #tpu.core_type<tc>, window_params = [{pipeline_mode = #tpu.pipeline_mode<synchronous>, transform_indices = @transform_0, window_bounds = array<i64: 128, 288>}, {pipeline_mode = #tpu.pipeline_mode<synchronous>, transform_indices = @transform_1, window_bounds = array<i64: 288, 32>}, {pipeline_mode = #tpu.pipeline_mode<synchronous>, transform_indices = @transform_2, window_bounds = array<i64: 1, 32>}, {pipeline_mode = #tpu.pipeline_mode<synchronous>, transform_indices = @transform_3, window_bounds = array<i64: 128, 32>}, {pipeline_mode = #tpu.pipeline_mode<synchronous>, transform_indices = @transform_4, window_bounds = array<i64: 128, 32>}]} {
    %c0 = arith.constant 0 : index
    %c0_0 = arith.constant 0 : index
    %0 = vector.load %arg1[%c0, %c0_0] : memref<128x288xbf16, #tpu.memory_space<vmem>>, vector<128x288xbf16>
    %c0_1 = arith.constant 0 : index
    %c0_2 = arith.constant 0 : index
    %1 = vector.load %arg2[%c0_1, %c0_2] : memref<288x32xbf16, #tpu.memory_space<vmem>>, vector<288x32xbf16>
    %cst = arith.constant dense<0.000000e+00> : vector<128x32xf32>
    %2 = tpu.matmul %0, %1, %cst {dimension_numbers = #tpu.dot_dimension_numbers<[1], [0], [0], [1], [0, 0, 1, 1], [], []>} : vector<128x288xbf16>, vector<288x32xbf16>, vector<128x32xf32> -> vector<128x32xf32>
    %c0_3 = arith.constant 0 : index
    %c0_4 = arith.constant 0 : index
    %3 = vector.load %arg3[%c0_3, %c0_4] : memref<1x32xf32, #tpu.memory_space<vmem>>, vector<1x32xf32>
    %4 = vector.broadcast %3 : vector<1x32xf32> to vector<128x32xf32>
    %5 = arith.addf %2, %4 : vector<128x32xf32>
    %c0_5 = arith.constant 0 : index
    %c0_6 = arith.constant 0 : index
    %6 = vector.load %arg4[%c0_5, %c0_6] : memref<128x32xf32, #tpu.memory_space<vmem>>, vector<128x32xf32>
    %7 = arith.addf %5, %6 : vector<128x32xf32>
    %cst_7 = arith.constant 0.000000e+00 : f32
    %8 = vector.broadcast %cst_7 : f32 to vector<128x32xf32>
    %9 = arith.maximumf %7, %8 : vector<128x32xf32>
    %c0_8 = arith.constant 0 : index
    %c0_9 = arith.constant 0 : index
    %10 = vector.load %arg5[%c0_8, %c0_9] : memref<128x32xf32, #tpu.memory_space<vmem>>, vector<128x32xf32>
    tpu.vector_store %arg5[%c0_8, %c0_9], %9 {strides = array<i32>} : memref<128x32xf32, #tpu.memory_space<vmem>>, vector<128x32xf32>,
    return
  }
  func.func @transform_0(%arg0: i32) -> (i32, i32) {
    %c0_i32 = arith.constant 0 : i32
    %c0_i32_0 = arith.constant 0 : i32
    %c0_i32_1 = arith.constant 0 : i32
    return %c0_i32, %c0_i32_0 : i32, i32
  }
  func.func @transform_1(%arg0: i32) -> (i32, i32) {
    %c0_i32 = arith.constant 0 : i32
    %c0_i32_0 = arith.constant 0 : i32
    %c0_i32_1 = arith.constant 0 : i32
    return %c0_i32, %c0_i32_0 : i32, i32
  }
  func.func @transform_2(%arg0: i32) -> (i32, i32) {
    %c0_i32 = arith.constant 0 : i32
    %c0_i32_0 = arith.constant 0 : i32
    %c0_i32_1 = arith.constant 0 : i32
    return %c0_i32, %c0_i32_0 : i32, i32
  }
  func.func @transform_3(%arg0: i32) -> (i32, i32) {
    %c0_i32 = arith.constant 0 : i32
    %c0_i32_0 = arith.constant 0 : i32
    %c0_i32_1 = arith.constant 0 : i32
    return %c0_i32, %c0_i32_0 : i32, i32
  }
  func.func @transform_4(%arg0: i32) -> (i32, i32) {
    %c0_i32 = arith.constant 0 : i32
    %c0_i32_0 = arith.constant 0 : i32
    %c0_i32_1 = arith.constant 0 : i32
    return %c0_i32, %c0_i32_0 : i32, i32
  }
}

module attributes {stable_mosaic.version = 11 : i64} {
  func.func @_fused_matmul_kernel(%arg0: i32, %arg1: memref<32x288xbf16, #tpu.memory_space<vmem>>, %arg2: memref<288x128xbf16, #tpu.memory_space<vmem>>, %arg3: memref<1x128xf32, #tpu.memory_space<vmem>>, %arg4: memref<32x128xf32, #tpu.memory_space<vmem>>) attributes {dimension_semantics = [#tpu.dimension_semantics<arbitrary>], iteration_bounds = array<i64: 1>, scalar_prefetch = 0 : i64, scratch_operands = 0 : i64, tpu.core_type = #tpu.core_type<tc>, window_params = [{pipeline_mode = #tpu.pipeline_mode<synchronous>, transform_indices = @transform_0, window_bounds = array<i64: 32, 288>}, {pipeline_mode = #tpu.pipeline_mode<synchronous>, transform_indices = @transform_1, window_bounds = array<i64: 288, 128>}, {pipeline_mode = #tpu.pipeline_mode<synchronous>, transform_indices = @transform_2, window_bounds = array<i64: 1, 128>}, {pipeline_mode = #tpu.pipeline_mode<synchronous>, transform_indices = @transform_3, window_bounds = array<i64: 32, 128>}]} {
    %c0 = arith.constant 0 : index
    %c0_0 = arith.constant 0 : index
    %0 = vector.load %arg1[%c0, %c0_0] : memref<32x288xbf16, #tpu.memory_space<vmem>>, vector<32x288xbf16>
    %c0_1 = arith.constant 0 : index
    %c0_2 = arith.constant 0 : index
    %1 = vector.load %arg2[%c0_1, %c0_2] : memref<288x128xbf16, #tpu.memory_space<vmem>>, vector<288x128xbf16>
    %cst = arith.constant dense<0.000000e+00> : vector<32x128xf32>
    %2 = tpu.matmul %0, %1, %cst {dimension_numbers = #tpu.dot_dimension_numbers<[1], [0], [0], [1], [0, 0, 1, 1], [], []>} : vector<32x288xbf16>, vector<288x128xbf16>, vector<32x128xf32> -> vector<32x128xf32>
    %c0_3 = arith.constant 0 : index
    %c0_4 = arith.constant 0 : index
    %3 = vector.load %arg3[%c0_3, %c0_4] : memref<1x128xf32, #tpu.memory_space<vmem>>, vector<1x128xf32>
    %4 = vector.broadcast %3 : vector<1x128xf32> to vector<32x128xf32>
    %5 = arith.addf %2, %4 : vector<32x128xf32>
    %6 = tpu.iota {dimensions = array<i32: 1>} : vector<32x128xi32>
    %c64_i32 = arith.constant 64 : i32
    %7 = vector.broadcast %c64_i32 : i32 to vector<32x128xi32>
    %8 = arith.cmpi slt, %6, %7 : vector<32x128xi32>
    %cst_5 = arith.constant 0.000000e+00 : f32
    %9 = vector.broadcast %cst_5 : f32 to vector<32x128xf32>
    %10 = arith.maximumf %5, %9 : vector<32x128xf32>
    %11 = arith.select %8, %10, %5 : vector<32x128xi1>, vector<32x128xf32>
    %c0_6 = arith.constant 0 : index
    %c0_7 = arith.constant 0 : index
    %12 = vector.load %arg4[%c0_6, %c0_7] : memref<32x128xf32, #tpu.memory_space<vmem>>, vector<32x128xf32>
    tpu.vector_store %arg4[%c0_6, %c0_7], %11 {strides = array<i32>} : memref<32x128xf32, #tpu.memory_space<vmem>>, vector<32x128xf32>,
    return
  }
  func.func @transform_0(%arg0: i32) -> (i32, i32) {
    %c0_i32 = arith.constant 0 : i32
    %c0_i32_0 = arith.constant 0 : i32
    %c0_i32_1 = arith.constant 0 : i32
    return %c0_i32, %c0_i32_0 : i32, i32
  }
  func.func @transform_1(%arg0: i32) -> (i32, i32) {
    %c0_i32 = arith.constant 0 : i32
    %c0_i32_0 = arith.constant 0 : i32
    %c0_i32_1 = arith.constant 0 : i32
    return %c0_i32, %c0_i32_0 : i32, i32
  }
  func.func @transform_2(%arg0: i32) -> (i32, i32) {
    %c0_i32 = arith.constant 0 : i32
    %c0_i32_0 = arith.constant 0 : i32
    %c0_i32_1 = arith.constant 0 : i32
    return %c0_i32, %c0_i32_0 : i32, i32
  }
  func.func @transform_3(%arg0: i32) -> (i32, i32) {
    %c0_i32 = arith.constant 0 : i32
    %c0_i32_0 = arith.constant 0 : i32
    %c0_i32_1 = arith.constant 0 : i32
    return %c0_i32, %c0_i32_0 : i32, i32
  }
}

module attributes {stable_mosaic.version = 11 : i64} {
  func.func @_fused_matmul_res_kernel(%arg0: i32, %arg1: memref<32x576xbf16, #tpu.memory_space<vmem>>, %arg2: memref<576x64xbf16, #tpu.memory_space<vmem>>, %arg3: memref<1x64xf32, #tpu.memory_space<vmem>>, %arg4: memref<32x64xf32, #tpu.memory_space<vmem>>, %arg5: memref<32x64xf32, #tpu.memory_space<vmem>>) attributes {dimension_semantics = [#tpu.dimension_semantics<arbitrary>], iteration_bounds = array<i64: 1>, scalar_prefetch = 0 : i64, scratch_operands = 0 : i64, tpu.core_type = #tpu.core_type<tc>, window_params = [{pipeline_mode = #tpu.pipeline_mode<synchronous>, transform_indices = @transform_0, window_bounds = array<i64: 32, 576>}, {pipeline_mode = #tpu.pipeline_mode<synchronous>, transform_indices = @transform_1, window_bounds = array<i64: 576, 64>}, {pipeline_mode = #tpu.pipeline_mode<synchronous>, transform_indices = @transform_2, window_bounds = array<i64: 1, 64>}, {pipeline_mode = #tpu.pipeline_mode<synchronous>, transform_indices = @transform_3, window_bounds = array<i64: 32, 64>}, {pipeline_mode = #tpu.pipeline_mode<synchronous>, transform_indices = @transform_4, window_bounds = array<i64: 32, 64>}]} {
    %c0 = arith.constant 0 : index
    %c0_0 = arith.constant 0 : index
    %0 = vector.load %arg1[%c0, %c0_0] : memref<32x576xbf16, #tpu.memory_space<vmem>>, vector<32x576xbf16>
    %c0_1 = arith.constant 0 : index
    %c0_2 = arith.constant 0 : index
    %1 = vector.load %arg2[%c0_1, %c0_2] : memref<576x64xbf16, #tpu.memory_space<vmem>>, vector<576x64xbf16>
    %cst = arith.constant dense<0.000000e+00> : vector<32x64xf32>
    %2 = tpu.matmul %0, %1, %cst {dimension_numbers = #tpu.dot_dimension_numbers<[1], [0], [0], [1], [0, 0, 1, 1], [], []>} : vector<32x576xbf16>, vector<576x64xbf16>, vector<32x64xf32> -> vector<32x64xf32>
    %c0_3 = arith.constant 0 : index
    %c0_4 = arith.constant 0 : index
    %3 = vector.load %arg3[%c0_3, %c0_4] : memref<1x64xf32, #tpu.memory_space<vmem>>, vector<1x64xf32>
    %4 = vector.broadcast %3 : vector<1x64xf32> to vector<32x64xf32>
    %5 = arith.addf %2, %4 : vector<32x64xf32>
    %c0_5 = arith.constant 0 : index
    %c0_6 = arith.constant 0 : index
    %6 = vector.load %arg4[%c0_5, %c0_6] : memref<32x64xf32, #tpu.memory_space<vmem>>, vector<32x64xf32>
    %7 = arith.addf %5, %6 : vector<32x64xf32>
    %cst_7 = arith.constant 0.000000e+00 : f32
    %8 = vector.broadcast %cst_7 : f32 to vector<32x64xf32>
    %9 = arith.maximumf %7, %8 : vector<32x64xf32>
    %c0_8 = arith.constant 0 : index
    %c0_9 = arith.constant 0 : index
    %10 = vector.load %arg5[%c0_8, %c0_9] : memref<32x64xf32, #tpu.memory_space<vmem>>, vector<32x64xf32>
    tpu.vector_store %arg5[%c0_8, %c0_9], %9 {strides = array<i32>} : memref<32x64xf32, #tpu.memory_space<vmem>>, vector<32x64xf32>,
    return
  }
  func.func @transform_0(%arg0: i32) -> (i32, i32) {
    %c0_i32 = arith.constant 0 : i32
    %c0_i32_0 = arith.constant 0 : i32
    %c0_i32_1 = arith.constant 0 : i32
    return %c0_i32, %c0_i32_0 : i32, i32
  }
  func.func @transform_1(%arg0: i32) -> (i32, i32) {
    %c0_i32 = arith.constant 0 : i32
    %c0_i32_0 = arith.constant 0 : i32
    %c0_i32_1 = arith.constant 0 : i32
    return %c0_i32, %c0_i32_0 : i32, i32
  }
  func.func @transform_2(%arg0: i32) -> (i32, i32) {
    %c0_i32 = arith.constant 0 : i32
    %c0_i32_0 = arith.constant 0 : i32
    %c0_i32_1 = arith.constant 0 : i32
    return %c0_i32, %c0_i32_0 : i32, i32
  }
  func.func @transform_3(%arg0: i32) -> (i32, i32) {
    %c0_i32 = arith.constant 0 : i32
    %c0_i32_0 = arith.constant 0 : i32
    %c0_i32_1 = arith.constant 0 : i32
    return %c0_i32, %c0_i32_0 : i32, i32
  }
  func.func @transform_4(%arg0: i32) -> (i32, i32) {
    %c0_i32 = arith.constant 0 : i32
    %c0_i32_0 = arith.constant 0 : i32
    %c0_i32_1 = arith.constant 0 : i32
    return %c0_i32, %c0_i32_0 : i32, i32
  }
}

module attributes {stable_mosaic.version = 11 : i64} {
  func.func @_fused_matmul_kernel(%arg0: i32, %arg1: memref<128x576xbf16, #tpu.memory_space<vmem>>, %arg2: memref<576x32xbf16, #tpu.memory_space<vmem>>, %arg3: memref<1x32xf32, #tpu.memory_space<vmem>>, %arg4: memref<128x32xf32, #tpu.memory_space<vmem>>) attributes {dimension_semantics = [#tpu.dimension_semantics<arbitrary>], iteration_bounds = array<i64: 1>, scalar_prefetch = 0 : i64, scratch_operands = 0 : i64, tpu.core_type = #tpu.core_type<tc>, window_params = [{pipeline_mode = #tpu.pipeline_mode<synchronous>, transform_indices = @transform_0, window_bounds = array<i64: 128, 576>}, {pipeline_mode = #tpu.pipeline_mode<synchronous>, transform_indices = @transform_1, window_bounds = array<i64: 576, 32>}, {pipeline_mode = #tpu.pipeline_mode<synchronous>, transform_indices = @transform_2, window_bounds = array<i64: 1, 32>}, {pipeline_mode = #tpu.pipeline_mode<synchronous>, transform_indices = @transform_3, window_bounds = array<i64: 128, 32>}]} {
    %c0 = arith.constant 0 : index
    %c0_0 = arith.constant 0 : index
    %0 = vector.load %arg1[%c0, %c0_0] : memref<128x576xbf16, #tpu.memory_space<vmem>>, vector<128x576xbf16>
    %c0_1 = arith.constant 0 : index
    %c0_2 = arith.constant 0 : index
    %1 = vector.load %arg2[%c0_1, %c0_2] : memref<576x32xbf16, #tpu.memory_space<vmem>>, vector<576x32xbf16>
    %cst = arith.constant dense<0.000000e+00> : vector<128x32xf32>
    %2 = tpu.matmul %0, %1, %cst {dimension_numbers = #tpu.dot_dimension_numbers<[1], [0], [0], [1], [0, 0, 1, 1], [], []>} : vector<128x576xbf16>, vector<576x32xbf16>, vector<128x32xf32> -> vector<128x32xf32>
    %c0_3 = arith.constant 0 : index
    %c0_4 = arith.constant 0 : index
    %3 = vector.load %arg3[%c0_3, %c0_4] : memref<1x32xf32, #tpu.memory_space<vmem>>, vector<1x32xf32>
    %4 = vector.broadcast %3 : vector<1x32xf32> to vector<128x32xf32>
    %5 = arith.addf %2, %4 : vector<128x32xf32>
    %cst_5 = arith.constant 0.000000e+00 : f32
    %6 = vector.broadcast %cst_5 : f32 to vector<128x32xf32>
    %7 = arith.maximumf %5, %6 : vector<128x32xf32>
    %c0_6 = arith.constant 0 : index
    %c0_7 = arith.constant 0 : index
    %8 = vector.load %arg4[%c0_6, %c0_7] : memref<128x32xf32, #tpu.memory_space<vmem>>, vector<128x32xf32>
    tpu.vector_store %arg4[%c0_6, %c0_7], %7 {strides = array<i32>} : memref<128x32xf32, #tpu.memory_space<vmem>>, vector<128x32xf32>,
    return
  }
  func.func @transform_0(%arg0: i32) -> (i32, i32) {
    %c0_i32 = arith.constant 0 : i32
    %c0_i32_0 = arith.constant 0 : i32
    %c0_i32_1 = arith.constant 0 : i32
    return %c0_i32, %c0_i32_0 : i32, i32
  }
  func.func @transform_1(%arg0: i32) -> (i32, i32) {
    %c0_i32 = arith.constant 0 : i32
    %c0_i32_0 = arith.constant 0 : i32
    %c0_i32_1 = arith.constant 0 : i32
    return %c0_i32, %c0_i32_0 : i32, i32
  }
  func.func @transform_2(%arg0: i32) -> (i32, i32) {
    %c0_i32 = arith.constant 0 : i32
    %c0_i32_0 = arith.constant 0 : i32
    %c0_i32_1 = arith.constant 0 : i32
    return %c0_i32, %c0_i32_0 : i32, i32
  }
  func.func @transform_3(%arg0: i32) -> (i32, i32) {
    %c0_i32 = arith.constant 0 : i32
    %c0_i32_0 = arith.constant 0 : i32
    %c0_i32_1 = arith.constant 0 : i32
    return %c0_i32, %c0_i32_0 : i32, i32
  }
}

module attributes {stable_mosaic.version = 11 : i64} {
  func.func @_fused_matmul_kernel(%arg0: i32, %arg1: memref<512x288xbf16, #tpu.memory_space<vmem>>, %arg2: memref<288x16xbf16, #tpu.memory_space<vmem>>, %arg3: memref<1x16xf32, #tpu.memory_space<vmem>>, %arg4: memref<512x16xf32, #tpu.memory_space<vmem>>) attributes {dimension_semantics = [#tpu.dimension_semantics<arbitrary>], iteration_bounds = array<i64: 1>, scalar_prefetch = 0 : i64, scratch_operands = 0 : i64, tpu.core_type = #tpu.core_type<tc>, window_params = [{pipeline_mode = #tpu.pipeline_mode<synchronous>, transform_indices = @transform_0, window_bounds = array<i64: 512, 288>}, {pipeline_mode = #tpu.pipeline_mode<synchronous>, transform_indices = @transform_1, window_bounds = array<i64: 288, 16>}, {pipeline_mode = #tpu.pipeline_mode<synchronous>, transform_indices = @transform_2, window_bounds = array<i64: 1, 16>}, {pipeline_mode = #tpu.pipeline_mode<synchronous>, transform_indices = @transform_3, window_bounds = array<i64: 512, 16>}]} {
    %c0 = arith.constant 0 : index
    %c0_0 = arith.constant 0 : index
    %0 = vector.load %arg1[%c0, %c0_0] : memref<512x288xbf16, #tpu.memory_space<vmem>>, vector<512x288xbf16>
    %c0_1 = arith.constant 0 : index
    %c0_2 = arith.constant 0 : index
    %1 = vector.load %arg2[%c0_1, %c0_2] : memref<288x16xbf16, #tpu.memory_space<vmem>>, vector<288x16xbf16>
    %cst = arith.constant dense<0.000000e+00> : vector<512x16xf32>
    %2 = tpu.matmul %0, %1, %cst {dimension_numbers = #tpu.dot_dimension_numbers<[1], [0], [0], [1], [0, 0, 1, 1], [], []>} : vector<512x288xbf16>, vector<288x16xbf16>, vector<512x16xf32> -> vector<512x16xf32>
    %c0_3 = arith.constant 0 : index
    %c0_4 = arith.constant 0 : index
    %3 = vector.load %arg3[%c0_3, %c0_4] : memref<1x16xf32, #tpu.memory_space<vmem>>, vector<1x16xf32>
    %4 = vector.broadcast %3 : vector<1x16xf32> to vector<512x16xf32>
    %5 = arith.addf %2, %4 : vector<512x16xf32>
    %cst_5 = arith.constant 0.000000e+00 : f32
    %6 = vector.broadcast %cst_5 : f32 to vector<512x16xf32>
    %7 = arith.maximumf %5, %6 : vector<512x16xf32>
    %c0_6 = arith.constant 0 : index
    %c0_7 = arith.constant 0 : index
    %8 = vector.load %arg4[%c0_6, %c0_7] : memref<512x16xf32, #tpu.memory_space<vmem>>, vector<512x16xf32>
    tpu.vector_store %arg4[%c0_6, %c0_7], %7 {strides = array<i32>} : memref<512x16xf32, #tpu.memory_space<vmem>>, vector<512x16xf32>,
    return
  }
  func.func @transform_0(%arg0: i32) -> (i32, i32) {
    %c0_i32 = arith.constant 0 : i32
    %c0_i32_0 = arith.constant 0 : i32
    %c0_i32_1 = arith.constant 0 : i32
    return %c0_i32, %c0_i32_0 : i32, i32
  }
  func.func @transform_1(%arg0: i32) -> (i32, i32) {
    %c0_i32 = arith.constant 0 : i32
    %c0_i32_0 = arith.constant 0 : i32
    %c0_i32_1 = arith.constant 0 : i32
    return %c0_i32, %c0_i32_0 : i32, i32
  }
  func.func @transform_2(%arg0: i32) -> (i32, i32) {
    %c0_i32 = arith.constant 0 : i32
    %c0_i32_0 = arith.constant 0 : i32
    %c0_i32_1 = arith.constant 0 : i32
    return %c0_i32, %c0_i32_0 : i32, i32
  }
  func.func @transform_3(%arg0: i32) -> (i32, i32) {
    %c0_i32 = arith.constant 0 : i32
    %c0_i32_0 = arith.constant 0 : i32
    %c0_i32_1 = arith.constant 0 : i32
    return %c0_i32, %c0_i32_0 : i32, i32
  }
}

module attributes {stable_mosaic.version = 11 : i64} {
  func.func @_fused_matmul_kernel(%arg0: i32, %arg1: memref<512x144xbf16, #tpu.memory_space<vmem>>, %arg2: memref<144x1xbf16, #tpu.memory_space<vmem>>, %arg3: memref<1x1xf32, #tpu.memory_space<vmem>>, %arg4: memref<512x1xf32, #tpu.memory_space<vmem>>) attributes {dimension_semantics = [#tpu.dimension_semantics<arbitrary>], iteration_bounds = array<i64: 1>, scalar_prefetch = 0 : i64, scratch_operands = 0 : i64, tpu.core_type = #tpu.core_type<tc>, window_params = [{pipeline_mode = #tpu.pipeline_mode<synchronous>, transform_indices = @transform_0, window_bounds = array<i64: 512, 144>}, {pipeline_mode = #tpu.pipeline_mode<synchronous>, transform_indices = @transform_1, window_bounds = array<i64: 144, 1>}, {pipeline_mode = #tpu.pipeline_mode<synchronous>, transform_indices = @transform_2, window_bounds = array<i64: 1, 1>}, {pipeline_mode = #tpu.pipeline_mode<synchronous>, transform_indices = @transform_3, window_bounds = array<i64: 512, 1>}]} {
    %c0 = arith.constant 0 : index
    %c0_0 = arith.constant 0 : index
    %0 = vector.load %arg1[%c0, %c0_0] : memref<512x144xbf16, #tpu.memory_space<vmem>>, vector<512x144xbf16>
    %c0_1 = arith.constant 0 : index
    %c0_2 = arith.constant 0 : index
    %1 = vector.load %arg2[%c0_1, %c0_2] : memref<144x1xbf16, #tpu.memory_space<vmem>>, vector<144x1xbf16>
    %cst = arith.constant dense<0.000000e+00> : vector<512x1xf32>
    %2 = tpu.matmul %0, %1, %cst {dimension_numbers = #tpu.dot_dimension_numbers<[1], [0], [0], [1], [0, 0, 1, 1], [], []>} : vector<512x144xbf16>, vector<144x1xbf16>, vector<512x1xf32> -> vector<512x1xf32>
    %c0_3 = arith.constant 0 : index
    %c0_4 = arith.constant 0 : index
    %3 = vector.load %arg3[%c0_3, %c0_4] : memref<1x1xf32, #tpu.memory_space<vmem>>, vector<1x1xf32>
    %4 = vector.broadcast %3 : vector<1x1xf32> to vector<512x1xf32>
    %5 = arith.addf %2, %4 : vector<512x1xf32>
    %6 = math.tanh %5 : vector<512x1xf32>
    %c0_5 = arith.constant 0 : index
    %c0_6 = arith.constant 0 : index
    %7 = vector.load %arg4[%c0_5, %c0_6] : memref<512x1xf32, #tpu.memory_space<vmem>>, vector<512x1xf32>
    tpu.vector_store %arg4[%c0_5, %c0_6], %6 {strides = array<i32>} : memref<512x1xf32, #tpu.memory_space<vmem>>, vector<512x1xf32>,
    return
  }
  func.func @transform_0(%arg0: i32) -> (i32, i32) {
    %c0_i32 = arith.constant 0 : i32
    %c0_i32_0 = arith.constant 0 : i32
    %c0_i32_1 = arith.constant 0 : i32
    return %c0_i32, %c0_i32_0 : i32, i32
  }
  func.func @transform_1(%arg0: i32) -> (i32, i32) {
    %c0_i32 = arith.constant 0 : i32
    %c0_i32_0 = arith.constant 0 : i32
    %c0_i32_1 = arith.constant 0 : i32
    return %c0_i32, %c0_i32_0 : i32, i32
  }
  func.func @transform_2(%arg0: i32) -> (i32, i32) {
    %c0_i32 = arith.constant 0 : i32
    %c0_i32_0 = arith.constant 0 : i32
    %c0_i32_1 = arith.constant 0 : i32
    return %c0_i32, %c0_i32_0 : i32, i32
  }
  func.func @transform_3(%arg0: i32) -> (i32, i32) {
    %c0_i32 = arith.constant 0 : i32
    %c0_i32_0 = arith.constant 0 : i32
    %c0_i32_1 = arith.constant 0 : i32
    return %c0_i32, %c0_i32_0 : i32, i32
  }
}

</mosaic_0001>

<llo_original>
// kernel: resnet_autoencoder.8
$region0: #{resnet_autoencoder.8}
  #allocation0 [shape = 'u32[]', space=smem, size = 0x4, offset = 0x4, fixed_abs, tag = 'smem constant byte address 0x4 - core index']
  #allocation1 [shape = 'u32[144,128]{1,0:T(1,128)}', space=vmem, size = 0x12000, scoped, tag = 'internal scratch']
  %s0 = inlined_call_operand.vmem [shape: bf16[512,9], index: 0, kind: input, shape index: {}]
  %s1 = inlined_call_operand.vmem [shape: bf16[9,16], index: 1, kind: input, shape index: {}]
  %s2 = inlined_call_operand.vmem [shape: f32[1,16], index: 2, kind: input, shape index: {}]
  %s3 = inlined_call_operand.vmem [shape: f32[512,16], index: 3, kind: output, shape index: {}]
  %s4 = sld [smem:[#allocation0]]
  $region22: #{resnet_autoencoder.8} parent=0
    _
  %s6 = ssub.s32 1, %s4
  %s7 = scalar_select 0, %s6, %s4
  // Predicated region
  $region2: #{resnet_autoencoder.8} parent=0 // pred_check
    _
  $region3: #{resnet_autoencoder.8} parent=0 // pred_check_branch
    %9 = sbr.rel (0) target = $region5
  $region4: #{resnet_autoencoder.8} parent=0 // pred_region
    _
  $region5: #{resnet_autoencoder.8} parent=0 // pred_fallthru
    _
  // Predicated region
  $region6: #{resnet_autoencoder.8} parent=0 // pred_check
    _
  $region7: #{resnet_autoencoder.8} parent=0 // pred_check_branch
    %11 = sbr.rel (0) target = $region9
  $region8: #{resnet_autoencoder.8} parent=0 // pred_region
    _
  $region9: #{resnet_autoencoder.8} parent=0 // pred_fallthru
    _
  // Predicated region
  $region10: #{resnet_autoencoder.8} parent=0 // pred_check
    _
  $region11: #{resnet_autoencoder.8} parent=0 // pred_check_branch
    %13 = sbr.rel (0) target = $region13
  $region12: #{resnet_autoencoder.8} parent=0 // pred_region
    _
  $region13: #{resnet_autoencoder.8} parent=0 // pred_fallthru
    _
  %v15 = vld [vmem:[%s0] sm:$0xf]
  %v16 = vld [vmem:[%s0 + $0x4] sm:$0xf]
  %v17 = vld [vmem:[%s0 + $0x8] sm:$0xf]
  %v18 = vld [vmem:[%s0 + $0xc] sm:$0xf]
  %v19 = vld [vmem:[%s0 + $0x10] sm:$0xf]
  %v20 = vld [vmem:[%s0 + $0x14] sm:$0xf]
  %v21 = vld [vmem:[%s0 + $0x18] sm:$0xf]
  %v22 = vld [vmem:[%s0 + $0x1c] sm:$0xf]
  %v23 = vld [vmem:[%s0 + $0x20] sm:$0xf]
  %v24 = vld [vmem:[%s0 + $0x24] sm:$0xf]
  %v25 = vld [vmem:[%s0 + $0x28] sm:$0xf]
  %v26 = vld [vmem:[%s0 + $0x2c] sm:$0xf]
  %v27 = vld [vmem:[%s0 + $0x30] sm:$0xf]
  %v28 = vld [vmem:[%s0 + $0x34] sm:$0xf]
  %v29 = vld [vmem:[%s0 + $0x38] sm:$0xf]
  %v30 = vld [vmem:[%s0 + $0x3c] sm:$0xf]
  %v31 = vld [vmem:[%s0 + $0x40] sm:$0xf]
  %v32 = vld [vmem:[%s0 + $0x44] sm:$0xf]
  %v33 = vld [vmem:[%s0 + $0x48] sm:$0xf]
  %v34 = vld [vmem:[%s0 + $0x4c] sm:$0xf]
  %v35 = vld [vmem:[%s0 + $0x50] sm:$0xf]
  %v36 = vld [vmem:[%s0 + $0x54] sm:$0xf]
  %v37 = vld [vmem:[%s0 + $0x58] sm:$0xf]
  %v38 = vld [vmem:[%s0 + $0x5c] sm:$0xf]
  %v39 = vld [vmem:[%s0 + $0x60] sm:$0xf]
  %v40 = vld [vmem:[%s0 + $0x64] sm:$0xf]
  %v41 = vld [vmem:[%s0 + $0x68] sm:$0xf]
  %v42 = vld [vmem:[%s0 + $0x6c] sm:$0xf]
  %v43 = vld [vmem:[%s0 + $0x70] sm:$0xf]
  %v44 = vld [vmem:[%s0 + $0x74] sm:$0xf]
  %v45 = vld [vmem:[%s0 + $0x78] sm:$0xf]
  %v46 = vld [vmem:[%s0 + $0x7c] sm:$0xf]
  %v47 = vld [vmem:[%s0 + $0x80] sm:$0xf]
  %v48 = vld [vmem:[%s0 + $0x84] sm:$0xf]
  %v49 = vld [vmem:[%s0 + $0x88] sm:$0xf]
  %v50 = vld [vmem:[%s0 + $0x8c] sm:$0xf]
  %v51 = vld [vmem:[%s0 + $0x90] sm:$0xf]
  %v52 = vld [vmem:[%s0 + $0x94] sm:$0xf]
  %v53 = vld [vmem:[%s0 + $0x98] sm:$0xf]
  %v54 = vld [vmem:[%s0 + $0x9c] sm:$0xf]
  %v55 = vld [vmem:[%s0 + $0xa0] sm:$0xf]
  %v56 = vld [vmem:[%s0 + $0xa4] sm:$0xf]
  %v57 = vld [vmem:[%s0 + $0xa8] sm:$0xf]
  %v58 = vld [vmem:[%s0 + $0xac] sm:$0xf]
  %v59 = vld [vmem:[%s0 + $0xb0] sm:$0xf]
  %v60 = vld [vmem:[%s0 + $0xb4] sm:$0xf]
  %v61 = vld [vmem:[%s0 + $0xb8] sm:$0xf]
  %v62 = vld [vmem:[%s0 + $0xbc] sm:$0xf]
  %v63 = vld [vmem:[%s0 + $0xc0] sm:$0xf]
  %v64 = vld [vmem:[%s0 + $0xc4] sm:$0xf]
  %v65 = vld [vmem:[%s0 + $0xc8] sm:$0xf]
  %v66 = vld [vmem:[%s0 + $0xcc] sm:$0xf]
  %v67 = vld [vmem:[%s0 + $0xd0] sm:$0xf]
  %v68 = vld [vmem:[%s0 + $0xd4] sm:$0xf]
  %v69 = vld [vmem:[%s0 + $0xd8] sm:$0xf]
  %v70 = vld [vmem:[%s0 + $0xdc] sm:$0xf]
  %v71 = vld [vmem:[%s0 + $0xe0] sm:$0xf]
  %v72 = vld [vmem:[%s0 + $0xe4] sm:$0xf]
  %v73 = vld [vmem:[%s0 + $0xe8] sm:$0xf]
  %v74 = vld [vmem:[%s0 + $0xec] sm:$0xf]
  %v75 = vld [vmem:[%s0 + $0xf0] sm:$0xf]
  %v76 = vld [vmem:[%s0 + $0xf4] sm:$0xf]
  %v77 = vld [vmem:[%s0 + $0xf8] sm:$0xf]
  %v78 = vld [vmem:[%s0 + $0xfc] sm:$0xf]
  %v79 = vld [vmem:[%s1] sm:$0xf]
  %v80 = vld [vmem:[%s1 + $0x4] sm:$0x1]
  %v81 = vld [vmem:[%s2] sm:$0x1]
  %v83 = vlaneseq
  %v84 = vshrl.u32 %v83, 7
  %v85 = vsub.s32 0, %v84
  %v86 = vrot.slane %v81, %v85
  %v152 = vunpack.c.l.b16 %v15
  %v153 = vunpack.c.l.b16 %v16
  %v154 = vunpack.c.l.b16 %v17
  %v155 = vunpack.c.l.b16 %v18
  %v156 = vunpack.c.l.b16 %v19
  %v157 = vunpack.c.l.b16 %v20
  %v158 = vunpack.c.l.b16 %v21
  %v159 = vunpack.c.l.b16 %v22
  %v160 = vunpack.c.l.b16 %v23
  %v161 = vunpack.c.l.b16 %v24
  %v162 = vunpack.c.l.b16 %v25
  %v163 = vunpack.c.l.b16 %v26
  %v164 = vunpack.c.l.b16 %v27
  %v165 = vunpack.c.l.b16 %v28
  %v166 = vunpack.c.l.b16 %v29
  %v167 = vunpack.c.l.b16 %v30
  %v168 = vunpack.c.l.b16 %v31
  %v169 = vunpack.c.l.b16 %v32
  %v170 = vunpack.c.l.b16 %v33
  %v171 = vunpack.c.l.b16 %v34
  %v172 = vunpack.c.l.b16 %v35
  %v173 = vunpack.c.l.b16 %v36
  %v174 = vunpack.c.l.b16 %v37
  %v175 = vunpack.c.l.b16 %v38
  %v176 = vunpack.c.l.b16 %v39
  %v177 = vunpack.c.l.b16 %v40
  %v178 = vunpack.c.l.b16 %v41
  %v179 = vunpack.c.l.b16 %v42
  %v180 = vunpack.c.l.b16 %v43
  %v181 = vunpack.c.l.b16 %v44
  %v182 = vunpack.c.l.b16 %v45
  %v183 = vunpack.c.l.b16 %v46
  %v184 = vunpack.c.l.b16 %v47
  %v185 = vunpack.c.l.b16 %v48
  %v186 = vunpack.c.l.b16 %v49
  %v187 = vunpack.c.l.b16 %v50
  %v188 = vunpack.c.l.b16 %v51
  %v189 = vunpack.c.l.b16 %v52
  %v190 = vunpack.c.l.b16 %v53
  %v191 = vunpack.c.l.b16 %v54
  %v192 = vunpack.c.l.b16 %v55
  %v193 = vunpack.c.l.b16 %v56
  %v194 = vunpack.c.l.b16 %v57
  %v195 = vunpack.c.l.b16 %v58
  %v196 = vunpack.c.l.b16 %v59
  %v197 = vunpack.c.l.b16 %v60
  %v198 = vunpack.c.l.b16 %v61
  %v199 = vunpack.c.l.b16 %v62
  %v200 = vunpack.c.l.b16 %v63
  %v201 = vunpack.c.l.b16 %v64
  %v202 = vunpack.c.l.b16 %v65
  %v203 = vunpack.c.l.b16 %v66
  %v204 = vunpack.c.l.b16 %v67
  %v205 = vunpack.c.l.b16 %v68
  %v206 = vunpack.c.l.b16 %v69
  %v207 = vunpack.c.l.b16 %v70
  %v208 = vunpack.c.l.b16 %v71
  %v209 = vunpack.c.l.b16 %v72
  %v210 = vunpack.c.l.b16 %v73
  %v211 = vunpack.c.l.b16 %v74
  %v212 = vunpack.c.l.b16 %v75
  %v213 = vunpack.c.l.b16 %v76
  %v214 = vunpack.c.l.b16 %v77
  %v215 = vunpack.c.l.b16 %v78
  %v216 = vpack.c.b16 %v153, %v152
  %v217 = vpack.c.b16 %v155, %v154
  %v218 = vpack.c.b16 %v157, %v156
  %v219 = vpack.c.b16 %v159, %v158
  %v220 = vpack.c.b16 %v161, %v160
  %v221 = vpack.c.b16 %v163, %v162
  %v222 = vpack.c.b16 %v165, %v164
  %v223 = vpack.c.b16 %v167, %v166
  %v224 = vpack.c.b16 %v169, %v168
  %v225 = vpack.c.b16 %v171, %v170
  %v226 = vpack.c.b16 %v173, %v172
  %v227 = vpack.c.b16 %v175, %v174
  %v228 = vpack.c.b16 %v177, %v176
  %v229 = vpack.c.b16 %v179, %v178
  %v230 = vpack.c.b16 %v181, %v180
  %v231 = vpack.c.b16 %v183, %v182
  %v232 = vpack.c.b16 %v185, %v184
  %v233 = vpack.c.b16 %v187, %v186
  %v234 = vpack.c.b16 %v189, %v188
  %v235 = vpack.c.b16 %v191, %v190
  %v236 = vpack.c.b16 %v193, %v192
  %v237 = vpack.c.b16 %v195, %v194
  %v238 = vpack.c.b16 %v197, %v196
  %v239 = vpack.c.b16 %v199, %v198
  %v240 = vpack.c.b16 %v201, %v200
  %v241 = vpack.c.b16 %v203, %v202
  %v242 = vpack.c.b16 %v205, %v204
  %v243 = vpack.c.b16 %v207, %v206
  %v244 = vpack.c.b16 %v209, %v208
  %v245 = vpack.c.b16 %v211, %v210
  %v246 = vpack.c.b16 %v213, %v212
  %v247 = vpack.c.b16 %v215, %v214
  %v250 = vunpack.c.l.b16 %v79
  %v251 = vunpack.c.l.b16 %v80
  %v252 = vpack.c.b16 %v251, %v250
  %vm253 = vcmask 72704
  %v255 = vsel %vm253, %v216, 0
  %v258 = vsel %vm253, %v217, 0
  %v261 = vsel %vm253, %v218, 0
  %v264 = vsel %vm253, %v219, 0
  %v267 = vsel %vm253, %v220, 0
  %v270 = vsel %vm253, %v221, 0
  %v273 = vsel %vm253, %v222, 0
  %v276 = vsel %vm253, %v223, 0
  %v279 = vsel %vm253, %v224, 0
  %v282 = vsel %vm253, %v225, 0
  %v285 = vsel %vm253, %v226, 0
  %v288 = vsel %vm253, %v227, 0
  %v291 = vsel %vm253, %v228, 0
  %v294 = vsel %vm253, %v229, 0
  %v297 = vsel %vm253, %v230, 0
  %v300 = vsel %vm253, %v231, 0
  %v303 = vsel %vm253, %v232, 0
  %v306 = vsel %vm253, %v233, 0
  %v309 = vsel %vm253, %v234, 0
  %v312 = vsel %vm253, %v235, 0
  %v315 = vsel %vm253, %v236, 0
  %v318 = vsel %vm253, %v237, 0
  %v321 = vsel %vm253, %v238, 0
  %v324 = vsel %vm253, %v239, 0
  %v327 = vsel %vm253, %v240, 0
  %v330 = vsel %vm253, %v241, 0
  %v333 = vsel %vm253, %v242, 0
  %v336 = vsel %vm253, %v243, 0
  %v339 = vsel %vm253, %v244, 0
  %v342 = vsel %vm253, %v245, 0
  %v345 = vsel %vm253, %v246, 0
  %v348 = vsel %vm253, %v247, 0
  %vm350 = vcmask 1043456
  %vm351 = vcmask 1044480
  %v352 = vsel %vm350, 4294967295, 65535
  %v353 = vsel %vm351, %v352, 0
  %v355 = vand.u32 %v252, %v353
  %357 = vmatprep.subr.bf16.mxu0 0
  %358 = vmatpush1.bf16.msra.mxu0 %v355
  %359 = vmatprep.subr.bf16.mxu0 0
  %360 = vmatpush1.bf16.msra.mxu0 0
  %361 = vmatprep.subr.bf16.mxu0 0
  %362 = vmatpush1.bf16.msra.mxu0 0
  %363 = vmatprep.subr.bf16.mxu0 0
  %364 = vmatpush1.bf16.msra.mxu0 0
  %365 = vmatprep.subr.bf16.mxu0 0
  %366 = vmatpush1.bf16.msra.mxu0 0
  %367 = vmatprep.subr.bf16.mxu0 0
  %368 = vmatpush1.bf16.msra.mxu0 0
  %369 = vmatprep.subr.bf16.mxu0 0
  %370 = vmatpush1.bf16.msra.mxu0 0
  %371 = vmatprep.subr.bf16.mxu0 0
  %372 = vmatpush1.bf16.msra.mxu0 0
  %373 = vmatprep.subr.bf16.mxu0 0
  %374 = vmatpush1.bf16.msra.mxu0 0
  %375 = vmatprep.subr.bf16.mxu0 0
  %376 = vmatpush1.bf16.msra.mxu0 0
  %377 = vmatprep.subr.bf16.mxu0 0
  %378 = vmatpush1.bf16.msra.mxu0 0
  %379 = vmatprep.subr.bf16.mxu0 0
  %380 = vmatpush1.bf16.msra.mxu0 0
  %381 = vmatprep.subr.bf16.mxu0 0
  %382 = vmatpush1.bf16.msra.mxu0 0
  %383 = vmatprep.subr.bf16.mxu0 0
  %384 = vmatpush1.bf16.msra.mxu0 0
  %385 = vmatprep.subr.bf16.mxu0 0
  %386 = vmatpush1.bf16.msra.mxu0 0
  %387 = vmatprep.subr.bf16.mxu0 0
  %388 = vmatpush1.bf16.msra.mxu0 0
  %389 = vmatprep.mubr.bf16.mxu0 0
  %390 = vmatmul.mubr.bf16.gmra.mrb[0].mxu0 %v255
  %v391 = vpop.f32.mrb[0].mxu0
  %v392 = vadd.f32 %v86, %v391
  %v393 = vpop.f32.mrb[0].mxu0
  %v394 = vpop.f32.mrb[0].mxu0
  %v395 = vadd.f32 %v86, %v394
  %v396 = vpop.f32.mrb[0].mxu0
  %397 = vmatprep.mubr.bf16.mxu0 0
  %398 = vmatmul.mubr.bf16.gmra.mrb[0].mxu0 %v258
  %v399 = vpop.f32.mrb[0].mxu0
  %v400 = vadd.f32 %v86, %v399
  %v401 = vpop.f32.mrb[0].mxu0
  %v402 = vpop.f32.mrb[0].mxu0
  %v403 = vadd.f32 %v86, %v402
  %v404 = vpop.f32.mrb[0].mxu0
  %405 = vmatprep.mubr.bf16.mxu0 0
  %406 = vmatmul.mubr.bf16.gmra.mrb[0].mxu0 %v261
  %v407 = vpop.f32.mrb[0].mxu0
  %v408 = vadd.f32 %v86, %v407
  %v409 = vpop.f32.mrb[0].mxu0
  %v410 = vpop.f32.mrb[0].mxu0
  %v411 = vadd.f32 %v86, %v410
  %v412 = vpop.f32.mrb[0].mxu0
  %413 = vmatprep.mubr.bf16.mxu0 0
  %414 = vmatmul.mubr.bf16.gmra.mrb[0].mxu0 %v264
  %v415 = vpop.f32.mrb[0].mxu0
  %v416 = vadd.f32 %v86, %v415
  %v417 = vpop.f32.mrb[0].mxu0
  %v418 = vpop.f32.mrb[0].mxu0
  %v419 = vadd.f32 %v86, %v418
  %v420 = vpop.f32.mrb[0].mxu0
  %421 = vmatprep.mubr.bf16.mxu0 0
  %422 = vmatmul.mubr.bf16.gmra.mrb[0].mxu0 %v267
  %v423 = vpop.f32.mrb[0].mxu0
  %v424 = vadd.f32 %v86, %v423
  %v425 = vpop.f32.mrb[0].mxu0
  %v426 = vpop.f32.mrb[0].mxu0
  %v427 = vadd.f32 %v86, %v426
  %v428 = vpop.f32.mrb[0].mxu0
  %429 = vmatprep.mubr.bf16.mxu0 0
  %430 = vmatmul.mubr.bf16.gmra.mrb[0].mxu0 %v270
  %v431 = vpop.f32.mrb[0].mxu0
  %v432 = vadd.f32 %v86, %v431
  %v433 = vpop.f32.mrb[0].mxu0
  %v434 = vpop.f32.mrb[0].mxu0
  %v435 = vadd.f32 %v86, %v434
  %v436 = vpop.f32.mrb[0].mxu0
  %437 = vmatprep.mubr.bf16.mxu0 0
  %438 = vmatmul.mubr.bf16.gmra.mrb[0].mxu0 %v273
  %v439 = vpop.f32.mrb[0].mxu0
  %v440 = vadd.f32 %v86, %v439
  %v441 = vpop.f32.mrb[0].mxu0
  %v442 = vpop.f32.mrb[0].mxu0
  %v443 = vadd.f32 %v86, %v442
  %v444 = vpop.f32.mrb[0].mxu0
  %445 = vmatprep.mubr.bf16.mxu0 0
  %446 = vmatmul.mubr.bf16.gmra.mrb[0].mxu0 %v276
  %v447 = vpop.f32.mrb[0].mxu0
  %v448 = vadd.f32 %v86, %v447
  %v449 = vpop.f32.mrb[0].mxu0
  %v450 = vpop.f32.mrb[0].mxu0
  %v451 = vadd.f32 %v86, %v450
  %v452 = vpop.f32.mrb[0].mxu0
  %453 = vmatprep.mubr.bf16.mxu0 0
  %454 = vmatmul.mubr.bf16.gmra.mrb[0].mxu0 %v279
  %v455 = vpop.f32.mrb[0].mxu0
  %v456 = vadd.f32 %v86, %v455
  %v457 = vpop.f32.mrb[0].mxu0
  %v458 = vpop.f32.mrb[0].mxu0
  %v459 = vadd.f32 %v86, %v458
  %v460 = vpop.f32.mrb[0].mxu0
  %461 = vmatprep.mubr.bf16.mxu0 0
  %462 = vmatmul.mubr.bf16.gmra.mrb[0].mxu0 %v282
  %v463 = vpop.f32.mrb[0].mxu0
  %v464 = vadd.f32 %v86, %v463
  %v465 = vpop.f32.mrb[0].mxu0
  %v466 = vpop.f32.mrb[0].mxu0
  %v467 = vadd.f32 %v86, %v466
  %v468 = vpop.f32.mrb[0].mxu0
  %469 = vmatprep.mubr.bf16.mxu0 0
  %470 = vmatmul.mubr.bf16.gmra.mrb[0].mxu0 %v285
  %v471 = vpop.f32.mrb[0].mxu0
  %v472 = vadd.f32 %v86, %v471
  %v473 = vpop.f32.mrb[0].mxu0
  %v474 = vpop.f32.mrb[0].mxu0
  %v475 = vadd.f32 %v86, %v474
  %v476 = vpop.f32.mrb[0].mxu0
  %477 = vmatprep.mubr.bf16.mxu0 0
  %478 = vmatmul.mubr.bf16.gmra.mrb[0].mxu0 %v288
  %v479 = vpop.f32.mrb[0].mxu0
  %v480 = vadd.f32 %v86, %v479
  %v481 = vpop.f32.mrb[0].mxu0
  %v482 = vpop.f32.mrb[0].mxu0
  %v483 = vadd.f32 %v86, %v482
  %v484 = vpop.f32.mrb[0].mxu0
  %485 = vmatprep.mubr.bf16.mxu0 0
  %486 = vmatmul.mubr.bf16.gmra.mrb[0].mxu0 %v291
  %v487 = vpop.f32.mrb[0].mxu0
  %v488 = vadd.f32 %v86, %v487
  %v489 = vpop.f32.mrb[0].mxu0
  %v490 = vpop.f32.mrb[0].mxu0
  %v491 = vadd.f32 %v86, %v490
  %v492 = vpop.f32.mrb[0].mxu0
  %493 = vmatprep.mubr.bf16.mxu0 0
  %494 = vmatmul.mubr.bf16.gmra.mrb[0].mxu0 %v294
  %v495 = vpop.f32.mrb[0].mxu0
  %v496 = vadd.f32 %v86, %v495
  %v497 = vpop.f32.mrb[0].mxu0
  %v498 = vpop.f32.mrb[0].mxu0
  %v499 = vadd.f32 %v86, %v498
  %v500 = vpop.f32.mrb[0].mxu0
  %501 = vmatprep.mubr.bf16.mxu0 0
  %502 = vmatmul.mubr.bf16.gmra.mrb[0].mxu0 %v297
  %v503 = vpop.f32.mrb[0].mxu0
  %v504 = vadd.f32 %v86, %v503
  %v505 = vpop.f32.mrb[0].mxu0
  %v506 = vpop.f32.mrb[0].mxu0
  %v507 = vadd.f32 %v86, %v506
  %v508 = vpop.f32.mrb[0].mxu0
  %509 = vmatprep.mubr.bf16.mxu0 0
  %510 = vmatmul.mubr.bf16.gmra.mrb[0].mxu0 %v300
  %v511 = vpop.f32.mrb[0].mxu0
  %v512 = vadd.f32 %v86, %v511
  %v513 = vpop.f32.mrb[0].mxu0
  %v514 = vpop.f32.mrb[0].mxu0
  %v515 = vadd.f32 %v86, %v514
  %v516 = vpop.f32.mrb[0].mxu0
  %517 = vmatprep.mubr.bf16.mxu0 0
  %518 = vmatmul.mubr.bf16.gmra.mrb[0].mxu0 %v303
  %v519 = vpop.f32.mrb[0].mxu0
  %v520 = vadd.f32 %v86, %v519
  %v521 = vpop.f32.mrb[0].mxu0
  %v522 = vpop.f32.mrb[0].mxu0
  %v523 = vadd.f32 %v86, %v522
  %v524 = vpop.f32.mrb[0].mxu0
  %525 = vmatprep.mubr.bf16.mxu0 0
  %526 = vmatmul.mubr.bf16.gmra.mrb[0].mxu0 %v306
  %v527 = vpop.f32.mrb[0].mxu0
  %v528 = vadd.f32 %v86, %v527
  %v529 = vpop.f32.mrb[0].mxu0
  %v530 = vpop.f32.mrb[0].mxu0
  %v531 = vadd.f32 %v86, %v530
  %v532 = vpop.f32.mrb[0].mxu0
  %533 = vmatprep.mubr.bf16.mxu0 0
  %534 = vmatmul.mubr.bf16.gmra.mrb[0].mxu0 %v309
  %v535 = vpop.f32.mrb[0].mxu0
  %v536 = vadd.f32 %v86, %v535
  %v537 = vpop.f32.mrb[0].mxu0
  %v538 = vpop.f32.mrb[0].mxu0
  %v539 = vadd.f32 %v86, %v538
  %v540 = vpop.f32.mrb[0].mxu0
  %541 = vmatprep.mubr.bf16.mxu0 0
  %542 = vmatmul.mubr.bf16.gmra.mrb[0].mxu0 %v312
  %v543 = vpop.f32.mrb[0].mxu0
  %v544 = vadd.f32 %v86, %v543
  %v545 = vpop.f32.mrb[0].mxu0
  %v546 = vpop.f32.mrb[0].mxu0
  %v547 = vadd.f32 %v86, %v546
  %v548 = vpop.f32.mrb[0].mxu0
  %549 = vmatprep.mubr.bf16.mxu0 0
  %550 = vmatmul.mubr.bf16.gmra.mrb[0].mxu0 %v315
  %v551 = vpop.f32.mrb[0].mxu0
  %v552 = vadd.f32 %v86, %v551
  %v553 = vpop.f32.mrb[0].mxu0
  %v554 = vpop.f32.mrb[0].mxu0
  %v555 = vadd.f32 %v86, %v554
  %v556 = vpop.f32.mrb[0].mxu0
  %557 = vmatprep.mubr.bf16.mxu0 0
  %558 = vmatmul.mubr.bf16.gmra.mrb[0].mxu0 %v318
  %v559 = vpop.f32.mrb[0].mxu0
  %v560 = vadd.f32 %v86, %v559
  %v561 = vpop.f32.mrb[0].mxu0
  %v562 = vpop.f32.mrb[0].mxu0
  %v563 = vadd.f32 %v86, %v562
  %v564 = vpop.f32.mrb[0].mxu0
  %565 = vmatprep.mubr.bf16.mxu0 0
  %566 = vmatmul.mubr.bf16.gmra.mrb[0].mxu0 %v321
  %v567 = vpop.f32.mrb[0].mxu0
  %v568 = vadd.f32 %v86, %v567
  %v569 = vpop.f32.mrb[0].mxu0
  %v570 = vpop.f32.mrb[0].mxu0
  %v571 = vadd.f32 %v86, %v570
  %v572 = vpop.f32.mrb[0].mxu0
  %573 = vmatprep.mubr.bf16.mxu0 0
  %574 = vmatmul.mubr.bf16.gmra.mrb[0].mxu0 %v324
  %v575 = vpop.f32.mrb[0].mxu0
  %v576 = vadd.f32 %v86, %v575
  %v577 = vpop.f32.mrb[0].mxu0
  %v578 = vpop.f32.mrb[0].mxu0
  %v579 = vadd.f32 %v86, %v578
  %v580 = vpop.f32.mrb[0].mxu0
  %581 = vmatprep.mubr.bf16.mxu0 0
  %582 = vmatmul.mubr.bf16.gmra.mrb[0].mxu0 %v327
  %v583 = vpop.f32.mrb[0].mxu0
  %v584 = vadd.f32 %v86, %v583
  %v585 = vpop.f32.mrb[0].mxu0
  %v586 = vpop.f32.mrb[0].mxu0
  %v587 = vadd.f32 %v86, %v586
  %v588 = vpop.f32.mrb[0].mxu0
  %589 = vmatprep.mubr.bf16.mxu0 0
  %590 = vmatmul.mubr.bf16.gmra.mrb[0].mxu0 %v330
  %v591 = vpop.f32.mrb[0].mxu0
  %v592 = vadd.f32 %v86, %v591
  %v593 = vpop.f32.mrb[0].mxu0
  %v594 = vpop.f32.mrb[0].mxu0
  %v595 = vadd.f32 %v86, %v594
  %v596 = vpop.f32.mrb[0].mxu0
  %597 = vmatprep.mubr.bf16.mxu0 0
  %598 = vmatmul.mubr.bf16.gmra.mrb[0].mxu0 %v333
  %v599 = vpop.f32.mrb[0].mxu0
  %v600 = vadd.f32 %v86, %v599
  %v601 = vpop.f32.mrb[0].mxu0
  %v602 = vpop.f32.mrb[0].mxu0
  %v603 = vadd.f32 %v86, %v602
  %v604 = vpop.f32.mrb[0].mxu0
  %605 = vmatprep.mubr.bf16.mxu0 0
  %606 = vmatmul.mubr.bf16.gmra.mrb[0].mxu0 %v336
  %v607 = vpop.f32.mrb[0].mxu0
  %v608 = vadd.f32 %v86, %v607
  %v609 = vpop.f32.mrb[0].mxu0
  %v610 = vpop.f32.mrb[0].mxu0
  %v611 = vadd.f32 %v86, %v610
  %v612 = vpop.f32.mrb[0].mxu0
  %613 = vmatprep.mubr.bf16.mxu0 0
  %614 = vmatmul.mubr.bf16.gmra.mrb[0].mxu0 %v339
  %v615 = vpop.f32.mrb[0].mxu0
  %v616 = vadd.f32 %v86, %v615
  %v617 = vpop.f32.mrb[0].mxu0
  %v618 = vpop.f32.mrb[0].mxu0
  %v619 = vadd.f32 %v86, %v618
  %v620 = vpop.f32.mrb[0].mxu0
  %621 = vmatprep.mubr.bf16.mxu0 0
  %622 = vmatmul.mubr.bf16.gmra.mrb[0].mxu0 %v342
  %v623 = vpop.f32.mrb[0].mxu0
  %v624 = vadd.f32 %v86, %v623
  %v625 = vpop.f32.mrb[0].mxu0
  %v626 = vpop.f32.mrb[0].mxu0
  %v627 = vadd.f32 %v86, %v626
  %v628 = vpop.f32.mrb[0].mxu0
  %629 = vmatprep.mubr.bf16.mxu0 0
  %630 = vmatmul.mubr.bf16.gmra.mrb[0].mxu0 %v345
  %v631 = vpop.f32.mrb[0].mxu0
  %v632 = vadd.f32 %v86, %v631
  %v633 = vpop.f32.mrb[0].mxu0
  %v634 = vpop.f32.mrb[0].mxu0
  %v635 = vadd.f32 %v86, %v634
  %v636 = vpop.f32.mrb[0].mxu0
  %637 = vmatprep.mubr.bf16.mxu0 0
  %638 = vmatmul.mubr.bf16.gmra.mrb[0].mxu0 %v348
  %v639 = vpop.f32.mrb[0].mxu0
  %v640 = vadd.f32 %v86, %v639
  %v641 = vpop.f32.mrb[0].mxu0
  %v642 = vpop.f32.mrb[0].mxu0
  %v643 = vadd.f32 %v86, %v642
  %v644 = vpop.f32.mrb[0].mxu0
  %645 = vdwg.mxu0
  %v646 = vmax.f32 %v392, 0.0
  %v647 = vmax.f32 %v395, 0.0
  %v648 = vmax.f32 %v400, 0.0
  %v649 = vmax.f32 %v403, 0.0
  %v650 = vmax.f32 %v408, 0.0
  %v651 = vmax.f32 %v411, 0.0
  %v652 = vmax.f32 %v416, 0.0
  %v653 = vmax.f32 %v419, 0.0
  %v654 = vmax.f32 %v424, 0.0
  %v655 = vmax.f32 %v427, 0.0
  %v656 = vmax.f32 %v432, 0.0
  %v657 = vmax.f32 %v435, 0.0
  %v658 = vmax.f32 %v440, 0.0
  %v659 = vmax.f32 %v443, 0.0
  %v660 = vmax.f32 %v448, 0.0
  %v661 = vmax.f32 %v451, 0.0
  %v662 = vmax.f32 %v456, 0.0
  %v663 = vmax.f32 %v459, 0.0
  %v664 = vmax.f32 %v464, 0.0
  %v665 = vmax.f32 %v467, 0.0
  %v666 = vmax.f32 %v472, 0.0
  %v667 = vmax.f32 %v475, 0.0
  %v668 = vmax.f32 %v480, 0.0
  %v669 = vmax.f32 %v483, 0.0
  %v670 = vmax.f32 %v488, 0.0
  %v671 = vmax.f32 %v491, 0.0
  %v672 = vmax.f32 %v496, 0.0
  %v673 = vmax.f32 %v499, 0.0
  %v674 = vmax.f32 %v504, 0.0
  %v675 = vmax.f32 %v507, 0.0
  %v676 = vmax.f32 %v512, 0.0
  %v677 = vmax.f32 %v515, 0.0
  %v678 = vmax.f32 %v520, 0.0
  %v679 = vmax.f32 %v523, 0.0
  %v680 = vmax.f32 %v528, 0.0
  %v681 = vmax.f32 %v531, 0.0
  %v682 = vmax.f32 %v536, 0.0
  %v683 = vmax.f32 %v539, 0.0
  %v684 = vmax.f32 %v544, 0.0
  %v685 = vmax.f32 %v547, 0.0
  %v686 = vmax.f32 %v552, 0.0
  %v687 = vmax.f32 %v555, 0.0
  %v688 = vmax.f32 %v560, 0.0
  %v689 = vmax.f32 %v563, 0.0
  %v690 = vmax.f32 %v568, 0.0
  %v691 = vmax.f32 %v571, 0.0
  %v692 = vmax.f32 %v576, 0.0
  %v693 = vmax.f32 %v579, 0.0
  %v694 = vmax.f32 %v584, 0.0
  %v695 = vmax.f32 %v587, 0.0
  %v696 = vmax.f32 %v592, 0.0
  %v697 = vmax.f32 %v595, 0.0
  %v698 = vmax.f32 %v600, 0.0
  %v699 = vmax.f32 %v603, 0.0
  %v700 = vmax.f32 %v608, 0.0
  %v701 = vmax.f32 %v611, 0.0
  %v702 = vmax.f32 %v616, 0.0
  %v703 = vmax.f32 %v619, 0.0
  %v704 = vmax.f32 %v624, 0.0
  %v705 = vmax.f32 %v627, 0.0
  %v706 = vmax.f32 %v632, 0.0
  %v707 = vmax.f32 %v635, 0.0
  %v708 = vmax.f32 %v640, 0.0
  %v709 = vmax.f32 %v643, 0.0
  %vm710 = vcmask 130048
  %711 = vst.msk [vmem:[%s3] sm:$0xff] %vm710, %v646
  %712 = vst.msk [vmem:[%s3 + $0x8] sm:$0xff] %vm710, %v647
  %713 = vst.msk [vmem:[%s3 + $0x10] sm:$0xff] %vm710, %v648
  %714 = vst.msk [vmem:[%s3 + $0x18] sm:$0xff] %vm710, %v649
  %715 = vst.msk [vmem:[%s3 + $0x20] sm:$0xff] %vm710, %v650
  %716 = vst.msk [vmem:[%s3 + $0x28] sm:$0xff] %vm710, %v651
  %717 = vst.msk [vmem:[%s3 + $0x30] sm:$0xff] %vm710, %v652
  %718 = vst.msk [vmem:[%s3 + $0x38] sm:$0xff] %vm710, %v653
  %719 = vst.msk [vmem:[%s3 + $0x40] sm:$0xff] %vm710, %v654
  %720 = vst.msk [vmem:[%s3 + $0x48] sm:$0xff] %vm710, %v655
  %721 = vst.msk [vmem:[%s3 + $0x50] sm:$0xff] %vm710, %v656
  %722 = vst.msk [vmem:[%s3 + $0x58] sm:$0xff] %vm710, %v657
  %723 = vst.msk [vmem:[%s3 + $0x60] sm:$0xff] %vm710, %v658
  %724 = vst.msk [vmem:[%s3 + $0x68] sm:$0xff] %vm710, %v659
  %725 = vst.msk [vmem:[%s3 + $0x70] sm:$0xff] %vm710, %v660
  %726 = vst.msk [vmem:[%s3 + $0x78] sm:$0xff] %vm710, %v661
  %727 = vst.msk [vmem:[%s3 + $0x80] sm:$0xff] %vm710, %v662
  %728 = vst.msk [vmem:[%s3 + $0x88] sm:$0xff] %vm710, %v663
  %729 = vst.msk [vmem:[%s3 + $0x90] sm:$0xff] %vm710, %v664
  %730 = vst.msk [vmem:[%s3 + $0x98] sm:$0xff] %vm710, %v665
  %731 = vst.msk [vmem:[%s3 + $0xa0] sm:$0xff] %vm710, %v666
  %732 = vst.msk [vmem:[%s3 + $0xa8] sm:$0xff] %vm710, %v667
  %733 = vst.msk [vmem:[%s3 + $0xb0] sm:$0xff] %vm710, %v668
  %734 = vst.msk [vmem:[%s3 + $0xb8] sm:$0xff] %vm710, %v669
  %735 = vst.msk [vmem:[%s3 + $0xc0] sm:$0xff] %vm710, %v670
  %736 = vst.msk [vmem:[%s3 + $0xc8] sm:$0xff] %vm710, %v671
  %737 = vst.msk [vmem:[%s3 + $0xd0] sm:$0xff] %vm710, %v672
  %738 = vst.msk [vmem:[%s3 + $0xd8] sm:$0xff] %vm710, %v673
  %739 = vst.msk [vmem:[%s3 + $0xe0] sm:$0xff] %vm710, %v674
  %740 = vst.msk [vmem:[%s3 + $0xe8] sm:$0xff] %vm710, %v675
  %741 = vst.msk [vmem:[%s3 + $0xf0] sm:$0xff] %vm710, %v676
  %742 = vst.msk [vmem:[%s3 + $0xf8] sm:$0xff] %vm710, %v677
  %743 = vst.msk [vmem:[%s3 + $0x100] sm:$0xff] %vm710, %v678
  %744 = vst.msk [vmem:[%s3 + $0x108] sm:$0xff] %vm710, %v679
  %745 = vst.msk [vmem:[%s3 + $0x110] sm:$0xff] %vm710, %v680
  %746 = vst.msk [vmem:[%s3 + $0x118] sm:$0xff] %vm710, %v681
  %747 = vst.msk [vmem:[%s3 + $0x120] sm:$0xff] %vm710, %v682
  %748 = vst.msk [vmem:[%s3 + $0x128] sm:$0xff] %vm710, %v683
  %749 = vst.msk [vmem:[%s3 + $0x130] sm:$0xff] %vm710, %v684
  %750 = vst.msk [vmem:[%s3 + $0x138] sm:$0xff] %vm710, %v685
  %751 = vst.msk [vmem:[%s3 + $0x140] sm:$0xff] %vm710, %v686
  %752 = vst.msk [vmem:[%s3 + $0x148] sm:$0xff] %vm710, %v687
  %753 = vst.msk [vmem:[%s3 + $0x150] sm:$0xff] %vm710, %v688
  %754 = vst.msk [vmem:[%s3 + $0x158] sm:$0xff] %vm710, %v689
  %755 = vst.msk [vmem:[%s3 + $0x160] sm:$0xff] %vm710, %v690
  %756 = vst.msk [vmem:[%s3 + $0x168] sm:$0xff] %vm710, %v691
  %757 = vst.msk [vmem:[%s3 + $0x170] sm:$0xff] %vm710, %v692
  %758 = vst.msk [vmem:[%s3 + $0x178] sm:$0xff] %vm710, %v693
  %759 = vst.msk [vmem:[%s3 + $0x180] sm:$0xff] %vm710, %v694
  %760 = vst.msk [vmem:[%s3 + $0x188] sm:$0xff] %vm710, %v695
  %761 = vst.msk [vmem:[%s3 + $0x190] sm:$0xff] %vm710, %v696
  %762 = vst.msk [vmem:[%s3 + $0x198] sm:$0xff] %vm710, %v697
  %763 = vst.msk [vmem:[%s3 + $0x1a0] sm:$0xff] %vm710, %v698
  %764 = vst.msk [vmem:[%s3 + $0x1a8] sm:$0xff] %vm710, %v699
  %765 = vst.msk [vmem:[%s3 + $0x1b0] sm:$0xff] %vm710, %v700
  %766 = vst.msk [vmem:[%s3 + $0x1b8] sm:$0xff] %vm710, %v701
  %767 = vst.msk [vmem:[%s3 + $0x1c0] sm:$0xff] %vm710, %v702
  %768 = vst.msk [vmem:[%s3 + $0x1c8] sm:$0xff] %vm710, %v703
  %769 = vst.msk [vmem:[%s3 + $0x1d0] sm:$0xff] %vm710, %v704
  %770 = vst.msk [vmem:[%s3 + $0x1d8] sm:$0xff] %vm710, %v705
  %771 = vst.msk [vmem:[%s3 + $0x1e0] sm:$0xff] %vm710, %v706
  %772 = vst.msk [vmem:[%s3 + $0x1e8] sm:$0xff] %vm710, %v707
  %773 = vst.msk [vmem:[%s3 + $0x1f0] sm:$0xff] %vm710, %v708
  %774 = vst.msk [vmem:[%s3 + $0x1f8] sm:$0xff] %vm710, %v709
  // Predicated region
  $region14: #{resnet_autoencoder.8} parent=0 // pred_check
    _
  $region15: #{resnet_autoencoder.8} parent=0 // pred_check_branch
    %776 = sbr.rel (0) target = $region17
  $region16: #{resnet_autoencoder.8} parent=0 // pred_region
    _
  $region17: #{resnet_autoencoder.8} parent=0 // pred_fallthru
    _
  // Predicated region
  $region18: #{resnet_autoencoder.8} parent=0 // pred_check
    _
  $region19: #{resnet_autoencoder.8} parent=0 // pred_check_branch
    %778 = sbr.rel (0) target = $region21
  $region20: #{resnet_autoencoder.8} parent=0 // pred_region
    _
  $region21: #{resnet_autoencoder.8} parent=0 // pred_fallthru
    _

// kernel: resnet_autoencoder.9
$region0: #{resnet_autoencoder.9}
  #allocation0 [shape = 'u32[]', space=smem, size = 0x4, offset = 0x4, fixed_abs, tag = 'smem constant byte address 0x4 - core index']
  #allocation1 [shape = 'u32[144,128]{1,0:T(1,128)}', space=vmem, size = 0x12000, scoped, tag = 'internal scratch']
  %s0 = inlined_call_operand.vmem [shape: bf16[128,144], index: 0, kind: input, shape index: {}]
  %s1 = inlined_call_operand.vmem [shape: bf16[144,64], index: 1, kind: input, shape index: {}]
  %s2 = inlined_call_operand.vmem [shape: f32[1,64], index: 2, kind: input, shape index: {}]
  %s3 = inlined_call_operand.vmem [shape: f32[128,64], index: 3, kind: output, shape index: {}]
  %s4 = sld [smem:[#allocation0]]
  $region22: #{resnet_autoencoder.9} parent=0
    _
  %s6 = ssub.s32 1, %s4
  %s7 = scalar_select 0, %s6, %s4
  // Predicated region
  $region2: #{resnet_autoencoder.9} parent=0 // pred_check
    _
  $region3: #{resnet_autoencoder.9} parent=0 // pred_check_branch
    %9 = sbr.rel (0) target = $region5
  $region4: #{resnet_autoencoder.9} parent=0 // pred_region
    _
  $region5: #{resnet_autoencoder.9} parent=0 // pred_fallthru
    _
  // Predicated region
  $region6: #{resnet_autoencoder.9} parent=0 // pred_check
    _
  $region7: #{resnet_autoencoder.9} parent=0 // pred_check_branch
    %11 = sbr.rel (0) target = $region9
  $region8: #{resnet_autoencoder.9} parent=0 // pred_region
    _
  $region9: #{resnet_autoencoder.9} parent=0 // pred_fallthru
    _
  // Predicated region
  $region10: #{resnet_autoencoder.9} parent=0 // pred_check
    _
  $region11: #{resnet_autoencoder.9} parent=0 // pred_check_branch
    %13 = sbr.rel (0) target = $region13
  $region12: #{resnet_autoencoder.9} parent=0 // pred_region
    _
  $region13: #{resnet_autoencoder.9} parent=0 // pred_fallthru
    _
  %v15 = vld [vmem:[%s0] sm:$0xff]
  %v16 = vld [vmem:[%s0 + $0x8] sm:$0xff]
  %v17 = vld [vmem:[%s0 + $0x10] sm:$0xff]
  %v18 = vld [vmem:[%s0 + $0x18] sm:$0xff]
  %v19 = vld [vmem:[%s0 + $0x20] sm:$0xff]
  %v20 = vld [vmem:[%s0 + $0x28] sm:$0xff]
  %v21 = vld [vmem:[%s0 + $0x30] sm:$0xff]
  %v22 = vld [vmem:[%s0 + $0x38] sm:$0xff]
  %v23 = vld [vmem:[%s0 + $0x40] sm:$0xff]
  %v24 = vld [vmem:[%s0 + $0x48] sm:$0xff]
  %v25 = vld [vmem:[%s0 + $0x50] sm:$0xff]
  %v26 = vld [vmem:[%s0 + $0x58] sm:$0xff]
  %v27 = vld [vmem:[%s0 + $0x60] sm:$0xff]
  %v28 = vld [vmem:[%s0 + $0x68] sm:$0xff]
  %v29 = vld [vmem:[%s0 + $0x70] sm:$0xff]
  %v30 = vld [vmem:[%s0 + $0x78] sm:$0xff]
  %v31 = vld [vmem:[%s1] sm:$0xf]
  %v32 = vld [vmem:[%s1 + $0x4] sm:$0xf]
  %v33 = vld [vmem:[%s1 + $0x8] sm:$0xf]
  %v34 = vld [vmem:[%s1 + $0xc] sm:$0xf]
  %v35 = vld [vmem:[%s1 + $0x10] sm:$0xf]
  %v36 = vld [vmem:[%s1 + $0x14] sm:$0xf]
  %v37 = vld [vmem:[%s1 + $0x18] sm:$0xf]
  %v38 = vld [vmem:[%s1 + $0x1c] sm:$0xf]
  %v39 = vld [vmem:[%s1 + $0x20] sm:$0xf]
  %v40 = vld [vmem:[%s1 + $0x24] sm:$0xf]
  %v41 = vld [vmem:[%s1 + $0x28] sm:$0xf]
  %v42 = vld [vmem:[%s1 + $0x2c] sm:$0xf]
  %v43 = vld [vmem:[%s1 + $0x30] sm:$0xf]
  %v44 = vld [vmem:[%s1 + $0x34] sm:$0xf]
  %v45 = vld [vmem:[%s1 + $0x38] sm:$0xf]
  %v46 = vld [vmem:[%s1 + $0x3c] sm:$0xf]
  %v47 = vld [vmem:[%s1 + $0x40] sm:$0xf]
  %v48 = vld [vmem:[%s1 + $0x44] sm:$0xf]
  %v49 = vld [vmem:[%s2] sm:$0x1]
  %v51 = vlaneseq
  %v52 = vshrl.u32 %v51, 7
  %v53 = vsub.s32 0, %v52
  %v54 = vrot.slane %v49, %v53
  %v72 = vunpack.c.l.b16 %v15
  %v73 = vunpack.c.h.b16 %v15
  %v74 = vunpack.c.l.b16 %v16
  %v75 = vunpack.c.h.b16 %v16
  %v76 = vunpack.c.l.b16 %v17
  %v77 = vunpack.c.h.b16 %v17
  %v78 = vunpack.c.l.b16 %v18
  %v79 = vunpack.c.h.b16 %v18
  %v80 = vunpack.c.l.b16 %v19
  %v81 = vunpack.c.h.b16 %v19
  %v82 = vunpack.c.l.b16 %v20
  %v83 = vunpack.c.h.b16 %v20
  %v84 = vunpack.c.l.b16 %v21
  %v85 = vunpack.c.h.b16 %v21
  %v86 = vunpack.c.l.b16 %v22
  %v87 = vunpack.c.h.b16 %v22
  %v88 = vunpack.c.l.b16 %v23
  %v89 = vunpack.c.h.b16 %v23
  %v90 = vunpack.c.l.b16 %v24
  %v91 = vunpack.c.h.b16 %v24
  %v92 = vunpack.c.l.b16 %v25
  %v93 = vunpack.c.h.b16 %v25
  %v94 = vunpack.c.l.b16 %v26
  %v95 = vunpack.c.h.b16 %v26
  %v96 = vunpack.c.l.b16 %v27
  %v97 = vunpack.c.h.b16 %v27
  %v98 = vunpack.c.l.b16 %v28
  %v99 = vunpack.c.h.b16 %v28
  %v100 = vunpack.c.l.b16 %v29
  %v101 = vunpack.c.h.b16 %v29
  %v102 = vunpack.c.l.b16 %v30
  %v103 = vunpack.c.h.b16 %v30
  %v104 = vpack.c.b16 %v74, %v72
  %v105 = vpack.c.b16 %v75, %v73
  %v106 = vpack.c.b16 %v78, %v76
  %v107 = vpack.c.b16 %v79, %v77
  %v108 = vpack.c.b16 %v82, %v80
  %v109 = vpack.c.b16 %v83, %v81
  %v110 = vpack.c.b16 %v86, %v84
  %v111 = vpack.c.b16 %v87, %v85
  %v112 = vpack.c.b16 %v90, %v88
  %v113 = vpack.c.b16 %v91, %v89
  %v114 = vpack.c.b16 %v94, %v92
  %v115 = vpack.c.b16 %v95, %v93
  %v116 = vpack.c.b16 %v98, %v96
  %v117 = vpack.c.b16 %v99, %v97
  %v118 = vpack.c.b16 %v102, %v100
  %v119 = vpack.c.b16 %v103, %v101
  %v146 = vunpack.c.l.b16 %v31
  %v147 = vunpack.c.l.b16 %v32
  %v148 = vunpack.c.l.b16 %v33
  %v149 = vunpack.c.l.b16 %v34
  %v150 = vunpack.c.l.b16 %v35
  %v151 = vunpack.c.l.b16 %v36
  %v152 = vunpack.c.l.b16 %v37
  %v153 = vunpack.c.l.b16 %v38
  %v154 = vunpack.c.l.b16 %v39
  %v155 = vunpack.c.l.b16 %v40
  %v156 = vunpack.c.l.b16 %v41
  %v157 = vunpack.c.l.b16 %v42
  %v158 = vunpack.c.l.b16 %v43
  %v159 = vunpack.c.l.b16 %v44
  %v160 = vunpack.c.l.b16 %v45
  %v161 = vunpack.c.l.b16 %v46
  %v162 = vunpack.c.l.b16 %v47
  %v163 = vunpack.c.l.b16 %v48
  %v164 = vpack.c.b16 %v147, %v146
  %v165 = vpack.c.b16 %v149, %v148
  %v166 = vpack.c.b16 %v151, %v150
  %v167 = vpack.c.b16 %v153, %v152
  %v168 = vpack.c.b16 %v155, %v154
  %v169 = vpack.c.b16 %v157, %v156
  %v170 = vpack.c.b16 %v159, %v158
  %v171 = vpack.c.b16 %v161, %v160
  %v172 = vpack.c.b16 %v163, %v162
  %vm182 = vcmask 130048
  %v184 = vsel %vm182, %v105, 0
  %v187 = vsel %vm182, %v107, 0
  %v190 = vsel %vm182, %v109, 0
  %v193 = vsel %vm182, %v111, 0
  %v196 = vsel %vm182, %v113, 0
  %v199 = vsel %vm182, %v115, 0
  %v202 = vsel %vm182, %v117, 0
  %v205 = vsel %vm182, %v119, 0
  %207 = vmatprep.subr.bf16.mxu0 0
  %208 = vmatpush1.bf16.msra.mxu0 %v164
  %209 = vmatprep.subr.bf16.mxu0 0
  %210 = vmatpush1.bf16.msra.mxu0 %v165
  %211 = vmatprep.subr.bf16.mxu0 0
  %212 = vmatpush1.bf16.msra.mxu0 %v166
  %213 = vmatprep.subr.bf16.mxu0 0
  %214 = vmatpush1.bf16.msra.mxu0 %v167
  %215 = vmatprep.subr.bf16.mxu0 0
  %216 = vmatpush1.bf16.msra.mxu0 %v168
  %217 = vmatprep.subr.bf16.mxu0 0
  %218 = vmatpush1.bf16.msra.mxu0 %v169
  %219 = vmatprep.subr.bf16.mxu0 0
  %220 = vmatpush1.bf16.msra.mxu0 %v170
  %221 = vmatprep.subr.bf16.mxu0 0
  %222 = vmatpush1.bf16.msra.mxu0 %v171
  %223 = vmatprep.subr.bf16.mxu0 0
  %224 = vmatpush1.bf16.msra.mxu0 %v172
  %225 = vmatprep.subr.bf16.mxu0 0
  %226 = vmatpush1.bf16.msra.mxu0 0
  %227 = vmatprep.subr.bf16.mxu0 0
  %228 = vmatpush1.bf16.msra.mxu0 0
  %229 = vmatprep.subr.bf16.mxu0 0
  %230 = vmatpush1.bf16.msra.mxu0 0
  %231 = vmatprep.subr.bf16.mxu0 0
  %232 = vmatpush1.bf16.msra.mxu0 0
  %233 = vmatprep.subr.bf16.mxu0 0
  %234 = vmatpush1.bf16.msra.mxu0 0
  %235 = vmatprep.subr.bf16.mxu0 0
  %236 = vmatpush1.bf16.msra.mxu0 0
  %237 = vmatprep.subr.bf16.mxu0 0
  %238 = vmatpush1.bf16.msra.mxu0 0
  %239 = vmatprep.mubr.bf16.mxu0 %v184
  %240 = vmatmul.mubr.bf16.gmra.mrb[0].mxu0 %v104
  %v241 = vpop.f32.mrb[0].mxu0
  %v242 = vadd.f32 %v54, %v241
  %v243 = vpop.f32.mrb[0].mxu0
  %v244 = vpop.f32.mrb[0].mxu0
  %v245 = vadd.f32 %v54, %v244
  %v246 = vpop.f32.mrb[0].mxu0
  %247 = vmatprep.mubr.bf16.mxu0 %v187
  %248 = vmatmul.mubr.bf16.gmra.mrb[0].mxu0 %v106
  %v249 = vpop.f32.mrb[0].mxu0
  %v250 = vadd.f32 %v54, %v249
  %v251 = vpop.f32.mrb[0].mxu0
  %v252 = vpop.f32.mrb[0].mxu0
  %v253 = vadd.f32 %v54, %v252
  %v254 = vpop.f32.mrb[0].mxu0
  %255 = vmatprep.mubr.bf16.mxu0 %v190
  %256 = vmatmul.mubr.bf16.gmra.mrb[0].mxu0 %v108
  %v257 = vpop.f32.mrb[0].mxu0
  %v258 = vadd.f32 %v54, %v257
  %v259 = vpop.f32.mrb[0].mxu0
  %v260 = vpop.f32.mrb[0].mxu0
  %v261 = vadd.f32 %v54, %v260
  %v262 = vpop.f32.mrb[0].mxu0
  %263 = vmatprep.mubr.bf16.mxu0 %v193
  %264 = vmatmul.mubr.bf16.gmra.mrb[0].mxu0 %v110
  %v265 = vpop.f32.mrb[0].mxu0
  %v266 = vadd.f32 %v54, %v265
  %v267 = vpop.f32.mrb[0].mxu0
  %v268 = vpop.f32.mrb[0].mxu0
  %v269 = vadd.f32 %v54, %v268
  %v270 = vpop.f32.mrb[0].mxu0
  %271 = vmatprep.mubr.bf16.mxu0 %v196
  %272 = vmatmul.mubr.bf16.gmra.mrb[0].mxu0 %v112
  %v273 = vpop.f32.mrb[0].mxu0
  %v274 = vadd.f32 %v54, %v273
  %v275 = vpop.f32.mrb[0].mxu0
  %v276 = vpop.f32.mrb[0].mxu0
  %v277 = vadd.f32 %v54, %v276
  %v278 = vpop.f32.mrb[0].mxu0
  %279 = vmatprep.mubr.bf16.mxu0 %v199
  %280 = vmatmul.mubr.bf16.gmra.mrb[0].mxu0 %v114
  %v281 = vpop.f32.mrb[0].mxu0
  %v282 = vadd.f32 %v54, %v281
  %v283 = vpop.f32.mrb[0].mxu0
  %v284 = vpop.f32.mrb[0].mxu0
  %v285 = vadd.f32 %v54, %v284
  %v286 = vpop.f32.mrb[0].mxu0
  %287 = vmatprep.mubr.bf16.mxu0 %v202
  %288 = vmatmul.mubr.bf16.gmra.mrb[0].mxu0 %v116
  %v289 = vpop.f32.mrb[0].mxu0
  %v290 = vadd.f32 %v54, %v289
  %v291 = vpop.f32.mrb[0].mxu0
  %v292 = vpop.f32.mrb[0].mxu0
  %v293 = vadd.f32 %v54, %v292
  %v294 = vpop.f32.mrb[0].mxu0
  %295 = vmatprep.mubr.bf16.mxu0 %v205
  %296 = vmatmul.mubr.bf16.gmra.mrb[0].mxu0 %v118
  %v297 = vpop.f32.mrb[0].mxu0
  %v298 = vadd.f32 %v54, %v297
  %v299 = vpop.f32.mrb[0].mxu0
  %v300 = vpop.f32.mrb[0].mxu0
  %v301 = vadd.f32 %v54, %v300
  %v302 = vpop.f32.mrb[0].mxu0
  %303 = vdwg.mxu0
  %v304 = vlaneseq
  %v305 = vand.u32 %v304, 127
  %vm306 = vcmp.lt.s32.totalorder %v305, 32
  %v307 = vmax.f32 %v242, 0.0
  %v308 = vmax.f32 %v245, 0.0
  %v309 = vmax.f32 %v250, 0.0
  %v310 = vmax.f32 %v253, 0.0
  %v311 = vmax.f32 %v258, 0.0
  %v312 = vmax.f32 %v261, 0.0
  %v313 = vmax.f32 %v266, 0.0
  %v314 = vmax.f32 %v269, 0.0
  %v315 = vmax.f32 %v274, 0.0
  %v316 = vmax.f32 %v277, 0.0
  %v317 = vmax.f32 %v282, 0.0
  %v318 = vmax.f32 %v285, 0.0
  %v319 = vmax.f32 %v290, 0.0
  %v320 = vmax.f32 %v293, 0.0
  %v321 = vmax.f32 %v298, 0.0
  %v322 = vmax.f32 %v301, 0.0
  %v323 = vsel %vm306, %v307, %v242
  %v324 = vsel %vm306, %v308, %v245
  %v325 = vsel %vm306, %v309, %v250
  %v326 = vsel %vm306, %v310, %v253
  %v327 = vsel %vm306, %v311, %v258
  %v328 = vsel %vm306, %v312, %v261
  %v329 = vsel %vm306, %v313, %v266
  %v330 = vsel %vm306, %v314, %v269
  %v331 = vsel %vm306, %v315, %v274
  %v332 = vsel %vm306, %v316, %v277
  %v333 = vsel %vm306, %v317, %v282
  %v334 = vsel %vm306, %v318, %v285
  %v335 = vsel %vm306, %v319, %v290
  %v336 = vsel %vm306, %v320, %v293
  %v337 = vsel %vm306, %v321, %v298
  %v338 = vsel %vm306, %v322, %v301
  %vm339 = vcmask 523264
  %340 = vst.msk [vmem:[%s3] sm:$0xff] %vm339, %v323
  %341 = vst.msk [vmem:[%s3 + $0x8] sm:$0xff] %vm339, %v324
  %342 = vst.msk [vmem:[%s3 + $0x10] sm:$0xff] %vm339, %v325
  %343 = vst.msk [vmem:[%s3 + $0x18] sm:$0xff] %vm339, %v326
  %344 = vst.msk [vmem:[%s3 + $0x20] sm:$0xff] %vm339, %v327
  %345 = vst.msk [vmem:[%s3 + $0x28] sm:$0xff] %vm339, %v328
  %346 = vst.msk [vmem:[%s3 + $0x30] sm:$0xff] %vm339, %v329
  %347 = vst.msk [vmem:[%s3 + $0x38] sm:$0xff] %vm339, %v330
  %348 = vst.msk [vmem:[%s3 + $0x40] sm:$0xff] %vm339, %v331
  %349 = vst.msk [vmem:[%s3 + $0x48] sm:$0xff] %vm339, %v332
  %350 = vst.msk [vmem:[%s3 + $0x50] sm:$0xff] %vm339, %v333
  %351 = vst.msk [vmem:[%s3 + $0x58] sm:$0xff] %vm339, %v334
  %352 = vst.msk [vmem:[%s3 + $0x60] sm:$0xff] %vm339, %v335
  %353 = vst.msk [vmem:[%s3 + $0x68] sm:$0xff] %vm339, %v336
  %354 = vst.msk [vmem:[%s3 + $0x70] sm:$0xff] %vm339, %v337
  %355 = vst.msk [vmem:[%s3 + $0x78] sm:$0xff] %vm339, %v338
  // Predicated region
  $region14: #{resnet_autoencoder.9} parent=0 // pred_check
    _
  $region15: #{resnet_autoencoder.9} parent=0 // pred_check_branch
    %357 = sbr.rel (0) target = $region17
  $region16: #{resnet_autoencoder.9} parent=0 // pred_region
    _
  $region17: #{resnet_autoencoder.9} parent=0 // pred_fallthru
    _
  // Predicated region
  $region18: #{resnet_autoencoder.9} parent=0 // pred_check
    _
  $region19: #{resnet_autoencoder.9} parent=0 // pred_check_branch
    %359 = sbr.rel (0) target = $region21
  $region20: #{resnet_autoencoder.9} parent=0 // pred_region
    _
  $region21: #{resnet_autoencoder.9} parent=0 // pred_fallthru
    _

// kernel: resnet_autoencoder.10
$region0: #{resnet_autoencoder.10}
  #allocation0 [shape = 'u32[]', space=smem, size = 0x4, offset = 0x4, fixed_abs, tag = 'smem constant byte address 0x4 - core index']
  #allocation1 [shape = 'u32[144,128]{1,0:T(1,128)}', space=vmem, size = 0x12000, scoped, tag = 'internal scratch']
  %s0 = inlined_call_operand.vmem [shape: bf16[128,288], index: 0, kind: input, shape index: {}]
  %s1 = inlined_call_operand.vmem [shape: bf16[288,32], index: 1, kind: input, shape index: {}]
  %s2 = inlined_call_operand.vmem [shape: f32[1,32], index: 2, kind: input, shape index: {}]
  %s3 = inlined_call_operand.vmem [shape: f32[128,32], index: 3, kind: input, shape index: {}]
  %s4 = inlined_call_operand.vmem [shape: f32[128,32], index: 4, kind: output, shape index: {}]
  %s5 = sld [smem:[#allocation0]]
  $region26: #{resnet_autoencoder.10} parent=0
    _
  %s7 = ssub.s32 1, %s5
  %s8 = scalar_select 0, %s7, %s5
  // Predicated region
  $region2: #{resnet_autoencoder.10} parent=0 // pred_check
    _
  $region3: #{resnet_autoencoder.10} parent=0 // pred_check_branch
    %10 = sbr.rel (0) target = $region5
  $region4: #{resnet_autoencoder.10} parent=0 // pred_region
    _
  $region5: #{resnet_autoencoder.10} parent=0 // pred_fallthru
    _
  // Predicated region
  $region6: #{resnet_autoencoder.10} parent=0 // pred_check
    _
  $region7: #{resnet_autoencoder.10} parent=0 // pred_check_branch
    %12 = sbr.rel (0) target = $region9
  $region8: #{resnet_autoencoder.10} parent=0 // pred_region
    _
  $region9: #{resnet_autoencoder.10} parent=0 // pred_fallthru
    _
  // Predicated region
  $region10: #{resnet_autoencoder.10} parent=0 // pred_check
    _
  $region11: #{resnet_autoencoder.10} parent=0 // pred_check_branch
    %14 = sbr.rel (0) target = $region13
  $region12: #{resnet_autoencoder.10} parent=0 // pred_region
    _
  $region13: #{resnet_autoencoder.10} parent=0 // pred_fallthru
    _
  // Predicated region
  $region14: #{resnet_autoencoder.10} parent=0 // pred_check
    _
  $region15: #{resnet_autoencoder.10} parent=0 // pred_check_branch
    %16 = sbr.rel (0) target = $region17
  $region16: #{resnet_autoencoder.10} parent=0 // pred_region
    _
  $region17: #{resnet_autoencoder.10} parent=0 // pred_fallthru
    _
  %v18 = vld [vmem:[%s0] sm:$0xff]
  %v19 = vld [vmem:[%s0 + $0x8] sm:$0xf]
  %v20 = vld [vmem:[%s0 + $0xc] sm:$0xff]
  %v21 = vld [vmem:[%s0 + $0x14] sm:$0xf]
  %v22 = vld [vmem:[%s0 + $0x18] sm:$0xff]
  %v23 = vld [vmem:[%s0 + $0x20] sm:$0xf]
  %v24 = vld [vmem:[%s0 + $0x24] sm:$0xff]
  %v25 = vld [vmem:[%s0 + $0x2c] sm:$0xf]
  %v26 = vld [vmem:[%s0 + $0x30] sm:$0xff]
  %v27 = vld [vmem:[%s0 + $0x38] sm:$0xf]
  %v28 = vld [vmem:[%s0 + $0x3c] sm:$0xff]
  %v29 = vld [vmem:[%s0 + $0x44] sm:$0xf]
  %v30 = vld [vmem:[%s0 + $0x48] sm:$0xff]
  %v31 = vld [vmem:[%s0 + $0x50] sm:$0xf]
  %v32 = vld [vmem:[%s0 + $0x54] sm:$0xff]
  %v33 = vld [vmem:[%s0 + $0x5c] sm:$0xf]
  %v34 = vld [vmem:[%s0 + $0x60] sm:$0xff]
  %v35 = vld [vmem:[%s0 + $0x68] sm:$0xf]
  %v36 = vld [vmem:[%s0 + $0x6c] sm:$0xff]
  %v37 = vld [vmem:[%s0 + $0x74] sm:$0xf]
  %v38 = vld [vmem:[%s0 + $0x78] sm:$0xff]
  %v39 = vld [vmem:[%s0 + $0x80] sm:$0xf]
  %v40 = vld [vmem:[%s0 + $0x84] sm:$0xff]
  %v41 = vld [vmem:[%s0 + $0x8c] sm:$0xf]
  %v42 = vld [vmem:[%s0 + $0x90] sm:$0xff]
  %v43 = vld [vmem:[%s0 + $0x98] sm:$0xf]
  %v44 = vld [vmem:[%s0 + $0x9c] sm:$0xff]
  %v45 = vld [vmem:[%s0 + $0xa4] sm:$0xf]
  %v46 = vld [vmem:[%s0 + $0xa8] sm:$0xff]
  %v47 = vld [vmem:[%s0 + $0xb0] sm:$0xf]
  %v48 = vld [vmem:[%s0 + $0xb4] sm:$0xff]
  %v49 = vld [vmem:[%s0 + $0xbc] sm:$0xf]
  %v50 = vld [vmem:[%s1] sm:$0xf]
  %v51 = vld [vmem:[%s1 + $0x4] sm:$0xf]
  %v52 = vld [vmem:[%s1 + $0x8] sm:$0xf]
  %v53 = vld [vmem:[%s1 + $0xc] sm:$0xf]
  %v54 = vld [vmem:[%s1 + $0x10] sm:$0xf]
  %v55 = vld [vmem:[%s1 + $0x14] sm:$0xf]
  %v56 = vld [vmem:[%s1 + $0x18] sm:$0xf]
  %v57 = vld [vmem:[%s1 + $0x1c] sm:$0xf]
  %v58 = vld [vmem:[%s1 + $0x20] sm:$0xf]
  %v59 = vld [vmem:[%s1 + $0x24] sm:$0xf]
  %v60 = vld [vmem:[%s1 + $0x28] sm:$0xf]
  %v61 = vld [vmem:[%s1 + $0x2c] sm:$0xf]
  %v62 = vld [vmem:[%s1 + $0x30] sm:$0xf]
  %v63 = vld [vmem:[%s1 + $0x34] sm:$0xf]
  %v64 = vld [vmem:[%s1 + $0x38] sm:$0xf]
  %v65 = vld [vmem:[%s1 + $0x3c] sm:$0xf]
  %v66 = vld [vmem:[%s1 + $0x40] sm:$0xf]
  %v67 = vld [vmem:[%s1 + $0x44] sm:$0xf]
  %v68 = vld [vmem:[%s1 + $0x48] sm:$0xf]
  %v69 = vld [vmem:[%s1 + $0x4c] sm:$0xf]
  %v70 = vld [vmem:[%s1 + $0x50] sm:$0xf]
  %v71 = vld [vmem:[%s1 + $0x54] sm:$0xf]
  %v72 = vld [vmem:[%s1 + $0x58] sm:$0xf]
  %v73 = vld [vmem:[%s1 + $0x5c] sm:$0xf]
  %v74 = vld [vmem:[%s1 + $0x60] sm:$0xf]
  %v75 = vld [vmem:[%s1 + $0x64] sm:$0xf]
  %v76 = vld [vmem:[%s1 + $0x68] sm:$0xf]
  %v77 = vld [vmem:[%s1 + $0x6c] sm:$0xf]
  %v78 = vld [vmem:[%s1 + $0x70] sm:$0xf]
  %v79 = vld [vmem:[%s1 + $0x74] sm:$0xf]
  %v80 = vld [vmem:[%s1 + $0x78] sm:$0xf]
  %v81 = vld [vmem:[%s1 + $0x7c] sm:$0xf]
  %v82 = vld [vmem:[%s1 + $0x80] sm:$0xf]
  %v83 = vld [vmem:[%s1 + $0x84] sm:$0xf]
  %v84 = vld [vmem:[%s1 + $0x88] sm:$0xf]
  %v85 = vld [vmem:[%s1 + $0x8c] sm:$0xf]
  %v86 = vld [vmem:[%s2] sm:$0x1]
  %v88 = vlaneseq
  %v89 = vshrl.u32 %v88, 7
  %v90 = vsub.s32 0, %v89
  %v91 = vrot.slane %v86, %v90
  %v125 = vunpack.c.l.b16 %v18
  %v126 = vunpack.c.h.b16 %v18
  %v127 = vunpack.c.l.b16 %v19
  %v128 = vunpack.c.l.b16 %v20
  %v129 = vunpack.c.h.b16 %v20
  %v130 = vunpack.c.l.b16 %v21
  %v131 = vunpack.c.l.b16 %v22
  %v132 = vunpack.c.h.b16 %v22
  %v133 = vunpack.c.l.b16 %v23
  %v134 = vunpack.c.l.b16 %v24
  %v135 = vunpack.c.h.b16 %v24
  %v136 = vunpack.c.l.b16 %v25
  %v137 = vunpack.c.l.b16 %v26
  %v138 = vunpack.c.h.b16 %v26
  %v139 = vunpack.c.l.b16 %v27
  %v140 = vunpack.c.l.b16 %v28
  %v141 = vunpack.c.h.b16 %v28
  %v142 = vunpack.c.l.b16 %v29
  %v143 = vunpack.c.l.b16 %v30
  %v144 = vunpack.c.h.b16 %v30
  %v145 = vunpack.c.l.b16 %v31
  %v146 = vunpack.c.l.b16 %v32
  %v147 = vunpack.c.h.b16 %v32
  %v148 = vunpack.c.l.b16 %v33
  %v149 = vunpack.c.l.b16 %v34
  %v150 = vunpack.c.h.b16 %v34
  %v151 = vunpack.c.l.b16 %v35
  %v152 = vunpack.c.l.b16 %v36
  %v153 = vunpack.c.h.b16 %v36
  %v154 = vunpack.c.l.b16 %v37
  %v155 = vunpack.c.l.b16 %v38
  %v156 = vunpack.c.h.b16 %v38
  %v157 = vunpack.c.l.b16 %v39
  %v158 = vunpack.c.l.b16 %v40
  %v159 = vunpack.c.h.b16 %v40
  %v160 = vunpack.c.l.b16 %v41
  %v161 = vunpack.c.l.b16 %v42
  %v162 = vunpack.c.h.b16 %v42
  %v163 = vunpack.c.l.b16 %v43
  %v164 = vunpack.c.l.b16 %v44
  %v165 = vunpack.c.h.b16 %v44
  %v166 = vunpack.c.l.b16 %v45
  %v167 = vunpack.c.l.b16 %v46
  %v168 = vunpack.c.h.b16 %v46
  %v169 = vunpack.c.l.b16 %v47
  %v170 = vunpack.c.l.b16 %v48
  %v171 = vunpack.c.h.b16 %v48
  %v172 = vunpack.c.l.b16 %v49
  %v173 = vpack.c.b16 %v128, %v125
  %v174 = vpack.c.b16 %v129, %v126
  %v175 = vpack.c.b16 %v130, %v127
  %v176 = vpack.c.b16 %v134, %v131
  %v177 = vpack.c.b16 %v135, %v132
  %v178 = vpack.c.b16 %v136, %v133
  %v179 = vpack.c.b16 %v140, %v137
  %v180 = vpack.c.b16 %v141, %v138
  %v181 = vpack.c.b16 %v142, %v139
  %v182 = vpack.c.b16 %v146, %v143
  %v183 = vpack.c.b16 %v147, %v144
  %v184 = vpack.c.b16 %v148, %v145
  %v185 = vpack.c.b16 %v152, %v149
  %v186 = vpack.c.b16 %v153, %v150
  %v187 = vpack.c.b16 %v154, %v151
  %v188 = vpack.c.b16 %v158, %v155
  %v189 = vpack.c.b16 %v159, %v156
  %v190 = vpack.c.b16 %v160, %v157
  %v191 = vpack.c.b16 %v164, %v161
  %v192 = vpack.c.b16 %v165, %v162
  %v193 = vpack.c.b16 %v166, %v163
  %v194 = vpack.c.b16 %v170, %v167
  %v195 = vpack.c.b16 %v171, %v168
  %v196 = vpack.c.b16 %v172, %v169
  %v249 = vunpack.c.l.b16 %v50
  %v250 = vunpack.c.l.b16 %v51
  %v251 = vunpack.c.l.b16 %v52
  %v252 = vunpack.c.l.b16 %v53
  %v253 = vunpack.c.l.b16 %v54
  %v254 = vunpack.c.l.b16 %v55
  %v255 = vunpack.c.l.b16 %v56
  %v256 = vunpack.c.l.b16 %v57
  %v257 = vunpack.c.l.b16 %v58
  %v258 = vunpack.c.l.b16 %v59
  %v259 = vunpack.c.l.b16 %v60
  %v260 = vunpack.c.l.b16 %v61
  %v261 = vunpack.c.l.b16 %v62
  %v262 = vunpack.c.l.b16 %v63
  %v263 = vunpack.c.l.b16 %v64
  %v264 = vunpack.c.l.b16 %v65
  %v265 = vunpack.c.l.b16 %v66
  %v266 = vunpack.c.l.b16 %v67
  %v267 = vunpack.c.l.b16 %v68
  %v268 = vunpack.c.l.b16 %v69
  %v269 = vunpack.c.l.b16 %v70
  %v270 = vunpack.c.l.b16 %v71
  %v271 = vunpack.c.l.b16 %v72
  %v272 = vunpack.c.l.b16 %v73
  %v273 = vunpack.c.l.b16 %v74
  %v274 = vunpack.c.l.b16 %v75
  %v275 = vunpack.c.l.b16 %v76
  %v276 = vunpack.c.l.b16 %v77
  %v277 = vunpack.c.l.b16 %v78
  %v278 = vunpack.c.l.b16 %v79
  %v279 = vunpack.c.l.b16 %v80
  %v280 = vunpack.c.l.b16 %v81
  %v281 = vunpack.c.l.b16 %v82
  %v282 = vunpack.c.l.b16 %v83
  %v283 = vunpack.c.l.b16 %v84
  %v284 = vunpack.c.l.b16 %v85
  %v285 = vpack.c.b16 %v250, %v249
  %v286 = vpack.c.b16 %v252, %v251
  %v287 = vpack.c.b16 %v254, %v253
  %v288 = vpack.c.b16 %v256, %v255
  %v289 = vpack.c.b16 %v258, %v257
  %v290 = vpack.c.b16 %v260, %v259
  %v291 = vpack.c.b16 %v262, %v261
  %v292 = vpack.c.b16 %v264, %v263
  %v293 = vpack.c.b16 %v266, %v265
  %v294 = vpack.c.b16 %v268, %v267
  %v295 = vpack.c.b16 %v270, %v269
  %v296 = vpack.c.b16 %v272, %v271
  %v297 = vpack.c.b16 %v274, %v273
  %v298 = vpack.c.b16 %v276, %v275
  %v299 = vpack.c.b16 %v278, %v277
  %v300 = vpack.c.b16 %v280, %v279
  %v301 = vpack.c.b16 %v282, %v281
  %v302 = vpack.c.b16 %v284, %v283
  %vm321 = vcmask 261120
  %v323 = vsel %vm321, %v175, 0
  %v326 = vsel %vm321, %v178, 0
  %v329 = vsel %vm321, %v181, 0
  %v332 = vsel %vm321, %v184, 0
  %v335 = vsel %vm321, %v187, 0
  %v338 = vsel %vm321, %v190, 0
  %v341 = vsel %vm321, %v193, 0
  %v344 = vsel %vm321, %v196, 0
  %346 = vmatprep.subr.bf16.mxu0 0
  %347 = vmatpush1.bf16.msra.mxu0 %v285
  %348 = vmatprep.subr.bf16.mxu0 0
  %349 = vmatpush1.bf16.msra.mxu0 %v286
  %350 = vmatprep.subr.bf16.mxu0 0
  %351 = vmatpush1.bf16.msra.mxu0 %v287
  %352 = vmatprep.subr.bf16.mxu0 0
  %353 = vmatpush1.bf16.msra.mxu0 %v288
  %354 = vmatprep.subr.bf16.mxu0 0
  %355 = vmatpush1.bf16.msra.mxu0 %v289
  %356 = vmatprep.subr.bf16.mxu0 0
  %357 = vmatpush1.bf16.msra.mxu0 %v290
  %358 = vmatprep.subr.bf16.mxu0 0
  %359 = vmatpush1.bf16.msra.mxu0 %v291
  %360 = vmatprep.subr.bf16.mxu0 0
  %361 = vmatpush1.bf16.msra.mxu0 %v292
  %362 = vmatprep.subr.bf16.mxu0 0
  %363 = vmatpush1.bf16.msra.mxu0 %v293
  %364 = vmatprep.subr.bf16.mxu0 0
  %365 = vmatpush1.bf16.msra.mxu0 %v294
  %366 = vmatprep.subr.bf16.mxu0 0
  %367 = vmatpush1.bf16.msra.mxu0 %v295
  %368 = vmatprep.subr.bf16.mxu0 0
  %369 = vmatpush1.bf16.msra.mxu0 %v296
  %370 = vmatprep.subr.bf16.mxu0 0
  %371 = vmatpush1.bf16.msra.mxu0 %v297
  %372 = vmatprep.subr.bf16.mxu0 0
  %373 = vmatpush1.bf16.msra.mxu0 %v298
  %374 = vmatprep.subr.bf16.mxu0 0
  %375 = vmatpush1.bf16.msra.mxu0 %v299
  %376 = vmatprep.subr.bf16.mxu0 0
  %377 = vmatpush1.bf16.msra.mxu0 %v300
  %378 = vmatprep.mubr.bf16.mxu0 %v174
  %379 = vmatmul.mubr.bf16.gmra.mrb[0].mxu0 %v173
  %v380 = vpop.f32.mrb[0].mxu0
  %v381 = vadd.f32 %v91, %v380
  %v382 = vpop.f32.mrb[0].mxu0
  %v383 = vpop.f32.mrb[0].mxu0
  %v384 = vadd.f32 %v91, %v383
  %v385 = vpop.f32.mrb[0].mxu0
  %386 = vmatprep.mubr.bf16.mxu0 %v177
  %387 = vmatmul.mubr.bf16.gmra.mrb[0].mxu0 %v176
  %v388 = vpop.f32.mrb[0].mxu0
  %v389 = vadd.f32 %v91, %v388
  %v390 = vpop.f32.mrb[0].mxu0
  %v391 = vpop.f32.mrb[0].mxu0
  %v392 = vadd.f32 %v91, %v391
  %v393 = vpop.f32.mrb[0].mxu0
  %394 = vmatprep.mubr.bf16.mxu0 %v180
  %395 = vmatmul.mubr.bf16.gmra.mrb[0].mxu0 %v179
  %v396 = vpop.f32.mrb[0].mxu0
  %v397 = vadd.f32 %v91, %v396
  %v398 = vpop.f32.mrb[0].mxu0
  %v399 = vpop.f32.mrb[0].mxu0
  %v400 = vadd.f32 %v91, %v399
  %v401 = vpop.f32.mrb[0].mxu0
  %402 = vmatprep.mubr.bf16.mxu0 %v183
  %403 = vmatmul.mubr.bf16.gmra.mrb[0].mxu0 %v182
  %v404 = vpop.f32.mrb[0].mxu0
  %v405 = vadd.f32 %v91, %v404
  %v406 = vpop.f32.mrb[0].mxu0
  %v407 = vpop.f32.mrb[0].mxu0
  %v408 = vadd.f32 %v91, %v407
  %v409 = vpop.f32.mrb[0].mxu0
  %410 = vmatprep.mubr.bf16.mxu0 %v186
  %411 = vmatmul.mubr.bf16.gmra.mrb[0].mxu0 %v185
  %v412 = vpop.f32.mrb[0].mxu0
  %v413 = vadd.f32 %v91, %v412
  %v414 = vpop.f32.mrb[0].mxu0
  %v415 = vpop.f32.mrb[0].mxu0
  %v416 = vadd.f32 %v91, %v415
  %v417 = vpop.f32.mrb[0].mxu0
  %418 = vmatprep.mubr.bf16.mxu0 %v189
  %419 = vmatmul.mubr.bf16.gmra.mrb[0].mxu0 %v188
  %v420 = vpop.f32.mrb[0].mxu0
  %v421 = vadd.f32 %v91, %v420
  %v422 = vpop.f32.mrb[0].mxu0
  %v423 = vpop.f32.mrb[0].mxu0
  %v424 = vadd.f32 %v91, %v423
  %v425 = vpop.f32.mrb[0].mxu0
  %426 = vmatprep.mubr.bf16.mxu0 %v192
  %427 = vmatmul.mubr.bf16.gmra.mrb[0].mxu0 %v191
  %v428 = vpop.f32.mrb[0].mxu0
  %v429 = vadd.f32 %v91, %v428
  %v430 = vpop.f32.mrb[0].mxu0
  %v431 = vpop.f32.mrb[0].mxu0
  %v432 = vadd.f32 %v91, %v431
  %v433 = vpop.f32.mrb[0].mxu0
  %434 = vmatprep.mubr.bf16.mxu0 %v195
  %435 = vmatmul.mubr.bf16.gmra.mrb[0].mxu0 %v194
  %v436 = vpop.f32.mrb[0].mxu0
  %v437 = vadd.f32 %v91, %v436
  %v438 = vpop.f32.mrb[0].mxu0
  %v439 = vpop.f32.mrb[0].mxu0
  %v440 = vadd.f32 %v91, %v439
  %v441 = vpop.f32.mrb[0].mxu0
  %442 = vdwg.mxu0
  %443 = vmatprep.subr.bf16.mxu0 0
  %444 = vmatpush1.bf16.msra.mxu0 %v301
  %445 = vmatprep.subr.bf16.mxu0 0
  %446 = vmatpush1.bf16.msra.mxu0 %v302
  %447 = vmatprep.subr.bf16.mxu0 0
  %448 = vmatpush1.bf16.msra.mxu0 0
  %449 = vmatprep.subr.bf16.mxu0 0
  %450 = vmatpush1.bf16.msra.mxu0 0
  %451 = vmatprep.subr.bf16.mxu0 0
  %452 = vmatpush1.bf16.msra.mxu0 0
  %453 = vmatprep.subr.bf16.mxu0 0
  %454 = vmatpush1.bf16.msra.mxu0 0
  %455 = vmatprep.subr.bf16.mxu0 0
  %456 = vmatpush1.bf16.msra.mxu0 0
  %457 = vmatprep.subr.bf16.mxu0 0
  %458 = vmatpush1.bf16.msra.mxu0 0
  %459 = vmatprep.subr.bf16.mxu0 0
  %460 = vmatpush1.bf16.msra.mxu0 0
  %461 = vmatprep.subr.bf16.mxu0 0
  %462 = vmatpush1.bf16.msra.mxu0 0
  %463 = vmatprep.subr.bf16.mxu0 0
  %464 = vmatpush1.bf16.msra.mxu0 0
  %465 = vmatprep.subr.bf16.mxu0 0
  %466 = vmatpush1.bf16.msra.mxu0 0
  %467 = vmatprep.subr.bf16.mxu0 0
  %468 = vmatpush1.bf16.msra.mxu0 0
  %469 = vmatprep.subr.bf16.mxu0 0
  %470 = vmatpush1.bf16.msra.mxu0 0
  %471 = vmatprep.subr.bf16.mxu0 0
  %472 = vmatpush1.bf16.msra.mxu0 0
  %473 = vmatprep.subr.bf16.mxu0 0
  %474 = vmatpush1.bf16.msra.mxu0 0
  %475 = vmatprep.mubr.bf16.mxu0 0
  %476 = vmatmul.mubr.bf16.gmra.mrb[0].mxu0 %v323
  %v477 = vpop.f32.mrb[0].mxu0
  %v478 = vadd.f32 %v381, %v477
  %v479 = vpop.f32.mrb[0].mxu0
  %v480 = vpop.f32.mrb[0].mxu0
  %v481 = vadd.f32 %v384, %v480
  %v482 = vpop.f32.mrb[0].mxu0
  %483 = vmatprep.mubr.bf16.mxu0 0
  %484 = vmatmul.mubr.bf16.gmra.mrb[0].mxu0 %v326
  %v485 = vpop.f32.mrb[0].mxu0
  %v486 = vadd.f32 %v389, %v485
  %v487 = vpop.f32.mrb[0].mxu0
  %v488 = vpop.f32.mrb[0].mxu0
  %v489 = vadd.f32 %v392, %v488
  %v490 = vpop.f32.mrb[0].mxu0
  %491 = vmatprep.mubr.bf16.mxu0 0
  %492 = vmatmul.mubr.bf16.gmra.mrb[0].mxu0 %v329
  %v493 = vpop.f32.mrb[0].mxu0
  %v494 = vadd.f32 %v397, %v493
  %v495 = vpop.f32.mrb[0].mxu0
  %v496 = vpop.f32.mrb[0].mxu0
  %v497 = vadd.f32 %v400, %v496
  %v498 = vpop.f32.mrb[0].mxu0
  %499 = vmatprep.mubr.bf16.mxu0 0
  %500 = vmatmul.mubr.bf16.gmra.mrb[0].mxu0 %v332
  %v501 = vpop.f32.mrb[0].mxu0
  %v502 = vadd.f32 %v405, %v501
  %v503 = vpop.f32.mrb[0].mxu0
  %v504 = vpop.f32.mrb[0].mxu0
  %v505 = vadd.f32 %v408, %v504
  %v506 = vpop.f32.mrb[0].mxu0
  %507 = vmatprep.mubr.bf16.mxu0 0
  %508 = vmatmul.mubr.bf16.gmra.mrb[0].mxu0 %v335
  %v509 = vpop.f32.mrb[0].mxu0
  %v510 = vadd.f32 %v413, %v509
  %v511 = vpop.f32.mrb[0].mxu0
  %v512 = vpop.f32.mrb[0].mxu0
  %v513 = vadd.f32 %v416, %v512
  %v514 = vpop.f32.mrb[0].mxu0
  %515 = vmatprep.mubr.bf16.mxu0 0
  %516 = vmatmul.mubr.bf16.gmra.mrb[0].mxu0 %v338
  %v517 = vpop.f32.mrb[0].mxu0
  %v518 = vadd.f32 %v421, %v517
  %v519 = vpop.f32.mrb[0].mxu0
  %v520 = vpop.f32.mrb[0].mxu0
  %v521 = vadd.f32 %v424, %v520
  %v522 = vpop.f32.mrb[0].mxu0
  %523 = vmatprep.mubr.bf16.mxu0 0
  %524 = vmatmul.mubr.bf16.gmra.mrb[0].mxu0 %v341
  %v525 = vpop.f32.mrb[0].mxu0
  %v526 = vadd.f32 %v429, %v525
  %v527 = vpop.f32.mrb[0].mxu0
  %v528 = vpop.f32.mrb[0].mxu0
  %v529 = vadd.f32 %v432, %v528
  %v530 = vpop.f32.mrb[0].mxu0
  %531 = vmatprep.mubr.bf16.mxu0 0
  %532 = vmatmul.mubr.bf16.gmra.mrb[0].mxu0 %v344
  %v533 = vpop.f32.mrb[0].mxu0
  %v534 = vadd.f32 %v437, %v533
  %v535 = vpop.f32.mrb[0].mxu0
  %v536 = vpop.f32.mrb[0].mxu0
  %v537 = vadd.f32 %v440, %v536
  %v538 = vpop.f32.mrb[0].mxu0
  %539 = vdwg.mxu0
  %v540 = vld [vmem:[%s3] sm:$0xff]
  %v541 = vld [vmem:[%s3 + $0x8] sm:$0xff]
  %v542 = vld [vmem:[%s3 + $0x10] sm:$0xff]
  %v543 = vld [vmem:[%s3 + $0x18] sm:$0xff]
  %v544 = vld [vmem:[%s3 + $0x20] sm:$0xff]
  %v545 = vld [vmem:[%s3 + $0x28] sm:$0xff]
  %v546 = vld [vmem:[%s3 + $0x30] sm:$0xff]
  %v547 = vld [vmem:[%s3 + $0x38] sm:$0xff]
  %v548 = vld [vmem:[%s3 + $0x40] sm:$0xff]
  %v549 = vld [vmem:[%s3 + $0x48] sm:$0xff]
  %v550 = vld [vmem:[%s3 + $0x50] sm:$0xff]
  %v551 = vld [vmem:[%s3 + $0x58] sm:$0xff]
  %v552 = vld [vmem:[%s3 + $0x60] sm:$0xff]
  %v553 = vld [vmem:[%s3 + $0x68] sm:$0xff]
  %v554 = vld [vmem:[%s3 + $0x70] sm:$0xff]
  %v555 = vld [vmem:[%s3 + $0x78] sm:$0xff]
  %v556 = vadd.f32 %v478, %v540
  %v557 = vadd.f32 %v481, %v541
  %v558 = vadd.f32 %v486, %v542
  %v559 = vadd.f32 %v489, %v543
  %v560 = vadd.f32 %v494, %v544
  %v561 = vadd.f32 %v497, %v545
  %v562 = vadd.f32 %v502, %v546
  %v563 = vadd.f32 %v505, %v547
  %v564 = vadd.f32 %v510, %v548
  %v565 = vadd.f32 %v513, %v549
  %v566 = vadd.f32 %v518, %v550
  %v567 = vadd.f32 %v521, %v551
  %v568 = vadd.f32 %v526, %v552
  %v569 = vadd.f32 %v529, %v553
  %v570 = vadd.f32 %v534, %v554
  %v571 = vadd.f32 %v537, %v555
  %v572 = vmax.f32 %v556, 0.0
  %v573 = vmax.f32 %v557, 0.0
  %v574 = vmax.f32 %v558, 0.0
  %v575 = vmax.f32 %v559, 0.0
  %v576 = vmax.f32 %v560, 0.0
  %v577 = vmax.f32 %v561, 0.0
  %v578 = vmax.f32 %v562, 0.0
  %v579 = vmax.f32 %v563, 0.0
  %v580 = vmax.f32 %v564, 0.0
  %v581 = vmax.f32 %v565, 0.0
  %v582 = vmax.f32 %v566, 0.0
  %v583 = vmax.f32 %v567, 0.0
  %v584 = vmax.f32 %v568, 0.0
  %v585 = vmax.f32 %v569, 0.0
  %v586 = vmax.f32 %v570, 0.0
  %v587 = vmax.f32 %v571, 0.0
  %588 = vst.msk [vmem:[%s4] sm:$0xff] %vm321, %v572
  %589 = vst.msk [vmem:[%s4 + $0x8] sm:$0xff] %vm321, %v573
  %590 = vst.msk [vmem:[%s4 + $0x10] sm:$0xff] %vm321, %v574
  %591 = vst.msk [vmem:[%s4 + $0x18] sm:$0xff] %vm321, %v575
  %592 = vst.msk [vmem:[%s4 + $0x20] sm:$0xff] %vm321, %v576
  %593 = vst.msk [vmem:[%s4 + $0x28] sm:$0xff] %vm321, %v577
  %594 = vst.msk [vmem:[%s4 + $0x30] sm:$0xff] %vm321, %v578
  %595 = vst.msk [vmem:[%s4 + $0x38] sm:$0xff] %vm321, %v579
  %596 = vst.msk [vmem:[%s4 + $0x40] sm:$0xff] %vm321, %v580
  %597 = vst.msk [vmem:[%s4 + $0x48] sm:$0xff] %vm321, %v581
  %598 = vst.msk [vmem:[%s4 + $0x50] sm:$0xff] %vm321, %v582
  %599 = vst.msk [vmem:[%s4 + $0x58] sm:$0xff] %vm321, %v583
  %600 = vst.msk [vmem:[%s4 + $0x60] sm:$0xff] %vm321, %v584
  %601 = vst.msk [vmem:[%s4 + $0x68] sm:$0xff] %vm321, %v585
  %602 = vst.msk [vmem:[%s4 + $0x70] sm:$0xff] %vm321, %v586
  %603 = vst.msk [vmem:[%s4 + $0x78] sm:$0xff] %vm321, %v587
  // Predicated region
  $region18: #{resnet_autoencoder.10} parent=0 // pred_check
    _
  $region19: #{resnet_autoencoder.10} parent=0 // pred_check_branch
    %605 = sbr.rel (0) target = $region21
  $region20: #{resnet_autoencoder.10} parent=0 // pred_region
    _
  $region21: #{resnet_autoencoder.10} parent=0 // pred_fallthru
    _
  // Predicated region
  $region22: #{resnet_autoencoder.10} parent=0 // pred_check
    _
  $region23: #{resnet_autoencoder.10} parent=0 // pred_check_branch
    %607 = sbr.rel (0) target = $region25
  $region24: #{resnet_autoencoder.10} parent=0 // pred_region
    _
  $region25: #{resnet_autoencoder.10} parent=0 // pred_fallthru
    _

// kernel: resnet_autoencoder.11
$region0: #{resnet_autoencoder.11}
  #allocation0 [shape = 'u32[]', space=smem, size = 0x4, offset = 0x4, fixed_abs, tag = 'smem constant byte address 0x4 - core index']
  #allocation1 [shape = 'u32[144,128]{1,0:T(1,128)}', space=vmem, size = 0x12000, scoped, tag = 'internal scratch']
  %s0 = inlined_call_operand.vmem [shape: bf16[32,288], index: 0, kind: input, shape index: {}]
  %s1 = inlined_call_operand.vmem [shape: bf16[288,128], index: 1, kind: input, shape index: {}]
  %s2 = inlined_call_operand.vmem [shape: f32[1,128], index: 2, kind: input, shape index: {}]
  %s3 = inlined_call_operand.vmem [shape: f32[32,128], index: 3, kind: output, shape index: {}]
  %s4 = sld [smem:[#allocation0]]
  $region22: #{resnet_autoencoder.11} parent=0
    _
  %s6 = ssub.s32 1, %s4
  %s7 = scalar_select 0, %s6, %s4
  // Predicated region
  $region2: #{resnet_autoencoder.11} parent=0 // pred_check
    _
  $region3: #{resnet_autoencoder.11} parent=0 // pred_check_branch
    %9 = sbr.rel (0) target = $region5
  $region4: #{resnet_autoencoder.11} parent=0 // pred_region
    _
  $region5: #{resnet_autoencoder.11} parent=0 // pred_fallthru
    _
  // Predicated region
  $region6: #{resnet_autoencoder.11} parent=0 // pred_check
    _
  $region7: #{resnet_autoencoder.11} parent=0 // pred_check_branch
    %11 = sbr.rel (0) target = $region9
  $region8: #{resnet_autoencoder.11} parent=0 // pred_region
    _
  $region9: #{resnet_autoencoder.11} parent=0 // pred_fallthru
    _
  // Predicated region
  $region10: #{resnet_autoencoder.11} parent=0 // pred_check
    _
  $region11: #{resnet_autoencoder.11} parent=0 // pred_check_branch
    %13 = sbr.rel (0) target = $region13
  $region12: #{resnet_autoencoder.11} parent=0 // pred_region
    _
  $region13: #{resnet_autoencoder.11} parent=0 // pred_fallthru
    _
  %v15 = vld [vmem:[%s0] sm:$0xff]
  %v16 = vld [vmem:[%s0 + $0x8] sm:$0xf]
  %v17 = vld [vmem:[%s0 + $0xc] sm:$0xff]
  %v18 = vld [vmem:[%s0 + $0x14] sm:$0xf]
  %v19 = vld [vmem:[%s0 + $0x18] sm:$0xff]
  %v20 = vld [vmem:[%s0 + $0x20] sm:$0xf]
  %v21 = vld [vmem:[%s0 + $0x24] sm:$0xff]
  %v22 = vld [vmem:[%s0 + $0x2c] sm:$0xf]
  %v23 = vld [vmem:[%s1] sm:$0xf]
  %v24 = vld [vmem:[%s1 + $0x4] sm:$0xf]
  %v25 = vld [vmem:[%s1 + $0x8] sm:$0xf]
  %v26 = vld [vmem:[%s1 + $0xc] sm:$0xf]
  %v27 = vld [vmem:[%s1 + $0x10] sm:$0xf]
  %v28 = vld [vmem:[%s1 + $0x14] sm:$0xf]
  %v29 = vld [vmem:[%s1 + $0x18] sm:$0xf]
  %v30 = vld [vmem:[%s1 + $0x1c] sm:$0xf]
  %v31 = vld [vmem:[%s1 + $0x20] sm:$0xf]
  %v32 = vld [vmem:[%s1 + $0x24] sm:$0xf]
  %v33 = vld [vmem:[%s1 + $0x28] sm:$0xf]
  %v34 = vld [vmem:[%s1 + $0x2c] sm:$0xf]
  %v35 = vld [vmem:[%s1 + $0x30] sm:$0xf]
  %v36 = vld [vmem:[%s1 + $0x34] sm:$0xf]
  %v37 = vld [vmem:[%s1 + $0x38] sm:$0xf]
  %v38 = vld [vmem:[%s1 + $0x3c] sm:$0xf]
  %v39 = vld [vmem:[%s1 + $0x40] sm:$0xf]
  %v40 = vld [vmem:[%s1 + $0x44] sm:$0xf]
  %v41 = vld [vmem:[%s1 + $0x48] sm:$0xf]
  %v42 = vld [vmem:[%s1 + $0x4c] sm:$0xf]
  %v43 = vld [vmem:[%s1 + $0x50] sm:$0xf]
  %v44 = vld [vmem:[%s1 + $0x54] sm:$0xf]
  %v45 = vld [vmem:[%s1 + $0x58] sm:$0xf]
  %v46 = vld [vmem:[%s1 + $0x5c] sm:$0xf]
  %v47 = vld [vmem:[%s1 + $0x60] sm:$0xf]
  %v48 = vld [vmem:[%s1 + $0x64] sm:$0xf]
  %v49 = vld [vmem:[%s1 + $0x68] sm:$0xf]
  %v50 = vld [vmem:[%s1 + $0x6c] sm:$0xf]
  %v51 = vld [vmem:[%s1 + $0x70] sm:$0xf]
  %v52 = vld [vmem:[%s1 + $0x74] sm:$0xf]
  %v53 = vld [vmem:[%s1 + $0x78] sm:$0xf]
  %v54 = vld [vmem:[%s1 + $0x7c] sm:$0xf]
  %v55 = vld [vmem:[%s1 + $0x80] sm:$0xf]
  %v56 = vld [vmem:[%s1 + $0x84] sm:$0xf]
  %v57 = vld [vmem:[%s1 + $0x88] sm:$0xf]
  %v58 = vld [vmem:[%s1 + $0x8c] sm:$0xf]
  %v59 = vld [vmem:[%s2] sm:$0x1]
  %v61 = vlaneseq
  %v62 = vshrl.u32 %v61, 7
  %v63 = vsub.s32 0, %v62
  %v64 = vrot.slane %v59, %v63
  %v74 = vunpack.c.l.b16 %v15
  %v75 = vunpack.c.h.b16 %v15
  %v76 = vunpack.c.l.b16 %v16
  %v77 = vunpack.c.l.b16 %v17
  %v78 = vunpack.c.h.b16 %v17
  %v79 = vunpack.c.l.b16 %v18
  %v80 = vunpack.c.l.b16 %v19
  %v81 = vunpack.c.h.b16 %v19
  %v82 = vunpack.c.l.b16 %v20
  %v83 = vunpack.c.l.b16 %v21
  %v84 = vunpack.c.h.b16 %v21
  %v85 = vunpack.c.l.b16 %v22
  %v86 = vpack.c.b16 %v77, %v74
  %v87 = vpack.c.b16 %v78, %v75
  %v88 = vpack.c.b16 %v79, %v76
  %v89 = vpack.c.b16 %v83, %v80
  %v90 = vpack.c.b16 %v84, %v81
  %v91 = vpack.c.b16 %v85, %v82
  %v132 = vunpack.c.l.b16 %v23
  %v133 = vunpack.c.l.b16 %v24
  %v134 = vunpack.c.l.b16 %v25
  %v135 = vunpack.c.l.b16 %v26
  %v136 = vunpack.c.l.b16 %v27
  %v137 = vunpack.c.l.b16 %v28
  %v138 = vunpack.c.l.b16 %v29
  %v139 = vunpack.c.l.b16 %v30
  %v140 = vunpack.c.l.b16 %v31
  %v141 = vunpack.c.l.b16 %v32
  %v142 = vunpack.c.l.b16 %v33
  %v143 = vunpack.c.l.b16 %v34
  %v144 = vunpack.c.l.b16 %v35
  %v145 = vunpack.c.l.b16 %v36
  %v146 = vunpack.c.l.b16 %v37
  %v147 = vunpack.c.l.b16 %v38
  %v148 = vunpack.c.l.b16 %v39
  %v149 = vunpack.c.l.b16 %v40
  %v150 = vunpack.c.l.b16 %v41
  %v151 = vunpack.c.l.b16 %v42
  %v152 = vunpack.c.l.b16 %v43
  %v153 = vunpack.c.l.b16 %v44
  %v154 = vunpack.c.l.b16 %v45
  %v155 = vunpack.c.l.b16 %v46
  %v156 = vunpack.c.l.b16 %v47
  %v157 = vunpack.c.l.b16 %v48
  %v158 = vunpack.c.l.b16 %v49
  %v159 = vunpack.c.l.b16 %v50
  %v160 = vunpack.c.l.b16 %v51
  %v161 = vunpack.c.l.b16 %v52
  %v162 = vunpack.c.l.b16 %v53
  %v163 = vunpack.c.l.b16 %v54
  %v164 = vunpack.c.l.b16 %v55
  %v165 = vunpack.c.l.b16 %v56
  %v166 = vunpack.c.l.b16 %v57
  %v167 = vunpack.c.l.b16 %v58
  %v168 = vpack.c.b16 %v133, %v132
  %v169 = vpack.c.b16 %v135, %v134
  %v170 = vpack.c.b16 %v137, %v136
  %v171 = vpack.c.b16 %v139, %v138
  %v172 = vpack.c.b16 %v141, %v140
  %v173 = vpack.c.b16 %v143, %v142
  %v174 = vpack.c.b16 %v145, %v144
  %v175 = vpack.c.b16 %v147, %v146
  %v176 = vpack.c.b16 %v149, %v148
  %v177 = vpack.c.b16 %v151, %v150
  %v178 = vpack.c.b16 %v153, %v152
  %v179 = vpack.c.b16 %v155, %v154
  %v180 = vpack.c.b16 %v157, %v156
  %v181 = vpack.c.b16 %v159, %v158
  %v182 = vpack.c.b16 %v161, %v160
  %v183 = vpack.c.b16 %v163, %v162
  %v184 = vpack.c.b16 %v165, %v164
  %v185 = vpack.c.b16 %v167, %v166
  %vm204 = vcmask 261120
  %v206 = vsel %vm204, %v88, 0
  %v209 = vsel %vm204, %v91, 0
  %211 = vmatprep.subr.bf16.mxu0 0
  %212 = vmatpush1.bf16.msra.mxu0 %v168
  %213 = vmatprep.subr.bf16.mxu0 0
  %214 = vmatpush1.bf16.msra.mxu0 %v169
  %215 = vmatprep.subr.bf16.mxu0 0
  %216 = vmatpush1.bf16.msra.mxu0 %v170
  %217 = vmatprep.subr.bf16.mxu0 0
  %218 = vmatpush1.bf16.msra.mxu0 %v171
  %219 = vmatprep.subr.bf16.mxu0 0
  %220 = vmatpush1.bf16.msra.mxu0 %v172
  %221 = vmatprep.subr.bf16.mxu0 0
  %222 = vmatpush1.bf16.msra.mxu0 %v173
  %223 = vmatprep.subr.bf16.mxu0 0
  %224 = vmatpush1.bf16.msra.mxu0 %v174
  %225 = vmatprep.subr.bf16.mxu0 0
  %226 = vmatpush1.bf16.msra.mxu0 %v175
  %227 = vmatprep.subr.bf16.mxu0 0
  %228 = vmatpush1.bf16.msra.mxu0 %v176
  %229 = vmatprep.subr.bf16.mxu0 0
  %230 = vmatpush1.bf16.msra.mxu0 %v177
  %231 = vmatprep.subr.bf16.mxu0 0
  %232 = vmatpush1.bf16.msra.mxu0 %v178
  %233 = vmatprep.subr.bf16.mxu0 0
  %234 = vmatpush1.bf16.msra.mxu0 %v179
  %235 = vmatprep.subr.bf16.mxu0 0
  %236 = vmatpush1.bf16.msra.mxu0 %v180
  %237 = vmatprep.subr.bf16.mxu0 0
  %238 = vmatpush1.bf16.msra.mxu0 %v181
  %239 = vmatprep.subr.bf16.mxu0 0
  %240 = vmatpush1.bf16.msra.mxu0 %v182
  %241 = vmatprep.subr.bf16.mxu0 0
  %242 = vmatpush1.bf16.msra.mxu0 %v183
  %243 = vmatprep.mubr.bf16.mxu0 %v87
  %244 = vmatmul.mubr.bf16.gmra.mrb[0].mxu0 %v86
  %v245 = vpop.f32.mrb[0].mxu0
  %v246 = vadd.f32 %v64, %v245
  %v247 = vpop.f32.mrb[0].mxu0
  %v248 = vpop.f32.mrb[0].mxu0
  %v249 = vadd.f32 %v64, %v248
  %v250 = vpop.f32.mrb[0].mxu0
  %251 = vmatprep.mubr.bf16.mxu0 %v90
  %252 = vmatmul.mubr.bf16.gmra.mrb[0].mxu0 %v89
  %v253 = vpop.f32.mrb[0].mxu0
  %v254 = vadd.f32 %v64, %v253
  %v255 = vpop.f32.mrb[0].mxu0
  %v256 = vpop.f32.mrb[0].mxu0
  %v257 = vadd.f32 %v64, %v256
  %v258 = vpop.f32.mrb[0].mxu0
  %259 = vdwg.mxu0
  %260 = vmatprep.subr.bf16.mxu0 0
  %261 = vmatpush1.bf16.msra.mxu0 %v184
  %262 = vmatprep.subr.bf16.mxu0 0
  %263 = vmatpush1.bf16.msra.mxu0 %v185
  %264 = vmatprep.subr.bf16.mxu0 0
  %265 = vmatpush1.bf16.msra.mxu0 0
  %266 = vmatprep.subr.bf16.mxu0 0
  %267 = vmatpush1.bf16.msra.mxu0 0
  %268 = vmatprep.subr.bf16.mxu0 0
  %269 = vmatpush1.bf16.msra.mxu0 0
  %270 = vmatprep.subr.bf16.mxu0 0
  %271 = vmatpush1.bf16.msra.mxu0 0
  %272 = vmatprep.subr.bf16.mxu0 0
  %273 = vmatpush1.bf16.msra.mxu0 0
  %274 = vmatprep.subr.bf16.mxu0 0
  %275 = vmatpush1.bf16.msra.mxu0 0
  %276 = vmatprep.subr.bf16.mxu0 0
  %277 = vmatpush1.bf16.msra.mxu0 0
  %278 = vmatprep.subr.bf16.mxu0 0
  %279 = vmatpush1.bf16.msra.mxu0 0
  %280 = vmatprep.subr.bf16.mxu0 0
  %281 = vmatpush1.bf16.msra.mxu0 0
  %282 = vmatprep.subr.bf16.mxu0 0
  %283 = vmatpush1.bf16.msra.mxu0 0
  %284 = vmatprep.subr.bf16.mxu0 0
  %285 = vmatpush1.bf16.msra.mxu0 0
  %286 = vmatprep.subr.bf16.mxu0 0
  %287 = vmatpush1.bf16.msra.mxu0 0
  %288 = vmatprep.subr.bf16.mxu0 0
  %289 = vmatpush1.bf16.msra.mxu0 0
  %290 = vmatprep.subr.bf16.mxu0 0
  %291 = vmatpush1.bf16.msra.mxu0 0
  %292 = vmatprep.mubr.bf16.mxu0 0
  %293 = vmatmul.mubr.bf16.gmra.mrb[0].mxu0 %v206
  %v294 = vpop.f32.mrb[0].mxu0
  %v295 = vadd.f32 %v246, %v294
  %v296 = vpop.f32.mrb[0].mxu0
  %v297 = vpop.f32.mrb[0].mxu0
  %v298 = vadd.f32 %v249, %v297
  %v299 = vpop.f32.mrb[0].mxu0
  %300 = vmatprep.mubr.bf16.mxu0 0
  %301 = vmatmul.mubr.bf16.gmra.mrb[0].mxu0 %v209
  %v302 = vpop.f32.mrb[0].mxu0
  %v303 = vadd.f32 %v254, %v302
  %v304 = vpop.f32.mrb[0].mxu0
  %v305 = vpop.f32.mrb[0].mxu0
  %v306 = vadd.f32 %v257, %v305
  %v307 = vpop.f32.mrb[0].mxu0
  %308 = vdwg.mxu0
  %v309 = vlaneseq
  %v310 = vand.u32 %v309, 127
  %vm311 = vcmp.lt.s32.totalorder %v310, 64
  %v312 = vmax.f32 %v295, 0.0
  %v313 = vmax.f32 %v298, 0.0
  %v314 = vmax.f32 %v303, 0.0
  %v315 = vmax.f32 %v306, 0.0
  %v316 = vsel %vm311, %v312, %v295
  %v317 = vsel %vm311, %v313, %v298
  %v318 = vsel %vm311, %v314, %v303
  %v319 = vsel %vm311, %v315, %v306
  %320 = vst [vmem:[%s3] sm:$0xff] %v316
  %321 = vst [vmem:[%s3 + $0x8] sm:$0xff] %v317
  %322 = vst [vmem:[%s3 + $0x10] sm:$0xff] %v318
  %323 = vst [vmem:[%s3 + $0x18] sm:$0xff] %v319
  // Predicated region
  $region14: #{resnet_autoencoder.11} parent=0 // pred_check
    _
  $region15: #{resnet_autoencoder.11} parent=0 // pred_check_branch
    %325 = sbr.rel (0) target = $region17
  $region16: #{resnet_autoencoder.11} parent=0 // pred_region
    _
  $region17: #{resnet_autoencoder.11} parent=0 // pred_fallthru
    _
  // Predicated region
  $region18: #{resnet_autoencoder.11} parent=0 // pred_check
    _
  $region19: #{resnet_autoencoder.11} parent=0 // pred_check_branch
    %327 = sbr.rel (0) target = $region21
  $region20: #{resnet_autoencoder.11} parent=0 // pred_region
    _
  $region21: #{resnet_autoencoder.11} parent=0 // pred_fallthru
    _

// kernel: resnet_autoencoder.12
$region0: #{resnet_autoencoder.12}
  #allocation0 [shape = 'u32[]', space=smem, size = 0x4, offset = 0x4, fixed_abs, tag = 'smem constant byte address 0x4 - core index']
  #allocation1 [shape = 'u32[144,128]{1,0:T(1,128)}', space=vmem, size = 0x12000, scoped, tag = 'internal scratch']
  %s0 = inlined_call_operand.vmem [shape: bf16[32,576], index: 0, kind: input, shape index: {}]
  %s1 = inlined_call_operand.vmem [shape: bf16[576,64], index: 1, kind: input, shape index: {}]
  %s2 = inlined_call_operand.vmem [shape: f32[1,64], index: 2, kind: input, shape index: {}]
  %s3 = inlined_call_operand.vmem [shape: f32[32,64], index: 3, kind: input, shape index: {}]
  %s4 = inlined_call_operand.vmem [shape: f32[32,64], index: 4, kind: output, shape index: {}]
  %s5 = sld [smem:[#allocation0]]
  $region26: #{resnet_autoencoder.12} parent=0
    _
  %s7 = ssub.s32 1, %s5
  %s8 = scalar_select 0, %s7, %s5
  // Predicated region
  $region2: #{resnet_autoencoder.12} parent=0 // pred_check
    _
  $region3: #{resnet_autoencoder.12} parent=0 // pred_check_branch
    %10 = sbr.rel (0) target = $region5
  $region4: #{resnet_autoencoder.12} parent=0 // pred_region
    _
  $region5: #{resnet_autoencoder.12} parent=0 // pred_fallthru
    _
  // Predicated region
  $region6: #{resnet_autoencoder.12} parent=0 // pred_check
    _
  $region7: #{resnet_autoencoder.12} parent=0 // pred_check_branch
    %12 = sbr.rel (0) target = $region9
  $region8: #{resnet_autoencoder.12} parent=0 // pred_region
    _
  $region9: #{resnet_autoencoder.12} parent=0 // pred_fallthru
    _
  // Predicated region
  $region10: #{resnet_autoencoder.12} parent=0 // pred_check
    _
  $region11: #{resnet_autoencoder.12} parent=0 // pred_check_branch
    %14 = sbr.rel (0) target = $region13
  $region12: #{resnet_autoencoder.12} parent=0 // pred_region
    _
  $region13: #{resnet_autoencoder.12} parent=0 // pred_fallthru
    _
  // Predicated region
  $region14: #{resnet_autoencoder.12} parent=0 // pred_check
    _
  $region15: #{resnet_autoencoder.12} parent=0 // pred_check_branch
    %16 = sbr.rel (0) target = $region17
  $region16: #{resnet_autoencoder.12} parent=0 // pred_region
    _
  $region17: #{resnet_autoencoder.12} parent=0 // pred_fallthru
    _
  %v18 = vld [vmem:[%s0] sm:$0xff]
  %v19 = vld [vmem:[%s0 + $0x8] sm:$0xff]
  %v20 = vld [vmem:[%s0 + $0x10] sm:$0xf]
  %v21 = vld [vmem:[%s0 + $0x14] sm:$0xff]
  %v22 = vld [vmem:[%s0 + $0x1c] sm:$0xff]
  %v23 = vld [vmem:[%s0 + $0x24] sm:$0xf]
  %v24 = vld [vmem:[%s0 + $0x28] sm:$0xff]
  %v25 = vld [vmem:[%s0 + $0x30] sm:$0xff]
  %v26 = vld [vmem:[%s0 + $0x38] sm:$0xf]
  %v27 = vld [vmem:[%s0 + $0x3c] sm:$0xff]
  %v28 = vld [vmem:[%s0 + $0x44] sm:$0xff]
  %v29 = vld [vmem:[%s0 + $0x4c] sm:$0xf]
  %v30 = vld [vmem:[%s1] sm:$0xf]
  %v31 = vld [vmem:[%s1 + $0x4] sm:$0xf]
  %v32 = vld [vmem:[%s1 + $0x8] sm:$0xf]
  %v33 = vld [vmem:[%s1 + $0xc] sm:$0xf]
  %v34 = vld [vmem:[%s1 + $0x10] sm:$0xf]
  %v35 = vld [vmem:[%s1 + $0x14] sm:$0xf]
  %v36 = vld [vmem:[%s1 + $0x18] sm:$0xf]
  %v37 = vld [vmem:[%s1 + $0x1c] sm:$0xf]
  %v38 = vld [vmem:[%s1 + $0x20] sm:$0xf]
  %v39 = vld [vmem:[%s1 + $0x24] sm:$0xf]
  %v40 = vld [vmem:[%s1 + $0x28] sm:$0xf]
  %v41 = vld [vmem:[%s1 + $0x2c] sm:$0xf]
  %v42 = vld [vmem:[%s1 + $0x30] sm:$0xf]
  %v43 = vld [vmem:[%s1 + $0x34] sm:$0xf]
  %v44 = vld [vmem:[%s1 + $0x38] sm:$0xf]
  %v45 = vld [vmem:[%s1 + $0x3c] sm:$0xf]
  %v46 = vld [vmem:[%s1 + $0x40] sm:$0xf]
  %v47 = vld [vmem:[%s1 + $0x44] sm:$0xf]
  %v48 = vld [vmem:[%s1 + $0x48] sm:$0xf]
  %v49 = vld [vmem:[%s1 + $0x4c] sm:$0xf]
  %v50 = vld [vmem:[%s1 + $0x50] sm:$0xf]
  %v51 = vld [vmem:[%s1 + $0x54] sm:$0xf]
  %v52 = vld [vmem:[%s1 + $0x58] sm:$0xf]
  %v53 = vld [vmem:[%s1 + $0x5c] sm:$0xf]
  %v54 = vld [vmem:[%s1 + $0x60] sm:$0xf]
  %v55 = vld [vmem:[%s1 + $0x64] sm:$0xf]
  %v56 = vld [vmem:[%s1 + $0x68] sm:$0xf]
  %v57 = vld [vmem:[%s1 + $0x6c] sm:$0xf]
  %v58 = vld [vmem:[%s1 + $0x70] sm:$0xf]
  %v59 = vld [vmem:[%s1 + $0x74] sm:$0xf]
  %v60 = vld [vmem:[%s1 + $0x78] sm:$0xf]
  %v61 = vld [vmem:[%s1 + $0x7c] sm:$0xf]
  %v62 = vld [vmem:[%s1 + $0x80] sm:$0xf]
  %v63 = vld [vmem:[%s1 + $0x84] sm:$0xf]
  %v64 = vld [vmem:[%s1 + $0x88] sm:$0xf]
  %v65 = vld [vmem:[%s1 + $0x8c] sm:$0xf]
  %v66 = vld [vmem:[%s1 + $0x90] sm:$0xf]
  %v67 = vld [vmem:[%s1 + $0x94] sm:$0xf]
  %v68 = vld [vmem:[%s1 + $0x98] sm:$0xf]
  %v69 = vld [vmem:[%s1 + $0x9c] sm:$0xf]
  %v70 = vld [vmem:[%s1 + $0xa0] sm:$0xf]
  %v71 = vld [vmem:[%s1 + $0xa4] sm:$0xf]
  %v72 = vld [vmem:[%s1 + $0xa8] sm:$0xf]
  %v73 = vld [vmem:[%s1 + $0xac] sm:$0xf]
  %v74 = vld [vmem:[%s1 + $0xb0] sm:$0xf]
  %v75 = vld [vmem:[%s1 + $0xb4] sm:$0xf]
  %v76 = vld [vmem:[%s1 + $0xb8] sm:$0xf]
  %v77 = vld [vmem:[%s1 + $0xbc] sm:$0xf]
  %v78 = vld [vmem:[%s1 + $0xc0] sm:$0xf]
  %v79 = vld [vmem:[%s1 + $0xc4] sm:$0xf]
  %v80 = vld [vmem:[%s1 + $0xc8] sm:$0xf]
  %v81 = vld [vmem:[%s1 + $0xcc] sm:$0xf]
  %v82 = vld [vmem:[%s1 + $0xd0] sm:$0xf]
  %v83 = vld [vmem:[%s1 + $0xd4] sm:$0xf]
  %v84 = vld [vmem:[%s1 + $0xd8] sm:$0xf]
  %v85 = vld [vmem:[%s1 + $0xdc] sm:$0xf]
  %v86 = vld [vmem:[%s1 + $0xe0] sm:$0xf]
  %v87 = vld [vmem:[%s1 + $0xe4] sm:$0xf]
  %v88 = vld [vmem:[%s1 + $0xe8] sm:$0xf]
  %v89 = vld [vmem:[%s1 + $0xec] sm:$0xf]
  %v90 = vld [vmem:[%s1 + $0xf0] sm:$0xf]
  %v91 = vld [vmem:[%s1 + $0xf4] sm:$0xf]
  %v92 = vld [vmem:[%s1 + $0xf8] sm:$0xf]
  %v93 = vld [vmem:[%s1 + $0xfc] sm:$0xf]
  %v94 = vld [vmem:[%s1 + $0x100] sm:$0xf]
  %v95 = vld [vmem:[%s1 + $0x104] sm:$0xf]
  %v96 = vld [vmem:[%s1 + $0x108] sm:$0xf]
  %v97 = vld [vmem:[%s1 + $0x10c] sm:$0xf]
  %v98 = vld [vmem:[%s1 + $0x110] sm:$0xf]
  %v99 = vld [vmem:[%s1 + $0x114] sm:$0xf]
  %v100 = vld [vmem:[%s1 + $0x118] sm:$0xf]
  %v101 = vld [vmem:[%s1 + $0x11c] sm:$0xf]
  %v102 = vld [vmem:[%s2] sm:$0x1]
  %v104 = vlaneseq
  %v105 = vshrl.u32 %v104, 7
  %v106 = vsub.s32 0, %v105
  %v107 = vrot.slane %v102, %v106
  %v121 = vunpack.c.l.b16 %v18
  %v122 = vunpack.c.h.b16 %v18
  %v123 = vunpack.c.l.b16 %v19
  %v124 = vunpack.c.h.b16 %v19
  %v125 = vunpack.c.l.b16 %v20
  %v126 = vunpack.c.l.b16 %v21
  %v127 = vunpack.c.h.b16 %v21
  %v128 = vunpack.c.l.b16 %v22
  %v129 = vunpack.c.h.b16 %v22
  %v130 = vunpack.c.l.b16 %v23
  %v131 = vunpack.c.l.b16 %v24
  %v132 = vunpack.c.h.b16 %v24
  %v133 = vunpack.c.l.b16 %v25
  %v134 = vunpack.c.h.b16 %v25
  %v135 = vunpack.c.l.b16 %v26
  %v136 = vunpack.c.l.b16 %v27
  %v137 = vunpack.c.h.b16 %v27
  %v138 = vunpack.c.l.b16 %v28
  %v139 = vunpack.c.h.b16 %v28
  %v140 = vunpack.c.l.b16 %v29
  %v141 = vpack.c.b16 %v126, %v121
  %v142 = vpack.c.b16 %v127, %v122
  %v143 = vpack.c.b16 %v128, %v123
  %v144 = vpack.c.b16 %v129, %v124
  %v145 = vpack.c.b16 %v130, %v125
  %v146 = vpack.c.b16 %v136, %v131
  %v147 = vpack.c.b16 %v137, %v132
  %v148 = vpack.c.b16 %v138, %v133
  %v149 = vpack.c.b16 %v139, %v134
  %v150 = vpack.c.b16 %v140, %v135
  %v231 = vunpack.c.l.b16 %v30
  %v232 = vunpack.c.l.b16 %v31
  %v233 = vunpack.c.l.b16 %v32
  %v234 = vunpack.c.l.b16 %v33
  %v235 = vunpack.c.l.b16 %v34
  %v236 = vunpack.c.l.b16 %v35
  %v237 = vunpack.c.l.b16 %v36
  %v238 = vunpack.c.l.b16 %v37
  %v239 = vunpack.c.l.b16 %v38
  %v240 = vunpack.c.l.b16 %v39
  %v241 = vunpack.c.l.b16 %v40
  %v242 = vunpack.c.l.b16 %v41
  %v243 = vunpack.c.l.b16 %v42
  %v244 = vunpack.c.l.b16 %v43
  %v245 = vunpack.c.l.b16 %v44
  %v246 = vunpack.c.l.b16 %v45
  %v247 = vunpack.c.l.b16 %v46
  %v248 = vunpack.c.l.b16 %v47
  %v249 = vunpack.c.l.b16 %v48
  %v250 = vunpack.c.l.b16 %v49
  %v251 = vunpack.c.l.b16 %v50
  %v252 = vunpack.c.l.b16 %v51
  %v253 = vunpack.c.l.b16 %v52
  %v254 = vunpack.c.l.b16 %v53
  %v255 = vunpack.c.l.b16 %v54
  %v256 = vunpack.c.l.b16 %v55
  %v257 = vunpack.c.l.b16 %v56
  %v258 = vunpack.c.l.b16 %v57
  %v259 = vunpack.c.l.b16 %v58
  %v260 = vunpack.c.l.b16 %v59
  %v261 = vunpack.c.l.b16 %v60
  %v262 = vunpack.c.l.b16 %v61
  %v263 = vunpack.c.l.b16 %v62
  %v264 = vunpack.c.l.b16 %v63
  %v265 = vunpack.c.l.b16 %v64
  %v266 = vunpack.c.l.b16 %v65
  %v267 = vunpack.c.l.b16 %v66
  %v268 = vunpack.c.l.b16 %v67
  %v269 = vunpack.c.l.b16 %v68
  %v270 = vunpack.c.l.b16 %v69
  %v271 = vunpack.c.l.b16 %v70
  %v272 = vunpack.c.l.b16 %v71
  %v273 = vunpack.c.l.b16 %v72
  %v274 = vunpack.c.l.b16 %v73
  %v275 = vunpack.c.l.b16 %v74
  %v276 = vunpack.c.l.b16 %v75
  %v277 = vunpack.c.l.b16 %v76
  %v278 = vunpack.c.l.b16 %v77
  %v279 = vunpack.c.l.b16 %v78
  %v280 = vunpack.c.l.b16 %v79
  %v281 = vunpack.c.l.b16 %v80
  %v282 = vunpack.c.l.b16 %v81
  %v283 = vunpack.c.l.b16 %v82
  %v284 = vunpack.c.l.b16 %v83
  %v285 = vunpack.c.l.b16 %v84
  %v286 = vunpack.c.l.b16 %v85
  %v287 = vunpack.c.l.b16 %v86
  %v288 = vunpack.c.l.b16 %v87
  %v289 = vunpack.c.l.b16 %v88
  %v290 = vunpack.c.l.b16 %v89
  %v291 = vunpack.c.l.b16 %v90
  %v292 = vunpack.c.l.b16 %v91
  %v293 = vunpack.c.l.b16 %v92
  %v294 = vunpack.c.l.b16 %v93
  %v295 = vunpack.c.l.b16 %v94
  %v296 = vunpack.c.l.b16 %v95
  %v297 = vunpack.c.l.b16 %v96
  %v298 = vunpack.c.l.b16 %v97
  %v299 = vunpack.c.l.b16 %v98
  %v300 = vunpack.c.l.b16 %v99
  %v301 = vunpack.c.l.b16 %v100
  %v302 = vunpack.c.l.b16 %v101
  %v303 = vpack.c.b16 %v232, %v231
  %v304 = vpack.c.b16 %v234, %v233
  %v305 = vpack.c.b16 %v236, %v235
  %v306 = vpack.c.b16 %v238, %v237
  %v307 = vpack.c.b16 %v240, %v239
  %v308 = vpack.c.b16 %v242, %v241
  %v309 = vpack.c.b16 %v244, %v243
  %v310 = vpack.c.b16 %v246, %v245
  %v311 = vpack.c.b16 %v248, %v247
  %v312 = vpack.c.b16 %v250, %v249
  %v313 = vpack.c.b16 %v252, %v251
  %v314 = vpack.c.b16 %v254, %v253
  %v315 = vpack.c.b16 %v256, %v255
  %v316 = vpack.c.b16 %v258, %v257
  %v317 = vpack.c.b16 %v260, %v259
  %v318 = vpack.c.b16 %v262, %v261
  %v319 = vpack.c.b16 %v264, %v263
  %v320 = vpack.c.b16 %v266, %v265
  %v321 = vpack.c.b16 %v268, %v267
  %v322 = vpack.c.b16 %v270, %v269
  %v323 = vpack.c.b16 %v272, %v271
  %v324 = vpack.c.b16 %v274, %v273
  %v325 = vpack.c.b16 %v276, %v275
  %v326 = vpack.c.b16 %v278, %v277
  %v327 = vpack.c.b16 %v280, %v279
  %v328 = vpack.c.b16 %v282, %v281
  %v329 = vpack.c.b16 %v284, %v283
  %v330 = vpack.c.b16 %v286, %v285
  %v331 = vpack.c.b16 %v288, %v287
  %v332 = vpack.c.b16 %v290, %v289
  %v333 = vpack.c.b16 %v292, %v291
  %v334 = vpack.c.b16 %v294, %v293
  %v335 = vpack.c.b16 %v296, %v295
  %v336 = vpack.c.b16 %v298, %v297
  %v337 = vpack.c.b16 %v300, %v299
  %v338 = vpack.c.b16 %v302, %v301
  %vm375 = vcmask 523264
  %v377 = vsel %vm375, %v145, 0
  %v380 = vsel %vm375, %v150, 0
  %382 = vmatprep.subr.bf16.mxu0 0
  %383 = vmatpush1.bf16.msra.mxu0 %v303
  %384 = vmatprep.subr.bf16.mxu0 0
  %385 = vmatpush1.bf16.msra.mxu0 %v304
  %386 = vmatprep.subr.bf16.mxu0 0
  %387 = vmatpush1.bf16.msra.mxu0 %v305
  %388 = vmatprep.subr.bf16.mxu0 0
  %389 = vmatpush1.bf16.msra.mxu0 %v306
  %390 = vmatprep.subr.bf16.mxu0 0
  %391 = vmatpush1.bf16.msra.mxu0 %v307
  %392 = vmatprep.subr.bf16.mxu0 0
  %393 = vmatpush1.bf16.msra.mxu0 %v308
  %394 = vmatprep.subr.bf16.mxu0 0
  %395 = vmatpush1.bf16.msra.mxu0 %v309
  %396 = vmatprep.subr.bf16.mxu0 0
  %397 = vmatpush1.bf16.msra.mxu0 %v310
  %398 = vmatprep.subr.bf16.mxu0 0
  %399 = vmatpush1.bf16.msra.mxu0 %v311
  %400 = vmatprep.subr.bf16.mxu0 0
  %401 = vmatpush1.bf16.msra.mxu0 %v312
  %402 = vmatprep.subr.bf16.mxu0 0
  %403 = vmatpush1.bf16.msra.mxu0 %v313
  %404 = vmatprep.subr.bf16.mxu0 0
  %405 = vmatpush1.bf16.msra.mxu0 %v314
  %406 = vmatprep.subr.bf16.mxu0 0
  %407 = vmatpush1.bf16.msra.mxu0 %v315
  %408 = vmatprep.subr.bf16.mxu0 0
  %409 = vmatpush1.bf16.msra.mxu0 %v316
  %410 = vmatprep.subr.bf16.mxu0 0
  %411 = vmatpush1.bf16.msra.mxu0 %v317
  %412 = vmatprep.subr.bf16.mxu0 0
  %413 = vmatpush1.bf16.msra.mxu0 %v318
  %414 = vmatprep.mubr.bf16.mxu0 %v142
  %415 = vmatmul.mubr.bf16.gmra.mrb[0].mxu0 %v141
  %v416 = vpop.f32.mrb[0].mxu0
  %v417 = vadd.f32 %v107, %v416
  %v418 = vpop.f32.mrb[0].mxu0
  %v419 = vpop.f32.mrb[0].mxu0
  %v420 = vadd.f32 %v107, %v419
  %v421 = vpop.f32.mrb[0].mxu0
  %422 = vmatprep.mubr.bf16.mxu0 %v147
  %423 = vmatmul.mubr.bf16.gmra.mrb[0].mxu0 %v146
  %v424 = vpop.f32.mrb[0].mxu0
  %v425 = vadd.f32 %v107, %v424
  %v426 = vpop.f32.mrb[0].mxu0
  %v427 = vpop.f32.mrb[0].mxu0
  %v428 = vadd.f32 %v107, %v427
  %v429 = vpop.f32.mrb[0].mxu0
  %430 = vdwg.mxu0
  %431 = vmatprep.subr.bf16.mxu0 0
  %432 = vmatpush1.bf16.msra.mxu0 %v319
  %433 = vmatprep.subr.bf16.mxu0 0
  %434 = vmatpush1.bf16.msra.mxu0 %v320
  %435 = vmatprep.subr.bf16.mxu0 0
  %436 = vmatpush1.bf16.msra.mxu0 %v321
  %437 = vmatprep.subr.bf16.mxu0 0
  %438 = vmatpush1.bf16.msra.mxu0 %v322
  %439 = vmatprep.subr.bf16.mxu0 0
  %440 = vmatpush1.bf16.msra.mxu0 %v323
  %441 = vmatprep.subr.bf16.mxu0 0
  %442 = vmatpush1.bf16.msra.mxu0 %v324
  %443 = vmatprep.subr.bf16.mxu0 0
  %444 = vmatpush1.bf16.msra.mxu0 %v325
  %445 = vmatprep.subr.bf16.mxu0 0
  %446 = vmatpush1.bf16.msra.mxu0 %v326
  %447 = vmatprep.subr.bf16.mxu0 0
  %448 = vmatpush1.bf16.msra.mxu0 %v327
  %449 = vmatprep.subr.bf16.mxu0 0
  %450 = vmatpush1.bf16.msra.mxu0 %v328
  %451 = vmatprep.subr.bf16.mxu0 0
  %452 = vmatpush1.bf16.msra.mxu0 %v329
  %453 = vmatprep.subr.bf16.mxu0 0
  %454 = vmatpush1.bf16.msra.mxu0 %v330
  %455 = vmatprep.subr.bf16.mxu0 0
  %456 = vmatpush1.bf16.msra.mxu0 %v331
  %457 = vmatprep.subr.bf16.mxu0 0
  %458 = vmatpush1.bf16.msra.mxu0 %v332
  %459 = vmatprep.subr.bf16.mxu0 0
  %460 = vmatpush1.bf16.msra.mxu0 %v333
  %461 = vmatprep.subr.bf16.mxu0 0
  %462 = vmatpush1.bf16.msra.mxu0 %v334
  %463 = vmatprep.mubr.bf16.mxu0 %v144
  %464 = vmatmul.mubr.bf16.gmra.mrb[0].mxu0 %v143
  %v465 = vpop.f32.mrb[0].mxu0
  %v466 = vadd.f32 %v417, %v465
  %v467 = vpop.f32.mrb[0].mxu0
  %v468 = vpop.f32.mrb[0].mxu0
  %v469 = vadd.f32 %v420, %v468
  %v470 = vpop.f32.mrb[0].mxu0
  %471 = vmatprep.mubr.bf16.mxu0 %v149
  %472 = vmatmul.mubr.bf16.gmra.mrb[0].mxu0 %v148
  %v473 = vpop.f32.mrb[0].mxu0
  %v474 = vadd.f32 %v425, %v473
  %v475 = vpop.f32.mrb[0].mxu0
  %v476 = vpop.f32.mrb[0].mxu0
  %v477 = vadd.f32 %v428, %v476
  %v478 = vpop.f32.mrb[0].mxu0
  %479 = vdwg.mxu0
  %480 = vmatprep.subr.bf16.mxu0 0
  %481 = vmatpush1.bf16.msra.mxu0 %v335
  %482 = vmatprep.subr.bf16.mxu0 0
  %483 = vmatpush1.bf16.msra.mxu0 %v336
  %484 = vmatprep.subr.bf16.mxu0 0
  %485 = vmatpush1.bf16.msra.mxu0 %v337
  %486 = vmatprep.subr.bf16.mxu0 0
  %487 = vmatpush1.bf16.msra.mxu0 %v338
  %488 = vmatprep.subr.bf16.mxu0 0
  %489 = vmatpush1.bf16.msra.mxu0 0
  %490 = vmatprep.subr.bf16.mxu0 0
  %491 = vmatpush1.bf16.msra.mxu0 0
  %492 = vmatprep.subr.bf16.mxu0 0
  %493 = vmatpush1.bf16.msra.mxu0 0
  %494 = vmatprep.subr.bf16.mxu0 0
  %495 = vmatpush1.bf16.msra.mxu0 0
  %496 = vmatprep.subr.bf16.mxu0 0
  %497 = vmatpush1.bf16.msra.mxu0 0
  %498 = vmatprep.subr.bf16.mxu0 0
  %499 = vmatpush1.bf16.msra.mxu0 0
  %500 = vmatprep.subr.bf16.mxu0 0
  %501 = vmatpush1.bf16.msra.mxu0 0
  %502 = vmatprep.subr.bf16.mxu0 0
  %503 = vmatpush1.bf16.msra.mxu0 0
  %504 = vmatprep.subr.bf16.mxu0 0
  %505 = vmatpush1.bf16.msra.mxu0 0
  %506 = vmatprep.subr.bf16.mxu0 0
  %507 = vmatpush1.bf16.msra.mxu0 0
  %508 = vmatprep.subr.bf16.mxu0 0
  %509 = vmatpush1.bf16.msra.mxu0 0
  %510 = vmatprep.subr.bf16.mxu0 0
  %511 = vmatpush1.bf16.msra.mxu0 0
  %512 = vmatprep.mubr.bf16.mxu0 0
  %513 = vmatmul.mubr.bf16.gmra.mrb[0].mxu0 %v377
  %v514 = vpop.f32.mrb[0].mxu0
  %v515 = vadd.f32 %v466, %v514
  %v516 = vpop.f32.mrb[0].mxu0
  %v517 = vpop.f32.mrb[0].mxu0
  %v518 = vadd.f32 %v469, %v517
  %v519 = vpop.f32.mrb[0].mxu0
  %520 = vmatprep.mubr.bf16.mxu0 0
  %521 = vmatmul.mubr.bf16.gmra.mrb[0].mxu0 %v380
  %v522 = vpop.f32.mrb[0].mxu0
  %v523 = vadd.f32 %v474, %v522
  %v524 = vpop.f32.mrb[0].mxu0
  %v525 = vpop.f32.mrb[0].mxu0
  %v526 = vadd.f32 %v477, %v525
  %v527 = vpop.f32.mrb[0].mxu0
  %528 = vdwg.mxu0
  %v529 = vld [vmem:[%s3] sm:$0xff]
  %v530 = vld [vmem:[%s3 + $0x8] sm:$0xff]
  %v531 = vld [vmem:[%s3 + $0x10] sm:$0xff]
  %v532 = vld [vmem:[%s3 + $0x18] sm:$0xff]
  %v533 = vadd.f32 %v515, %v529
  %v534 = vadd.f32 %v518, %v530
  %v535 = vadd.f32 %v523, %v531
  %v536 = vadd.f32 %v526, %v532
  %v537 = vmax.f32 %v533, 0.0
  %v538 = vmax.f32 %v534, 0.0
  %v539 = vmax.f32 %v535, 0.0
  %v540 = vmax.f32 %v536, 0.0
  %541 = vst.msk [vmem:[%s4] sm:$0xff] %vm375, %v537
  %542 = vst.msk [vmem:[%s4 + $0x8] sm:$0xff] %vm375, %v538
  %543 = vst.msk [vmem:[%s4 + $0x10] sm:$0xff] %vm375, %v539
  %544 = vst.msk [vmem:[%s4 + $0x18] sm:$0xff] %vm375, %v540
  // Predicated region
  $region18: #{resnet_autoencoder.12} parent=0 // pred_check
    _
  $region19: #{resnet_autoencoder.12} parent=0 // pred_check_branch
    %546 = sbr.rel (0) target = $region21
  $region20: #{resnet_autoencoder.12} parent=0 // pred_region
    _
  $region21: #{resnet_autoencoder.12} parent=0 // pred_fallthru
    _
  // Predicated region
  $region22: #{resnet_autoencoder.12} parent=0 // pred_check
    _
  $region23: #{resnet_autoencoder.12} parent=0 // pred_check_branch
    %548 = sbr.rel (0) target = $region25
  $region24: #{resnet_autoencoder.12} parent=0 // pred_region
    _
  $region25: #{resnet_autoencoder.12} parent=0 // pred_fallthru
    _

// kernel: resnet_autoencoder.13
$region0: #{resnet_autoencoder.13}
  #allocation0 [shape = 'u32[]', space=smem, size = 0x4, offset = 0x4, fixed_abs, tag = 'smem constant byte address 0x4 - core index']
  #allocation1 [shape = 'u32[144,128]{1,0:T(1,128)}', space=vmem, size = 0x12000, scoped, tag = 'internal scratch']
  %s0 = inlined_call_operand.vmem [shape: bf16[128,576], index: 0, kind: input, shape index: {}]
  %s1 = inlined_call_operand.vmem [shape: bf16[576,32], index: 1, kind: input, shape index: {}]
  %s2 = inlined_call_operand.vmem [shape: f32[1,32], index: 2, kind: input, shape index: {}]
  %s3 = inlined_call_operand.vmem [shape: f32[128,32], index: 3, kind: output, shape index: {}]
  %s4 = sld [smem:[#allocation0]]
  $region22: #{resnet_autoencoder.13} parent=0
    _
  %s6 = ssub.s32 1, %s4
  %s7 = scalar_select 0, %s6, %s4
  // Predicated region
  $region2: #{resnet_autoencoder.13} parent=0 // pred_check
    _
  $region3: #{resnet_autoencoder.13} parent=0 // pred_check_branch
    %9 = sbr.rel (0) target = $region5
  $region4: #{resnet_autoencoder.13} parent=0 // pred_region
    _
  $region5: #{resnet_autoencoder.13} parent=0 // pred_fallthru
    _
  // Predicated region
  $region6: #{resnet_autoencoder.13} parent=0 // pred_check
    _
  $region7: #{resnet_autoencoder.13} parent=0 // pred_check_branch
    %11 = sbr.rel (0) target = $region9
  $region8: #{resnet_autoencoder.13} parent=0 // pred_region
    _
  $region9: #{resnet_autoencoder.13} parent=0 // pred_fallthru
    _
  // Predicated region
  $region10: #{resnet_autoencoder.13} parent=0 // pred_check
    _
  $region11: #{resnet_autoencoder.13} parent=0 // pred_check_branch
    %13 = sbr.rel (0) target = $region13
  $region12: #{resnet_autoencoder.13} parent=0 // pred_region
    _
  $region13: #{resnet_autoencoder.13} parent=0 // pred_fallthru
    _
  %v15 = vld [vmem:[%s0] sm:$0xff]
  %v16 = vld [vmem:[%s0 + $0x8] sm:$0xff]
  %v17 = vld [vmem:[%s0 + $0x10] sm:$0xf]
  %v18 = vld [vmem:[%s0 + $0x14] sm:$0xff]
  %v19 = vld [vmem:[%s0 + $0x1c] sm:$0xff]
  %v20 = vld [vmem:[%s0 + $0x24] sm:$0xf]
  %v21 = vld [vmem:[%s0 + $0x28] sm:$0xff]
  %v22 = vld [vmem:[%s0 + $0x30] sm:$0xff]
  %v23 = vld [vmem:[%s0 + $0x38] sm:$0xf]
  %v24 = vld [vmem:[%s0 + $0x3c] sm:$0xff]
  %v25 = vld [vmem:[%s0 + $0x44] sm:$0xff]
  %v26 = vld [vmem:[%s0 + $0x4c] sm:$0xf]
  %v27 = vld [vmem:[%s0 + $0x50] sm:$0xff]
  %v28 = vld [vmem:[%s0 + $0x58] sm:$0xff]
  %v29 = vld [vmem:[%s0 + $0x60] sm:$0xf]
  %v30 = vld [vmem:[%s0 + $0x64] sm:$0xff]
  %v31 = vld [vmem:[%s0 + $0x6c] sm:$0xff]
  %v32 = vld [vmem:[%s0 + $0x74] sm:$0xf]
  %v33 = vld [vmem:[%s0 + $0x78] sm:$0xff]
  %v34 = vld [vmem:[%s0 + $0x80] sm:$0xff]
  %v35 = vld [vmem:[%s0 + $0x88] sm:$0xf]
  %v36 = vld [vmem:[%s0 + $0x8c] sm:$0xff]
  %v37 = vld [vmem:[%s0 + $0x94] sm:$0xff]
  %v38 = vld [vmem:[%s0 + $0x9c] sm:$0xf]
  %v39 = vld [vmem:[%s0 + $0xa0] sm:$0xff]
  %v40 = vld [vmem:[%s0 + $0xa8] sm:$0xff]
  %v41 = vld [vmem:[%s0 + $0xb0] sm:$0xf]
  %v42 = vld [vmem:[%s0 + $0xb4] sm:$0xff]
  %v43 = vld [vmem:[%s0 + $0xbc] sm:$0xff]
  %v44 = vld [vmem:[%s0 + $0xc4] sm:$0xf]
  %v45 = vld [vmem:[%s0 + $0xc8] sm:$0xff]
  %v46 = vld [vmem:[%s0 + $0xd0] sm:$0xff]
  %v47 = vld [vmem:[%s0 + $0xd8] sm:$0xf]
  %v48 = vld [vmem:[%s0 + $0xdc] sm:$0xff]
  %v49 = vld [vmem:[%s0 + $0xe4] sm:$0xff]
  %v50 = vld [vmem:[%s0 + $0xec] sm:$0xf]
  %v51 = vld [vmem:[%s0 + $0xf0] sm:$0xff]
  %v52 = vld [vmem:[%s0 + $0xf8] sm:$0xff]
  %v53 = vld [vmem:[%s0 + $0x100] sm:$0xf]
  %v54 = vld [vmem:[%s0 + $0x104] sm:$0xff]
  %v55 = vld [vmem:[%s0 + $0x10c] sm:$0xff]
  %v56 = vld [vmem:[%s0 + $0x114] sm:$0xf]
  %v57 = vld [vmem:[%s0 + $0x118] sm:$0xff]
  %v58 = vld [vmem:[%s0 + $0x120] sm:$0xff]
  %v59 = vld [vmem:[%s0 + $0x128] sm:$0xf]
  %v60 = vld [vmem:[%s0 + $0x12c] sm:$0xff]
  %v61 = vld [vmem:[%s0 + $0x134] sm:$0xff]
  %v62 = vld [vmem:[%s0 + $0x13c] sm:$0xf]
  %v63 = vld [vmem:[%s1] sm:$0xf]
  %v64 = vld [vmem:[%s1 + $0x4] sm:$0xf]
  %v65 = vld [vmem:[%s1 + $0x8] sm:$0xf]
  %v66 = vld [vmem:[%s1 + $0xc] sm:$0xf]
  %v67 = vld [vmem:[%s1 + $0x10] sm:$0xf]
  %v68 = vld [vmem:[%s1 + $0x14] sm:$0xf]
  %v69 = vld [vmem:[%s1 + $0x18] sm:$0xf]
  %v70 = vld [vmem:[%s1 + $0x1c] sm:$0xf]
  %v71 = vld [vmem:[%s1 + $0x20] sm:$0xf]
  %v72 = vld [vmem:[%s1 + $0x24] sm:$0xf]
  %v73 = vld [vmem:[%s1 + $0x28] sm:$0xf]
  %v74 = vld [vmem:[%s1 + $0x2c] sm:$0xf]
  %v75 = vld [vmem:[%s1 + $0x30] sm:$0xf]
  %v76 = vld [vmem:[%s1 + $0x34] sm:$0xf]
  %v77 = vld [vmem:[%s1 + $0x38] sm:$0xf]
  %v78 = vld [vmem:[%s1 + $0x3c] sm:$0xf]
  %v79 = vld [vmem:[%s1 + $0x40] sm:$0xf]
  %v80 = vld [vmem:[%s1 + $0x44] sm:$0xf]
  %v81 = vld [vmem:[%s1 + $0x48] sm:$0xf]
  %v82 = vld [vmem:[%s1 + $0x4c] sm:$0xf]
  %v83 = vld [vmem:[%s1 + $0x50] sm:$0xf]
  %v84 = vld [vmem:[%s1 + $0x54] sm:$0xf]
  %v85 = vld [vmem:[%s1 + $0x58] sm:$0xf]
  %v86 = vld [vmem:[%s1 + $0x5c] sm:$0xf]
  %v87 = vld [vmem:[%s1 + $0x60] sm:$0xf]
  %v88 = vld [vmem:[%s1 + $0x64] sm:$0xf]
  %v89 = vld [vmem:[%s1 + $0x68] sm:$0xf]
  %v90 = vld [vmem:[%s1 + $0x6c] sm:$0xf]
  %v91 = vld [vmem:[%s1 + $0x70] sm:$0xf]
  %v92 = vld [vmem:[%s1 + $0x74] sm:$0xf]
  %v93 = vld [vmem:[%s1 + $0x78] sm:$0xf]
  %v94 = vld [vmem:[%s1 + $0x7c] sm:$0xf]
  %v95 = vld [vmem:[%s1 + $0x80] sm:$0xf]
  %v96 = vld [vmem:[%s1 + $0x84] sm:$0xf]
  %v97 = vld [vmem:[%s1 + $0x88] sm:$0xf]
  %v98 = vld [vmem:[%s1 + $0x8c] sm:$0xf]
  %v99 = vld [vmem:[%s1 + $0x90] sm:$0xf]
  %v100 = vld [vmem:[%s1 + $0x94] sm:$0xf]
  %v101 = vld [vmem:[%s1 + $0x98] sm:$0xf]
  %v102 = vld [vmem:[%s1 + $0x9c] sm:$0xf]
  %v103 = vld [vmem:[%s1 + $0xa0] sm:$0xf]
  %v104 = vld [vmem:[%s1 + $0xa4] sm:$0xf]
  %v105 = vld [vmem:[%s1 + $0xa8] sm:$0xf]
  %v106 = vld [vmem:[%s1 + $0xac] sm:$0xf]
  %v107 = vld [vmem:[%s1 + $0xb0] sm:$0xf]
  %v108 = vld [vmem:[%s1 + $0xb4] sm:$0xf]
  %v109 = vld [vmem:[%s1 + $0xb8] sm:$0xf]
  %v110 = vld [vmem:[%s1 + $0xbc] sm:$0xf]
  %v111 = vld [vmem:[%s1 + $0xc0] sm:$0xf]
  %v112 = vld [vmem:[%s1 + $0xc4] sm:$0xf]
  %v113 = vld [vmem:[%s1 + $0xc8] sm:$0xf]
  %v114 = vld [vmem:[%s1 + $0xcc] sm:$0xf]
  %v115 = vld [vmem:[%s1 + $0xd0] sm:$0xf]
  %v116 = vld [vmem:[%s1 + $0xd4] sm:$0xf]
  %v117 = vld [vmem:[%s1 + $0xd8] sm:$0xf]
  %v118 = vld [vmem:[%s1 + $0xdc] sm:$0xf]
  %v119 = vld [vmem:[%s1 + $0xe0] sm:$0xf]
  %v120 = vld [vmem:[%s1 + $0xe4] sm:$0xf]
  %v121 = vld [vmem:[%s1 + $0xe8] sm:$0xf]
  %v122 = vld [vmem:[%s1 + $0xec] sm:$0xf]
  %v123 = vld [vmem:[%s1 + $0xf0] sm:$0xf]
  %v124 = vld [vmem:[%s1 + $0xf4] sm:$0xf]
  %v125 = vld [vmem:[%s1 + $0xf8] sm:$0xf]
  %v126 = vld [vmem:[%s1 + $0xfc] sm:$0xf]
  %v127 = vld [vmem:[%s1 + $0x100] sm:$0xf]
  %v128 = vld [vmem:[%s1 + $0x104] sm:$0xf]
  %v129 = vld [vmem:[%s1 + $0x108] sm:$0xf]
  %v130 = vld [vmem:[%s1 + $0x10c] sm:$0xf]
  %v131 = vld [vmem:[%s1 + $0x110] sm:$0xf]
  %v132 = vld [vmem:[%s1 + $0x114] sm:$0xf]
  %v133 = vld [vmem:[%s1 + $0x118] sm:$0xf]
  %v134 = vld [vmem:[%s1 + $0x11c] sm:$0xf]
  %v135 = vld [vmem:[%s2] sm:$0x1]
  %v137 = vlaneseq
  %v138 = vshrl.u32 %v137, 7
  %v139 = vsub.s32 0, %v138
  %v140 = vrot.slane %v135, %v139
  %v190 = vunpack.c.l.b16 %v15
  %v191 = vunpack.c.h.b16 %v15
  %v192 = vunpack.c.l.b16 %v16
  %v193 = vunpack.c.h.b16 %v16
  %v194 = vunpack.c.l.b16 %v17
  %v195 = vunpack.c.l.b16 %v18
  %v196 = vunpack.c.h.b16 %v18
  %v197 = vunpack.c.l.b16 %v19
  %v198 = vunpack.c.h.b16 %v19
  %v199 = vunpack.c.l.b16 %v20
  %v200 = vunpack.c.l.b16 %v21
  %v201 = vunpack.c.h.b16 %v21
  %v202 = vunpack.c.l.b16 %v22
  %v203 = vunpack.c.h.b16 %v22
  %v204 = vunpack.c.l.b16 %v23
  %v205 = vunpack.c.l.b16 %v24
  %v206 = vunpack.c.h.b16 %v24
  %v207 = vunpack.c.l.b16 %v25
  %v208 = vunpack.c.h.b16 %v25
  %v209 = vunpack.c.l.b16 %v26
  %v210 = vunpack.c.l.b16 %v27
  %v211 = vunpack.c.h.b16 %v27
  %v212 = vunpack.c.l.b16 %v28
  %v213 = vunpack.c.h.b16 %v28
  %v214 = vunpack.c.l.b16 %v29
  %v215 = vunpack.c.l.b16 %v30
  %v216 = vunpack.c.h.b16 %v30
  %v217 = vunpack.c.l.b16 %v31
  %v218 = vunpack.c.h.b16 %v31
  %v219 = vunpack.c.l.b16 %v32
  %v220 = vunpack.c.l.b16 %v33
  %v221 = vunpack.c.h.b16 %v33
  %v222 = vunpack.c.l.b16 %v34
  %v223 = vunpack.c.h.b16 %v34
  %v224 = vunpack.c.l.b16 %v35
  %v225 = vunpack.c.l.b16 %v36
  %v226 = vunpack.c.h.b16 %v36
  %v227 = vunpack.c.l.b16 %v37
  %v228 = vunpack.c.h.b16 %v37
  %v229 = vunpack.c.l.b16 %v38
  %v230 = vunpack.c.l.b16 %v39
  %v231 = vunpack.c.h.b16 %v39
  %v232 = vunpack.c.l.b16 %v40
  %v233 = vunpack.c.h.b16 %v40
  %v234 = vunpack.c.l.b16 %v41
  %v235 = vunpack.c.l.b16 %v42
  %v236 = vunpack.c.h.b16 %v42
  %v237 = vunpack.c.l.b16 %v43
  %v238 = vunpack.c.h.b16 %v43
  %v239 = vunpack.c.l.b16 %v44
  %v240 = vunpack.c.l.b16 %v45
  %v241 = vunpack.c.h.b16 %v45
  %v242 = vunpack.c.l.b16 %v46
  %v243 = vunpack.c.h.b16 %v46
  %v244 = vunpack.c.l.b16 %v47
  %v245 = vunpack.c.l.b16 %v48
  %v246 = vunpack.c.h.b16 %v48
  %v247 = vunpack.c.l.b16 %v49
  %v248 = vunpack.c.h.b16 %v49
  %v249 = vunpack.c.l.b16 %v50
  %v250 = vunpack.c.l.b16 %v51
  %v251 = vunpack.c.h.b16 %v51
  %v252 = vunpack.c.l.b16 %v52
  %v253 = vunpack.c.h.b16 %v52
  %v254 = vunpack.c.l.b16 %v53
  %v255 = vunpack.c.l.b16 %v54
  %v256 = vunpack.c.h.b16 %v54
  %v257 = vunpack.c.l.b16 %v55
  %v258 = vunpack.c.h.b16 %v55
  %v259 = vunpack.c.l.b16 %v56
  %v260 = vunpack.c.l.b16 %v57
  %v261 = vunpack.c.h.b16 %v57
  %v262 = vunpack.c.l.b16 %v58
  %v263 = vunpack.c.h.b16 %v58
  %v264 = vunpack.c.l.b16 %v59
  %v265 = vunpack.c.l.b16 %v60
  %v266 = vunpack.c.h.b16 %v60
  %v267 = vunpack.c.l.b16 %v61
  %v268 = vunpack.c.h.b16 %v61
  %v269 = vunpack.c.l.b16 %v62
  %v270 = vpack.c.b16 %v195, %v190
  %v271 = vpack.c.b16 %v196, %v191
  %v272 = vpack.c.b16 %v197, %v192
  %v273 = vpack.c.b16 %v198, %v193
  %v274 = vpack.c.b16 %v199, %v194
  %v275 = vpack.c.b16 %v205, %v200
  %v276 = vpack.c.b16 %v206, %v201
  %v277 = vpack.c.b16 %v207, %v202
  %v278 = vpack.c.b16 %v208, %v203
  %v279 = vpack.c.b16 %v209, %v204
  %v280 = vpack.c.b16 %v215, %v210
  %v281 = vpack.c.b16 %v216, %v211
  %v282 = vpack.c.b16 %v217, %v212
  %v283 = vpack.c.b16 %v218, %v213
  %v284 = vpack.c.b16 %v219, %v214
  %v285 = vpack.c.b16 %v225, %v220
  %v286 = vpack.c.b16 %v226, %v221
  %v287 = vpack.c.b16 %v227, %v222
  %v288 = vpack.c.b16 %v228, %v223
  %v289 = vpack.c.b16 %v229, %v224
  %v290 = vpack.c.b16 %v235, %v230
  %v291 = vpack.c.b16 %v236, %v231
  %v292 = vpack.c.b16 %v237, %v232
  %v293 = vpack.c.b16 %v238, %v233
  %v294 = vpack.c.b16 %v239, %v234
  %v295 = vpack.c.b16 %v245, %v240
  %v296 = vpack.c.b16 %v246, %v241
  %v297 = vpack.c.b16 %v247, %v242
  %v298 = vpack.c.b16 %v248, %v243
  %v299 = vpack.c.b16 %v249, %v244
  %v300 = vpack.c.b16 %v255, %v250
  %v301 = vpack.c.b16 %v256, %v251
  %v302 = vpack.c.b16 %v257, %v252
  %v303 = vpack.c.b16 %v258, %v253
  %v304 = vpack.c.b16 %v259, %v254
  %v305 = vpack.c.b16 %v265, %v260
  %v306 = vpack.c.b16 %v266, %v261
  %v307 = vpack.c.b16 %v267, %v262
  %v308 = vpack.c.b16 %v268, %v263
  %v309 = vpack.c.b16 %v269, %v264
  %v414 = vunpack.c.l.b16 %v63
  %v415 = vunpack.c.l.b16 %v64
  %v416 = vunpack.c.l.b16 %v65
  %v417 = vunpack.c.l.b16 %v66
  %v418 = vunpack.c.l.b16 %v67
  %v419 = vunpack.c.l.b16 %v68
  %v420 = vunpack.c.l.b16 %v69
  %v421 = vunpack.c.l.b16 %v70
  %v422 = vunpack.c.l.b16 %v71
  %v423 = vunpack.c.l.b16 %v72
  %v424 = vunpack.c.l.b16 %v73
  %v425 = vunpack.c.l.b16 %v74
  %v426 = vunpack.c.l.b16 %v75
  %v427 = vunpack.c.l.b16 %v76
  %v428 = vunpack.c.l.b16 %v77
  %v429 = vunpack.c.l.b16 %v78
  %v430 = vunpack.c.l.b16 %v79
  %v431 = vunpack.c.l.b16 %v80
  %v432 = vunpack.c.l.b16 %v81
  %v433 = vunpack.c.l.b16 %v82
  %v434 = vunpack.c.l.b16 %v83
  %v435 = vunpack.c.l.b16 %v84
  %v436 = vunpack.c.l.b16 %v85
  %v437 = vunpack.c.l.b16 %v86
  %v438 = vunpack.c.l.b16 %v87
  %v439 = vunpack.c.l.b16 %v88
  %v440 = vunpack.c.l.b16 %v89
  %v441 = vunpack.c.l.b16 %v90
  %v442 = vunpack.c.l.b16 %v91
  %v443 = vunpack.c.l.b16 %v92
  %v444 = vunpack.c.l.b16 %v93
  %v445 = vunpack.c.l.b16 %v94
  %v446 = vunpack.c.l.b16 %v95
  %v447 = vunpack.c.l.b16 %v96
  %v448 = vunpack.c.l.b16 %v97
  %v449 = vunpack.c.l.b16 %v98
  %v450 = vunpack.c.l.b16 %v99
  %v451 = vunpack.c.l.b16 %v100
  %v452 = vunpack.c.l.b16 %v101
  %v453 = vunpack.c.l.b16 %v102
  %v454 = vunpack.c.l.b16 %v103
  %v455 = vunpack.c.l.b16 %v104
  %v456 = vunpack.c.l.b16 %v105
  %v457 = vunpack.c.l.b16 %v106
  %v458 = vunpack.c.l.b16 %v107
  %v459 = vunpack.c.l.b16 %v108
  %v460 = vunpack.c.l.b16 %v109
  %v461 = vunpack.c.l.b16 %v110
  %v462 = vunpack.c.l.b16 %v111
  %v463 = vunpack.c.l.b16 %v112
  %v464 = vunpack.c.l.b16 %v113
  %v465 = vunpack.c.l.b16 %v114
  %v466 = vunpack.c.l.b16 %v115
  %v467 = vunpack.c.l.b16 %v116
  %v468 = vunpack.c.l.b16 %v117
  %v469 = vunpack.c.l.b16 %v118
  %v470 = vunpack.c.l.b16 %v119
  %v471 = vunpack.c.l.b16 %v120
  %v472 = vunpack.c.l.b16 %v121
  %v473 = vunpack.c.l.b16 %v122
  %v474 = vunpack.c.l.b16 %v123
  %v475 = vunpack.c.l.b16 %v124
  %v476 = vunpack.c.l.b16 %v125
  %v477 = vunpack.c.l.b16 %v126
  %v478 = vunpack.c.l.b16 %v127
  %v479 = vunpack.c.l.b16 %v128
  %v480 = vunpack.c.l.b16 %v129
  %v481 = vunpack.c.l.b16 %v130
  %v482 = vunpack.c.l.b16 %v131
  %v483 = vunpack.c.l.b16 %v132
  %v484 = vunpack.c.l.b16 %v133
  %v485 = vunpack.c.l.b16 %v134
  %v486 = vpack.c.b16 %v415, %v414
  %v487 = vpack.c.b16 %v417, %v416
  %v488 = vpack.c.b16 %v419, %v418
  %v489 = vpack.c.b16 %v421, %v420
  %v490 = vpack.c.b16 %v423, %v422
  %v491 = vpack.c.b16 %v425, %v424
  %v492 = vpack.c.b16 %v427, %v426
  %v493 = vpack.c.b16 %v429, %v428
  %v494 = vpack.c.b16 %v431, %v430
  %v495 = vpack.c.b16 %v433, %v432
  %v496 = vpack.c.b16 %v435, %v434
  %v497 = vpack.c.b16 %v437, %v436
  %v498 = vpack.c.b16 %v439, %v438
  %v499 = vpack.c.b16 %v441, %v440
  %v500 = vpack.c.b16 %v443, %v442
  %v501 = vpack.c.b16 %v445, %v444
  %v502 = vpack.c.b16 %v447, %v446
  %v503 = vpack.c.b16 %v449, %v448
  %v504 = vpack.c.b16 %v451, %v450
  %v505 = vpack.c.b16 %v453, %v452
  %v506 = vpack.c.b16 %v455, %v454
  %v507 = vpack.c.b16 %v457, %v456
  %v508 = vpack.c.b16 %v459, %v458
  %v509 = vpack.c.b16 %v461, %v460
  %v510 = vpack.c.b16 %v463, %v462
  %v511 = vpack.c.b16 %v465, %v464
  %v512 = vpack.c.b16 %v467, %v466
  %v513 = vpack.c.b16 %v469, %v468
  %v514 = vpack.c.b16 %v471, %v470
  %v515 = vpack.c.b16 %v473, %v472
  %v516 = vpack.c.b16 %v475, %v474
  %v517 = vpack.c.b16 %v477, %v476
  %v518 = vpack.c.b16 %v479, %v478
  %v519 = vpack.c.b16 %v481, %v480
  %v520 = vpack.c.b16 %v483, %v482
  %v521 = vpack.c.b16 %v485, %v484
  %vm558 = vcmask 523264
  %v560 = vsel %vm558, %v274, 0
  %v563 = vsel %vm558, %v279, 0
  %v566 = vsel %vm558, %v284, 0
  %v569 = vsel %vm558, %v289, 0
  %v572 = vsel %vm558, %v294, 0
  %v575 = vsel %vm558, %v299, 0
  %v578 = vsel %vm558, %v304, 0
  %v581 = vsel %vm558, %v309, 0
  %583 = vmatprep.subr.bf16.mxu0 0
  %584 = vmatpush1.bf16.msra.mxu0 %v486
  %585 = vmatprep.subr.bf16.mxu0 0
  %586 = vmatpush1.bf16.msra.mxu0 %v487
  %587 = vmatprep.subr.bf16.mxu0 0
  %588 = vmatpush1.bf16.msra.mxu0 %v488
  %589 = vmatprep.subr.bf16.mxu0 0
  %590 = vmatpush1.bf16.msra.mxu0 %v489
  %591 = vmatprep.subr.bf16.mxu0 0
  %592 = vmatpush1.bf16.msra.mxu0 %v490
  %593 = vmatprep.subr.bf16.mxu0 0
  %594 = vmatpush1.bf16.msra.mxu0 %v491
  %595 = vmatprep.subr.bf16.mxu0 0
  %596 = vmatpush1.bf16.msra.mxu0 %v492
  %597 = vmatprep.subr.bf16.mxu0 0
  %598 = vmatpush1.bf16.msra.mxu0 %v493
  %599 = vmatprep.subr.bf16.mxu0 0
  %600 = vmatpush1.bf16.msra.mxu0 %v494
  %601 = vmatprep.subr.bf16.mxu0 0
  %602 = vmatpush1.bf16.msra.mxu0 %v495
  %603 = vmatprep.subr.bf16.mxu0 0
  %604 = vmatpush1.bf16.msra.mxu0 %v496
  %605 = vmatprep.subr.bf16.mxu0 0
  %606 = vmatpush1.bf16.msra.mxu0 %v497
  %607 = vmatprep.subr.bf16.mxu0 0
  %608 = vmatpush1.bf16.msra.mxu0 %v498
  %609 = vmatprep.subr.bf16.mxu0 0
  %610 = vmatpush1.bf16.msra.mxu0 %v499
  %611 = vmatprep.subr.bf16.mxu0 0
  %612 = vmatpush1.bf16.msra.mxu0 %v500
  %613 = vmatprep.subr.bf16.mxu0 0
  %614 = vmatpush1.bf16.msra.mxu0 %v501
  %615 = vmatprep.mubr.bf16.mxu0 %v271
  %616 = vmatmul.mubr.bf16.gmra.mrb[0].mxu0 %v270
  %v617 = vpop.f32.mrb[0].mxu0
  %v618 = vadd.f32 %v140, %v617
  %v619 = vpop.f32.mrb[0].mxu0
  %v620 = vpop.f32.mrb[0].mxu0
  %v621 = vadd.f32 %v140, %v620
  %v622 = vpop.f32.mrb[0].mxu0
  %623 = vmatprep.mubr.bf16.mxu0 %v276
  %624 = vmatmul.mubr.bf16.gmra.mrb[0].mxu0 %v275
  %v625 = vpop.f32.mrb[0].mxu0
  %v626 = vadd.f32 %v140, %v625
  %v627 = vpop.f32.mrb[0].mxu0
  %v628 = vpop.f32.mrb[0].mxu0
  %v629 = vadd.f32 %v140, %v628
  %v630 = vpop.f32.mrb[0].mxu0
  %631 = vmatprep.mubr.bf16.mxu0 %v281
  %632 = vmatmul.mubr.bf16.gmra.mrb[0].mxu0 %v280
  %v633 = vpop.f32.mrb[0].mxu0
  %v634 = vadd.f32 %v140, %v633
  %v635 = vpop.f32.mrb[0].mxu0
  %v636 = vpop.f32.mrb[0].mxu0
  %v637 = vadd.f32 %v140, %v636
  %v638 = vpop.f32.mrb[0].mxu0
  %639 = vmatprep.mubr.bf16.mxu0 %v286
  %640 = vmatmul.mubr.bf16.gmra.mrb[0].mxu0 %v285
  %v641 = vpop.f32.mrb[0].mxu0
  %v642 = vadd.f32 %v140, %v641
  %v643 = vpop.f32.mrb[0].mxu0
  %v644 = vpop.f32.mrb[0].mxu0
  %v645 = vadd.f32 %v140, %v644
  %v646 = vpop.f32.mrb[0].mxu0
  %647 = vmatprep.mubr.bf16.mxu0 %v291
  %648 = vmatmul.mubr.bf16.gmra.mrb[0].mxu0 %v290
  %v649 = vpop.f32.mrb[0].mxu0
  %v650 = vadd.f32 %v140, %v649
  %v651 = vpop.f32.mrb[0].mxu0
  %v652 = vpop.f32.mrb[0].mxu0
  %v653 = vadd.f32 %v140, %v652
  %v654 = vpop.f32.mrb[0].mxu0
  %655 = vmatprep.mubr.bf16.mxu0 %v296
  %656 = vmatmul.mubr.bf16.gmra.mrb[0].mxu0 %v295
  %v657 = vpop.f32.mrb[0].mxu0
  %v658 = vadd.f32 %v140, %v657
  %v659 = vpop.f32.mrb[0].mxu0
  %v660 = vpop.f32.mrb[0].mxu0
  %v661 = vadd.f32 %v140, %v660
  %v662 = vpop.f32.mrb[0].mxu0
  %663 = vmatprep.mubr.bf16.mxu0 %v301
  %664 = vmatmul.mubr.bf16.gmra.mrb[0].mxu0 %v300
  %v665 = vpop.f32.mrb[0].mxu0
  %v666 = vadd.f32 %v140, %v665
  %v667 = vpop.f32.mrb[0].mxu0
  %v668 = vpop.f32.mrb[0].mxu0
  %v669 = vadd.f32 %v140, %v668
  %v670 = vpop.f32.mrb[0].mxu0
  %671 = vmatprep.mubr.bf16.mxu0 %v306
  %672 = vmatmul.mubr.bf16.gmra.mrb[0].mxu0 %v305
  %v673 = vpop.f32.mrb[0].mxu0
  %v674 = vadd.f32 %v140, %v673
  %v675 = vpop.f32.mrb[0].mxu0
  %v676 = vpop.f32.mrb[0].mxu0
  %v677 = vadd.f32 %v140, %v676
  %v678 = vpop.f32.mrb[0].mxu0
  %679 = vdwg.mxu0
  %680 = vmatprep.subr.bf16.mxu0 0
  %681 = vmatpush1.bf16.msra.mxu0 %v502
  %682 = vmatprep.subr.bf16.mxu0 0
  %683 = vmatpush1.bf16.msra.mxu0 %v503
  %684 = vmatprep.subr.bf16.mxu0 0
  %685 = vmatpush1.bf16.msra.mxu0 %v504
  %686 = vmatprep.subr.bf16.mxu0 0
  %687 = vmatpush1.bf16.msra.mxu0 %v505
  %688 = vmatprep.subr.bf16.mxu0 0
  %689 = vmatpush1.bf16.msra.mxu0 %v506
  %690 = vmatprep.subr.bf16.mxu0 0
  %691 = vmatpush1.bf16.msra.mxu0 %v507
  %692 = vmatprep.subr.bf16.mxu0 0
  %693 = vmatpush1.bf16.msra.mxu0 %v508
  %694 = vmatprep.subr.bf16.mxu0 0
  %695 = vmatpush1.bf16.msra.mxu0 %v509
  %696 = vmatprep.subr.bf16.mxu0 0
  %697 = vmatpush1.bf16.msra.mxu0 %v510
  %698 = vmatprep.subr.bf16.mxu0 0
  %699 = vmatpush1.bf16.msra.mxu0 %v511
  %700 = vmatprep.subr.bf16.mxu0 0
  %701 = vmatpush1.bf16.msra.mxu0 %v512
  %702 = vmatprep.subr.bf16.mxu0 0
  %703 = vmatpush1.bf16.msra.mxu0 %v513
  %704 = vmatprep.subr.bf16.mxu0 0
  %705 = vmatpush1.bf16.msra.mxu0 %v514
  %706 = vmatprep.subr.bf16.mxu0 0
  %707 = vmatpush1.bf16.msra.mxu0 %v515
  %708 = vmatprep.subr.bf16.mxu0 0
  %709 = vmatpush1.bf16.msra.mxu0 %v516
  %710 = vmatprep.subr.bf16.mxu0 0
  %711 = vmatpush1.bf16.msra.mxu0 %v517
  %712 = vmatprep.mubr.bf16.mxu0 %v273
  %713 = vmatmul.mubr.bf16.gmra.mrb[0].mxu0 %v272
  %v714 = vpop.f32.mrb[0].mxu0
  %v715 = vadd.f32 %v618, %v714
  %v716 = vpop.f32.mrb[0].mxu0
  %v717 = vpop.f32.mrb[0].mxu0
  %v718 = vadd.f32 %v621, %v717
  %v719 = vpop.f32.mrb[0].mxu0
  %720 = vmatprep.mubr.bf16.mxu0 %v278
  %721 = vmatmul.mubr.bf16.gmra.mrb[0].mxu0 %v277
  %v722 = vpop.f32.mrb[0].mxu0
  %v723 = vadd.f32 %v626, %v722
  %v724 = vpop.f32.mrb[0].mxu0
  %v725 = vpop.f32.mrb[0].mxu0
  %v726 = vadd.f32 %v629, %v725
  %v727 = vpop.f32.mrb[0].mxu0
  %728 = vmatprep.mubr.bf16.mxu0 %v283
  %729 = vmatmul.mubr.bf16.gmra.mrb[0].mxu0 %v282
  %v730 = vpop.f32.mrb[0].mxu0
  %v731 = vadd.f32 %v634, %v730
  %v732 = vpop.f32.mrb[0].mxu0
  %v733 = vpop.f32.mrb[0].mxu0
  %v734 = vadd.f32 %v637, %v733
  %v735 = vpop.f32.mrb[0].mxu0
  %736 = vmatprep.mubr.bf16.mxu0 %v288
  %737 = vmatmul.mubr.bf16.gmra.mrb[0].mxu0 %v287
  %v738 = vpop.f32.mrb[0].mxu0
  %v739 = vadd.f32 %v642, %v738
  %v740 = vpop.f32.mrb[0].mxu0
  %v741 = vpop.f32.mrb[0].mxu0
  %v742 = vadd.f32 %v645, %v741
  %v743 = vpop.f32.mrb[0].mxu0
  %744 = vmatprep.mubr.bf16.mxu0 %v293
  %745 = vmatmul.mubr.bf16.gmra.mrb[0].mxu0 %v292
  %v746 = vpop.f32.mrb[0].mxu0
  %v747 = vadd.f32 %v650, %v746
  %v748 = vpop.f32.mrb[0].mxu0
  %v749 = vpop.f32.mrb[0].mxu0
  %v750 = vadd.f32 %v653, %v749
  %v751 = vpop.f32.mrb[0].mxu0
  %752 = vmatprep.mubr.bf16.mxu0 %v298
  %753 = vmatmul.mubr.bf16.gmra.mrb[0].mxu0 %v297
  %v754 = vpop.f32.mrb[0].mxu0
  %v755 = vadd.f32 %v658, %v754
  %v756 = vpop.f32.mrb[0].mxu0
  %v757 = vpop.f32.mrb[0].mxu0
  %v758 = vadd.f32 %v661, %v757
  %v759 = vpop.f32.mrb[0].mxu0
  %760 = vmatprep.mubr.bf16.mxu0 %v303
  %761 = vmatmul.mubr.bf16.gmra.mrb[0].mxu0 %v302
  %v762 = vpop.f32.mrb[0].mxu0
  %v763 = vadd.f32 %v666, %v762
  %v764 = vpop.f32.mrb[0].mxu0
  %v765 = vpop.f32.mrb[0].mxu0
  %v766 = vadd.f32 %v669, %v765
  %v767 = vpop.f32.mrb[0].mxu0
  %768 = vmatprep.mubr.bf16.mxu0 %v308
  %769 = vmatmul.mubr.bf16.gmra.mrb[0].mxu0 %v307
  %v770 = vpop.f32.mrb[0].mxu0
  %v771 = vadd.f32 %v674, %v770
  %v772 = vpop.f32.mrb[0].mxu0
  %v773 = vpop.f32.mrb[0].mxu0
  %v774 = vadd.f32 %v677, %v773
  %v775 = vpop.f32.mrb[0].mxu0
  %776 = vdwg.mxu0
  %777 = vmatprep.subr.bf16.mxu0 0
  %778 = vmatpush1.bf16.msra.mxu0 %v518
  %779 = vmatprep.subr.bf16.mxu0 0
  %780 = vmatpush1.bf16.msra.mxu0 %v519
  %781 = vmatprep.subr.bf16.mxu0 0
  %782 = vmatpush1.bf16.msra.mxu0 %v520
  %783 = vmatprep.subr.bf16.mxu0 0
  %784 = vmatpush1.bf16.msra.mxu0 %v521
  %785 = vmatprep.subr.bf16.mxu0 0
  %786 = vmatpush1.bf16.msra.mxu0 0
  %787 = vmatprep.subr.bf16.mxu0 0
  %788 = vmatpush1.bf16.msra.mxu0 0
  %789 = vmatprep.subr.bf16.mxu0 0
  %790 = vmatpush1.bf16.msra.mxu0 0
  %791 = vmatprep.subr.bf16.mxu0 0
  %792 = vmatpush1.bf16.msra.mxu0 0
  %793 = vmatprep.subr.bf16.mxu0 0
  %794 = vmatpush1.bf16.msra.mxu0 0
  %795 = vmatprep.subr.bf16.mxu0 0
  %796 = vmatpush1.bf16.msra.mxu0 0
  %797 = vmatprep.subr.bf16.mxu0 0
  %798 = vmatpush1.bf16.msra.mxu0 0
  %799 = vmatprep.subr.bf16.mxu0 0
  %800 = vmatpush1.bf16.msra.mxu0 0
  %801 = vmatprep.subr.bf16.mxu0 0
  %802 = vmatpush1.bf16.msra.mxu0 0
  %803 = vmatprep.subr.bf16.mxu0 0
  %804 = vmatpush1.bf16.msra.mxu0 0
  %805 = vmatprep.subr.bf16.mxu0 0
  %806 = vmatpush1.bf16.msra.mxu0 0
  %807 = vmatprep.subr.bf16.mxu0 0
  %808 = vmatpush1.bf16.msra.mxu0 0
  %809 = vmatprep.mubr.bf16.mxu0 0
  %810 = vmatmul.mubr.bf16.gmra.mrb[0].mxu0 %v560
  %v811 = vpop.f32.mrb[0].mxu0
  %v812 = vadd.f32 %v715, %v811
  %v813 = vpop.f32.mrb[0].mxu0
  %v814 = vpop.f32.mrb[0].mxu0
  %v815 = vadd.f32 %v718, %v814
  %v816 = vpop.f32.mrb[0].mxu0
  %817 = vmatprep.mubr.bf16.mxu0 0
  %818 = vmatmul.mubr.bf16.gmra.mrb[0].mxu0 %v563
  %v819 = vpop.f32.mrb[0].mxu0
  %v820 = vadd.f32 %v723, %v819
  %v821 = vpop.f32.mrb[0].mxu0
  %v822 = vpop.f32.mrb[0].mxu0
  %v823 = vadd.f32 %v726, %v822
  %v824 = vpop.f32.mrb[0].mxu0
  %825 = vmatprep.mubr.bf16.mxu0 0
  %826 = vmatmul.mubr.bf16.gmra.mrb[0].mxu0 %v566
  %v827 = vpop.f32.mrb[0].mxu0
  %v828 = vadd.f32 %v731, %v827
  %v829 = vpop.f32.mrb[0].mxu0
  %v830 = vpop.f32.mrb[0].mxu0
  %v831 = vadd.f32 %v734, %v830
  %v832 = vpop.f32.mrb[0].mxu0
  %833 = vmatprep.mubr.bf16.mxu0 0
  %834 = vmatmul.mubr.bf16.gmra.mrb[0].mxu0 %v569
  %v835 = vpop.f32.mrb[0].mxu0
  %v836 = vadd.f32 %v739, %v835
  %v837 = vpop.f32.mrb[0].mxu0
  %v838 = vpop.f32.mrb[0].mxu0
  %v839 = vadd.f32 %v742, %v838
  %v840 = vpop.f32.mrb[0].mxu0
  %841 = vmatprep.mubr.bf16.mxu0 0
  %842 = vmatmul.mubr.bf16.gmra.mrb[0].mxu0 %v572
  %v843 = vpop.f32.mrb[0].mxu0
  %v844 = vadd.f32 %v747, %v843
  %v845 = vpop.f32.mrb[0].mxu0
  %v846 = vpop.f32.mrb[0].mxu0
  %v847 = vadd.f32 %v750, %v846
  %v848 = vpop.f32.mrb[0].mxu0
  %849 = vmatprep.mubr.bf16.mxu0 0
  %850 = vmatmul.mubr.bf16.gmra.mrb[0].mxu0 %v575
  %v851 = vpop.f32.mrb[0].mxu0
  %v852 = vadd.f32 %v755, %v851
  %v853 = vpop.f32.mrb[0].mxu0
  %v854 = vpop.f32.mrb[0].mxu0
  %v855 = vadd.f32 %v758, %v854
  %v856 = vpop.f32.mrb[0].mxu0
  %857 = vmatprep.mubr.bf16.mxu0 0
  %858 = vmatmul.mubr.bf16.gmra.mrb[0].mxu0 %v578
  %v859 = vpop.f32.mrb[0].mxu0
  %v860 = vadd.f32 %v763, %v859
  %v861 = vpop.f32.mrb[0].mxu0
  %v862 = vpop.f32.mrb[0].mxu0
  %v863 = vadd.f32 %v766, %v862
  %v864 = vpop.f32.mrb[0].mxu0
  %865 = vmatprep.mubr.bf16.mxu0 0
  %866 = vmatmul.mubr.bf16.gmra.mrb[0].mxu0 %v581
  %v867 = vpop.f32.mrb[0].mxu0
  %v868 = vadd.f32 %v771, %v867
  %v869 = vpop.f32.mrb[0].mxu0
  %v870 = vpop.f32.mrb[0].mxu0
  %v871 = vadd.f32 %v774, %v870
  %v872 = vpop.f32.mrb[0].mxu0
  %873 = vdwg.mxu0
  %v874 = vmax.f32 %v812, 0.0
  %v875 = vmax.f32 %v815, 0.0
  %v876 = vmax.f32 %v820, 0.0
  %v877 = vmax.f32 %v823, 0.0
  %v878 = vmax.f32 %v828, 0.0
  %v879 = vmax.f32 %v831, 0.0
  %v880 = vmax.f32 %v836, 0.0
  %v881 = vmax.f32 %v839, 0.0
  %v882 = vmax.f32 %v844, 0.0
  %v883 = vmax.f32 %v847, 0.0
  %v884 = vmax.f32 %v852, 0.0
  %v885 = vmax.f32 %v855, 0.0
  %v886 = vmax.f32 %v860, 0.0
  %v887 = vmax.f32 %v863, 0.0
  %v888 = vmax.f32 %v868, 0.0
  %v889 = vmax.f32 %v871, 0.0
  %vm890 = vcmask 261120
  %891 = vst.msk [vmem:[%s3] sm:$0xff] %vm890, %v874
  %892 = vst.msk [vmem:[%s3 + $0x8] sm:$0xff] %vm890, %v875
  %893 = vst.msk [vmem:[%s3 + $0x10] sm:$0xff] %vm890, %v876
  %894 = vst.msk [vmem:[%s3 + $0x18] sm:$0xff] %vm890, %v877
  %895 = vst.msk [vmem:[%s3 + $0x20] sm:$0xff] %vm890, %v878
  %896 = vst.msk [vmem:[%s3 + $0x28] sm:$0xff] %vm890, %v879
  %897 = vst.msk [vmem:[%s3 + $0x30] sm:$0xff] %vm890, %v880
  %898 = vst.msk [vmem:[%s3 + $0x38] sm:$0xff] %vm890, %v881
  %899 = vst.msk [vmem:[%s3 + $0x40] sm:$0xff] %vm890, %v882
  %900 = vst.msk [vmem:[%s3 + $0x48] sm:$0xff] %vm890, %v883
  %901 = vst.msk [vmem:[%s3 + $0x50] sm:$0xff] %vm890, %v884
  %902 = vst.msk [vmem:[%s3 + $0x58] sm:$0xff] %vm890, %v885
  %903 = vst.msk [vmem:[%s3 + $0x60] sm:$0xff] %vm890, %v886
  %904 = vst.msk [vmem:[%s3 + $0x68] sm:$0xff] %vm890, %v887
  %905 = vst.msk [vmem:[%s3 + $0x70] sm:$0xff] %vm890, %v888
  %906 = vst.msk [vmem:[%s3 + $0x78] sm:$0xff] %vm890, %v889
  // Predicated region
  $region14: #{resnet_autoencoder.13} parent=0 // pred_check
    _
  $region15: #{resnet_autoencoder.13} parent=0 // pred_check_branch
    %908 = sbr.rel (0) target = $region17
  $region16: #{resnet_autoencoder.13} parent=0 // pred_region
    _
  $region17: #{resnet_autoencoder.13} parent=0 // pred_fallthru
    _
  // Predicated region
  $region18: #{resnet_autoencoder.13} parent=0 // pred_check
    _
  $region19: #{resnet_autoencoder.13} parent=0 // pred_check_branch
    %910 = sbr.rel (0) target = $region21
  $region20: #{resnet_autoencoder.13} parent=0 // pred_region
    _
  $region21: #{resnet_autoencoder.13} parent=0 // pred_fallthru
    _

// kernel: resnet_autoencoder.14
$region0: #{resnet_autoencoder.14}
  #allocation0 [shape = 'u32[]', space=smem, size = 0x4, offset = 0x4, fixed_abs, tag = 'smem constant byte address 0x4 - core index']
  #allocation1 [shape = 'u32[144,128]{1,0:T(1,128)}', space=vmem, size = 0x12000, scoped, tag = 'internal scratch']
  %s0 = inlined_call_operand.vmem [shape: bf16[512,288], index: 0, kind: input, shape index: {}]
  %s1 = inlined_call_operand.vmem [shape: bf16[288,16], index: 1, kind: input, shape index: {}]
  %s2 = inlined_call_operand.vmem [shape: f32[1,16], index: 2, kind: input, shape index: {}]
  %s3 = inlined_call_operand.vmem [shape: f32[512,16], index: 3, kind: output, shape index: {}]
  %s4 = sld [smem:[#allocation0]]
  $region22: #{resnet_autoencoder.14} parent=0
    _
  %s6 = ssub.s32 1, %s4
  %s7 = scalar_select 0, %s6, %s4
  // Predicated region
  $region2: #{resnet_autoencoder.14} parent=0 // pred_check
    _
  $region3: #{resnet_autoencoder.14} parent=0 // pred_check_branch
    %9 = sbr.rel (0) target = $region5
  $region4: #{resnet_autoencoder.14} parent=0 // pred_region
    _
  $region5: #{resnet_autoencoder.14} parent=0 // pred_fallthru
    _
  // Predicated region
  $region6: #{resnet_autoencoder.14} parent=0 // pred_check
    _
  $region7: #{resnet_autoencoder.14} parent=0 // pred_check_branch
    %11 = sbr.rel (0) target = $region9
  $region8: #{resnet_autoencoder.14} parent=0 // pred_region
    _
  $region9: #{resnet_autoencoder.14} parent=0 // pred_fallthru
    _
  // Predicated region
  $region10: #{resnet_autoencoder.14} parent=0 // pred_check
    _
  $region11: #{resnet_autoencoder.14} parent=0 // pred_check_branch
    %13 = sbr.rel (0) target = $region13
  $region12: #{resnet_autoencoder.14} parent=0 // pred_region
    _
  $region13: #{resnet_autoencoder.14} parent=0 // pred_fallthru
    _
  %v15 = vld [vmem:[%s0] sm:$0xff]
  %v16 = vld [vmem:[%s0 + $0x8] sm:$0xf]
  %v17 = vld [vmem:[%s0 + $0xc] sm:$0xff]
  %v18 = vld [vmem:[%s0 + $0x14] sm:$0xf]
  %v19 = vld [vmem:[%s0 + $0x18] sm:$0xff]
  %v20 = vld [vmem:[%s0 + $0x20] sm:$0xf]
  %v21 = vld [vmem:[%s0 + $0x24] sm:$0xff]
  %v22 = vld [vmem:[%s0 + $0x2c] sm:$0xf]
  %v23 = vld [vmem:[%s0 + $0x30] sm:$0xff]
  %v24 = vld [vmem:[%s0 + $0x38] sm:$0xf]
  %v25 = vld [vmem:[%s0 + $0x3c] sm:$0xff]
  %v26 = vld [vmem:[%s0 + $0x44] sm:$0xf]
  %v27 = vld [vmem:[%s0 + $0x48] sm:$0xff]
  %v28 = vld [vmem:[%s0 + $0x50] sm:$0xf]
  %v29 = vld [vmem:[%s0 + $0x54] sm:$0xff]
  %v30 = vld [vmem:[%s0 + $0x5c] sm:$0xf]
  %v31 = vld [vmem:[%s0 + $0x60] sm:$0xff]
  %v32 = vld [vmem:[%s0 + $0x68] sm:$0xf]
  %v33 = vld [vmem:[%s0 + $0x6c] sm:$0xff]
  %v34 = vld [vmem:[%s0 + $0x74] sm:$0xf]
  %v35 = vld [vmem:[%s0 + $0x78] sm:$0xff]
  %v36 = vld [vmem:[%s0 + $0x80] sm:$0xf]
  %v37 = vld [vmem:[%s0 + $0x84] sm:$0xff]
  %v38 = vld [vmem:[%s0 + $0x8c] sm:$0xf]
  %v39 = vld [vmem:[%s0 + $0x90] sm:$0xff]
  %v40 = vld [vmem:[%s0 + $0x98] sm:$0xf]
  %v41 = vld [vmem:[%s0 + $0x9c] sm:$0xff]
  %v42 = vld [vmem:[%s0 + $0xa4] sm:$0xf]
  %v43 = vld [vmem:[%s0 + $0xa8] sm:$0xff]
  %v44 = vld [vmem:[%s0 + $0xb0] sm:$0xf]
  %v45 = vld [vmem:[%s0 + $0xb4] sm:$0xff]
  %v46 = vld [vmem:[%s0 + $0xbc] sm:$0xf]
  %v47 = vld [vmem:[%s0 + $0xc0] sm:$0xff]
  %v48 = vld [vmem:[%s0 + $0xc8] sm:$0xf]
  %v49 = vld [vmem:[%s0 + $0xcc] sm:$0xff]
  %v50 = vld [vmem:[%s0 + $0xd4] sm:$0xf]
  %v51 = vld [vmem:[%s0 + $0xd8] sm:$0xff]
  %v52 = vld [vmem:[%s0 + $0xe0] sm:$0xf]
  %v53 = vld [vmem:[%s0 + $0xe4] sm:$0xff]
  %v54 = vld [vmem:[%s0 + $0xec] sm:$0xf]
  %v55 = vld [vmem:[%s0 + $0xf0] sm:$0xff]
  %v56 = vld [vmem:[%s0 + $0xf8] sm:$0xf]
  %v57 = vld [vmem:[%s0 + $0xfc] sm:$0xff]
  %v58 = vld [vmem:[%s0 + $0x104] sm:$0xf]
  %v59 = vld [vmem:[%s0 + $0x108] sm:$0xff]
  %v60 = vld [vmem:[%s0 + $0x110] sm:$0xf]
  %v61 = vld [vmem:[%s0 + $0x114] sm:$0xff]
  %v62 = vld [vmem:[%s0 + $0x11c] sm:$0xf]
  %v63 = vld [vmem:[%s0 + $0x120] sm:$0xff]
  %v64 = vld [vmem:[%s0 + $0x128] sm:$0xf]
  %v65 = vld [vmem:[%s0 + $0x12c] sm:$0xff]
  %v66 = vld [vmem:[%s0 + $0x134] sm:$0xf]
  %v67 = vld [vmem:[%s0 + $0x138] sm:$0xff]
  %v68 = vld [vmem:[%s0 + $0x140] sm:$0xf]
  %v69 = vld [vmem:[%s0 + $0x144] sm:$0xff]
  %v70 = vld [vmem:[%s0 + $0x14c] sm:$0xf]
  %v71 = vld [vmem:[%s0 + $0x150] sm:$0xff]
  %v72 = vld [vmem:[%s0 + $0x158] sm:$0xf]
  %v73 = vld [vmem:[%s0 + $0x15c] sm:$0xff]
  %v74 = vld [vmem:[%s0 + $0x164] sm:$0xf]
  %v75 = vld [vmem:[%s0 + $0x168] sm:$0xff]
  %v76 = vld [vmem:[%s0 + $0x170] sm:$0xf]
  %v77 = vld [vmem:[%s0 + $0x174] sm:$0xff]
  %v78 = vld [vmem:[%s0 + $0x17c] sm:$0xf]
  %v79 = vld [vmem:[%s0 + $0x180] sm:$0xff]
  %v80 = vld [vmem:[%s0 + $0x188] sm:$0xf]
  %v81 = vld [vmem:[%s0 + $0x18c] sm:$0xff]
  %v82 = vld [vmem:[%s0 + $0x194] sm:$0xf]
  %v83 = vld [vmem:[%s0 + $0x198] sm:$0xff]
  %v84 = vld [vmem:[%s0 + $0x1a0] sm:$0xf]
  %v85 = vld [vmem:[%s0 + $0x1a4] sm:$0xff]
  %v86 = vld [vmem:[%s0 + $0x1ac] sm:$0xf]
  %v87 = vld [vmem:[%s0 + $0x1b0] sm:$0xff]
  %v88 = vld [vmem:[%s0 + $0x1b8] sm:$0xf]
  %v89 = vld [vmem:[%s0 + $0x1bc] sm:$0xff]
  %v90 = vld [vmem:[%s0 + $0x1c4] sm:$0xf]
  %v91 = vld [vmem:[%s0 + $0x1c8] sm:$0xff]
  %v92 = vld [vmem:[%s0 + $0x1d0] sm:$0xf]
  %v93 = vld [vmem:[%s0 + $0x1d4] sm:$0xff]
  %v94 = vld [vmem:[%s0 + $0x1dc] sm:$0xf]
  %v95 = vld [vmem:[%s0 + $0x1e0] sm:$0xff]
  %v96 = vld [vmem:[%s0 + $0x1e8] sm:$0xf]
  %v97 = vld [vmem:[%s0 + $0x1ec] sm:$0xff]
  %v98 = vld [vmem:[%s0 + $0x1f4] sm:$0xf]
  %v99 = vld [vmem:[%s0 + $0x1f8] sm:$0xff]
  %v100 = vld [vmem:[%s0 + $0x200] sm:$0xf]
  %v101 = vld [vmem:[%s0 + $0x204] sm:$0xff]
  %v102 = vld [vmem:[%s0 + $0x20c] sm:$0xf]
  %v103 = vld [vmem:[%s0 + $0x210] sm:$0xff]
  %v104 = vld [vmem:[%s0 + $0x218] sm:$0xf]
  %v105 = vld [vmem:[%s0 + $0x21c] sm:$0xff]
  %v106 = vld [vmem:[%s0 + $0x224] sm:$0xf]
  %v107 = vld [vmem:[%s0 + $0x228] sm:$0xff]
  %v108 = vld [vmem:[%s0 + $0x230] sm:$0xf]
  %v109 = vld [vmem:[%s0 + $0x234] sm:$0xff]
  %v110 = vld [vmem:[%s0 + $0x23c] sm:$0xf]
  %v111 = vld [vmem:[%s0 + $0x240] sm:$0xff]
  %v112 = vld [vmem:[%s0 + $0x248] sm:$0xf]
  %v113 = vld [vmem:[%s0 + $0x24c] sm:$0xff]
  %v114 = vld [vmem:[%s0 + $0x254] sm:$0xf]
  %v115 = vld [vmem:[%s0 + $0x258] sm:$0xff]
  %v116 = vld [vmem:[%s0 + $0x260] sm:$0xf]
  %v117 = vld [vmem:[%s0 + $0x264] sm:$0xff]
  %v118 = vld [vmem:[%s0 + $0x26c] sm:$0xf]
  %v119 = vld [vmem:[%s0 + $0x270] sm:$0xff]
  %v120 = vld [vmem:[%s0 + $0x278] sm:$0xf]
  %v121 = vld [vmem:[%s0 + $0x27c] sm:$0xff]
  %v122 = vld [vmem:[%s0 + $0x284] sm:$0xf]
  %v123 = vld [vmem:[%s0 + $0x288] sm:$0xff]
  %v124 = vld [vmem:[%s0 + $0x290] sm:$0xf]
  %v125 = vld [vmem:[%s0 + $0x294] sm:$0xff]
  %v126 = vld [vmem:[%s0 + $0x29c] sm:$0xf]
  %v127 = vld [vmem:[%s0 + $0x2a0] sm:$0xff]
  %v128 = vld [vmem:[%s0 + $0x2a8] sm:$0xf]
  %v129 = vld [vmem:[%s0 + $0x2ac] sm:$0xff]
  %v130 = vld [vmem:[%s0 + $0x2b4] sm:$0xf]
  %v131 = vld [vmem:[%s0 + $0x2b8] sm:$0xff]
  %v132 = vld [vmem:[%s0 + $0x2c0] sm:$0xf]
  %v133 = vld [vmem:[%s0 + $0x2c4] sm:$0xff]
  %v134 = vld [vmem:[%s0 + $0x2cc] sm:$0xf]
  %v135 = vld [vmem:[%s0 + $0x2d0] sm:$0xff]
  %v136 = vld [vmem:[%s0 + $0x2d8] sm:$0xf]
  %v137 = vld [vmem:[%s0 + $0x2dc] sm:$0xff]
  %v138 = vld [vmem:[%s0 + $0x2e4] sm:$0xf]
  %v139 = vld [vmem:[%s0 + $0x2e8] sm:$0xff]
  %v140 = vld [vmem:[%s0 + $0x2f0] sm:$0xf]
  %v141 = vld [vmem:[%s0 + $0x2f4] sm:$0xff]
  %v142 = vld [vmem:[%s0 + $0x2fc] sm:$0xf]
  %v143 = vld [vmem:[%s1] sm:$0xf]
  %v144 = vld [vmem:[%s1 + $0x4] sm:$0xf]
  %v145 = vld [vmem:[%s1 + $0x8] sm:$0xf]
  %v146 = vld [vmem:[%s1 + $0xc] sm:$0xf]
  %v147 = vld [vmem:[%s1 + $0x10] sm:$0xf]
  %v148 = vld [vmem:[%s1 + $0x14] sm:$0xf]
  %v149 = vld [vmem:[%s1 + $0x18] sm:$0xf]
  %v150 = vld [vmem:[%s1 + $0x1c] sm:$0xf]
  %v151 = vld [vmem:[%s1 + $0x20] sm:$0xf]
  %v152 = vld [vmem:[%s1 + $0x24] sm:$0xf]
  %v153 = vld [vmem:[%s1 + $0x28] sm:$0xf]
  %v154 = vld [vmem:[%s1 + $0x2c] sm:$0xf]
  %v155 = vld [vmem:[%s1 + $0x30] sm:$0xf]
  %v156 = vld [vmem:[%s1 + $0x34] sm:$0xf]
  %v157 = vld [vmem:[%s1 + $0x38] sm:$0xf]
  %v158 = vld [vmem:[%s1 + $0x3c] sm:$0xf]
  %v159 = vld [vmem:[%s1 + $0x40] sm:$0xf]
  %v160 = vld [vmem:[%s1 + $0x44] sm:$0xf]
  %v161 = vld [vmem:[%s1 + $0x48] sm:$0xf]
  %v162 = vld [vmem:[%s1 + $0x4c] sm:$0xf]
  %v163 = vld [vmem:[%s1 + $0x50] sm:$0xf]
  %v164 = vld [vmem:[%s1 + $0x54] sm:$0xf]
  %v165 = vld [vmem:[%s1 + $0x58] sm:$0xf]
  %v166 = vld [vmem:[%s1 + $0x5c] sm:$0xf]
  %v167 = vld [vmem:[%s1 + $0x60] sm:$0xf]
  %v168 = vld [vmem:[%s1 + $0x64] sm:$0xf]
  %v169 = vld [vmem:[%s1 + $0x68] sm:$0xf]
  %v170 = vld [vmem:[%s1 + $0x6c] sm:$0xf]
  %v171 = vld [vmem:[%s1 + $0x70] sm:$0xf]
  %v172 = vld [vmem:[%s1 + $0x74] sm:$0xf]
  %v173 = vld [vmem:[%s1 + $0x78] sm:$0xf]
  %v174 = vld [vmem:[%s1 + $0x7c] sm:$0xf]
  %v175 = vld [vmem:[%s1 + $0x80] sm:$0xf]
  %v176 = vld [vmem:[%s1 + $0x84] sm:$0xf]
  %v177 = vld [vmem:[%s1 + $0x88] sm:$0xf]
  %v178 = vld [vmem:[%s1 + $0x8c] sm:$0xf]
  %v179 = vld [vmem:[%s2] sm:$0x1]
  %v181 = vlaneseq
  %v182 = vshrl.u32 %v181, 7
  %v183 = vsub.s32 0, %v182
  %v184 = vrot.slane %v179, %v183
  %v314 = vunpack.c.l.b16 %v15
  %v315 = vunpack.c.h.b16 %v15
  %v316 = vunpack.c.l.b16 %v16
  %v317 = vunpack.c.l.b16 %v17
  %v318 = vunpack.c.h.b16 %v17
  %v319 = vunpack.c.l.b16 %v18
  %v320 = vunpack.c.l.b16 %v19
  %v321 = vunpack.c.h.b16 %v19
  %v322 = vunpack.c.l.b16 %v20
  %v323 = vunpack.c.l.b16 %v21
  %v324 = vunpack.c.h.b16 %v21
  %v325 = vunpack.c.l.b16 %v22
  %v326 = vunpack.c.l.b16 %v23
  %v327 = vunpack.c.h.b16 %v23
  %v328 = vunpack.c.l.b16 %v24
  %v329 = vunpack.c.l.b16 %v25
  %v330 = vunpack.c.h.b16 %v25
  %v331 = vunpack.c.l.b16 %v26
  %v332 = vunpack.c.l.b16 %v27
  %v333 = vunpack.c.h.b16 %v27
  %v334 = vunpack.c.l.b16 %v28
  %v335 = vunpack.c.l.b16 %v29
  %v336 = vunpack.c.h.b16 %v29
  %v337 = vunpack.c.l.b16 %v30
  %v338 = vunpack.c.l.b16 %v31
  %v339 = vunpack.c.h.b16 %v31
  %v340 = vunpack.c.l.b16 %v32
  %v341 = vunpack.c.l.b16 %v33
  %v342 = vunpack.c.h.b16 %v33
  %v343 = vunpack.c.l.b16 %v34
  %v344 = vunpack.c.l.b16 %v35
  %v345 = vunpack.c.h.b16 %v35
  %v346 = vunpack.c.l.b16 %v36
  %v347 = vunpack.c.l.b16 %v37
  %v348 = vunpack.c.h.b16 %v37
  %v349 = vunpack.c.l.b16 %v38
  %v350 = vunpack.c.l.b16 %v39
  %v351 = vunpack.c.h.b16 %v39
  %v352 = vunpack.c.l.b16 %v40
  %v353 = vunpack.c.l.b16 %v41
  %v354 = vunpack.c.h.b16 %v41
  %v355 = vunpack.c.l.b16 %v42
  %v356 = vunpack.c.l.b16 %v43
  %v357 = vunpack.c.h.b16 %v43
  %v358 = vunpack.c.l.b16 %v44
  %v359 = vunpack.c.l.b16 %v45
  %v360 = vunpack.c.h.b16 %v45
  %v361 = vunpack.c.l.b16 %v46
  %v362 = vunpack.c.l.b16 %v47
  %v363 = vunpack.c.h.b16 %v47
  %v364 = vunpack.c.l.b16 %v48
  %v365 = vunpack.c.l.b16 %v49
  %v366 = vunpack.c.h.b16 %v49
  %v367 = vunpack.c.l.b16 %v50
  %v368 = vunpack.c.l.b16 %v51
  %v369 = vunpack.c.h.b16 %v51
  %v370 = vunpack.c.l.b16 %v52
  %v371 = vunpack.c.l.b16 %v53
  %v372 = vunpack.c.h.b16 %v53
  %v373 = vunpack.c.l.b16 %v54
  %v374 = vunpack.c.l.b16 %v55
  %v375 = vunpack.c.h.b16 %v55
  %v376 = vunpack.c.l.b16 %v56
  %v377 = vunpack.c.l.b16 %v57
  %v378 = vunpack.c.h.b16 %v57
  %v379 = vunpack.c.l.b16 %v58
  %v380 = vunpack.c.l.b16 %v59
  %v381 = vunpack.c.h.b16 %v59
  %v382 = vunpack.c.l.b16 %v60
  %v383 = vunpack.c.l.b16 %v61
  %v384 = vunpack.c.h.b16 %v61
  %v385 = vunpack.c.l.b16 %v62
  %v386 = vunpack.c.l.b16 %v63
  %v387 = vunpack.c.h.b16 %v63
  %v388 = vunpack.c.l.b16 %v64
  %v389 = vunpack.c.l.b16 %v65
  %v390 = vunpack.c.h.b16 %v65
  %v391 = vunpack.c.l.b16 %v66
  %v392 = vunpack.c.l.b16 %v67
  %v393 = vunpack.c.h.b16 %v67
  %v394 = vunpack.c.l.b16 %v68
  %v395 = vunpack.c.l.b16 %v69
  %v396 = vunpack.c.h.b16 %v69
  %v397 = vunpack.c.l.b16 %v70
  %v398 = vunpack.c.l.b16 %v71
  %v399 = vunpack.c.h.b16 %v71
  %v400 = vunpack.c.l.b16 %v72
  %v401 = vunpack.c.l.b16 %v73
  %v402 = vunpack.c.h.b16 %v73
  %v403 = vunpack.c.l.b16 %v74
  %v404 = vunpack.c.l.b16 %v75
  %v405 = vunpack.c.h.b16 %v75
  %v406 = vunpack.c.l.b16 %v76
  %v407 = vunpack.c.l.b16 %v77
  %v408 = vunpack.c.h.b16 %v77
  %v409 = vunpack.c.l.b16 %v78
  %v410 = vunpack.c.l.b16 %v79
  %v411 = vunpack.c.h.b16 %v79
  %v412 = vunpack.c.l.b16 %v80
  %v413 = vunpack.c.l.b16 %v81
  %v414 = vunpack.c.h.b16 %v81
  %v415 = vunpack.c.l.b16 %v82
  %v416 = vunpack.c.l.b16 %v83
  %v417 = vunpack.c.h.b16 %v83
  %v418 = vunpack.c.l.b16 %v84
  %v419 = vunpack.c.l.b16 %v85
  %v420 = vunpack.c.h.b16 %v85
  %v421 = vunpack.c.l.b16 %v86
  %v422 = vunpack.c.l.b16 %v87
  %v423 = vunpack.c.h.b16 %v87
  %v424 = vunpack.c.l.b16 %v88
  %v425 = vunpack.c.l.b16 %v89
  %v426 = vunpack.c.h.b16 %v89
  %v427 = vunpack.c.l.b16 %v90
  %v428 = vunpack.c.l.b16 %v91
  %v429 = vunpack.c.h.b16 %v91
  %v430 = vunpack.c.l.b16 %v92
  %v431 = vunpack.c.l.b16 %v93
  %v432 = vunpack.c.h.b16 %v93
  %v433 = vunpack.c.l.b16 %v94
  %v434 = vunpack.c.l.b16 %v95
  %v435 = vunpack.c.h.b16 %v95
  %v436 = vunpack.c.l.b16 %v96
  %v437 = vunpack.c.l.b16 %v97
  %v438 = vunpack.c.h.b16 %v97
  %v439 = vunpack.c.l.b16 %v98
  %v440 = vunpack.c.l.b16 %v99
  %v441 = vunpack.c.h.b16 %v99
  %v442 = vunpack.c.l.b16 %v100
  %v443 = vunpack.c.l.b16 %v101
  %v444 = vunpack.c.h.b16 %v101
  %v445 = vunpack.c.l.b16 %v102
  %v446 = vunpack.c.l.b16 %v103
  %v447 = vunpack.c.h.b16 %v103
  %v448 = vunpack.c.l.b16 %v104
  %v449 = vunpack.c.l.b16 %v105
  %v450 = vunpack.c.h.b16 %v105
  %v451 = vunpack.c.l.b16 %v106
  %v452 = vunpack.c.l.b16 %v107
  %v453 = vunpack.c.h.b16 %v107
  %v454 = vunpack.c.l.b16 %v108
  %v455 = vunpack.c.l.b16 %v109
  %v456 = vunpack.c.h.b16 %v109
  %v457 = vunpack.c.l.b16 %v110
  %v458 = vunpack.c.l.b16 %v111
  %v459 = vunpack.c.h.b16 %v111
  %v460 = vunpack.c.l.b16 %v112
  %v461 = vunpack.c.l.b16 %v113
  %v462 = vunpack.c.h.b16 %v113
  %v463 = vunpack.c.l.b16 %v114
  %v464 = vunpack.c.l.b16 %v115
  %v465 = vunpack.c.h.b16 %v115
  %v466 = vunpack.c.l.b16 %v116
  %v467 = vunpack.c.l.b16 %v117
  %v468 = vunpack.c.h.b16 %v117
  %v469 = vunpack.c.l.b16 %v118
  %v470 = vunpack.c.l.b16 %v119
  %v471 = vunpack.c.h.b16 %v119
  %v472 = vunpack.c.l.b16 %v120
  %v473 = vunpack.c.l.b16 %v121
  %v474 = vunpack.c.h.b16 %v121
  %v475 = vunpack.c.l.b16 %v122
  %v476 = vunpack.c.l.b16 %v123
  %v477 = vunpack.c.h.b16 %v123
  %v478 = vunpack.c.l.b16 %v124
  %v479 = vunpack.c.l.b16 %v125
  %v480 = vunpack.c.h.b16 %v125
  %v481 = vunpack.c.l.b16 %v126
  %v482 = vunpack.c.l.b16 %v127
  %v483 = vunpack.c.h.b16 %v127
  %v484 = vunpack.c.l.b16 %v128
  %v485 = vunpack.c.l.b16 %v129
  %v486 = vunpack.c.h.b16 %v129
  %v487 = vunpack.c.l.b16 %v130
  %v488 = vunpack.c.l.b16 %v131
  %v489 = vunpack.c.h.b16 %v131
  %v490 = vunpack.c.l.b16 %v132
  %v491 = vunpack.c.l.b16 %v133
  %v492 = vunpack.c.h.b16 %v133
  %v493 = vunpack.c.l.b16 %v134
  %v494 = vunpack.c.l.b16 %v135
  %v495 = vunpack.c.h.b16 %v135
  %v496 = vunpack.c.l.b16 %v136
  %v497 = vunpack.c.l.b16 %v137
  %v498 = vunpack.c.h.b16 %v137
  %v499 = vunpack.c.l.b16 %v138
  %v500 = vunpack.c.l.b16 %v139
  %v501 = vunpack.c.h.b16 %v139
  %v502 = vunpack.c.l.b16 %v140
  %v503 = vunpack.c.l.b16 %v141
  %v504 = vunpack.c.h.b16 %v141
  %v505 = vunpack.c.l.b16 %v142
  %v506 = vpack.c.b16 %v317, %v314
  %v507 = vpack.c.b16 %v318, %v315
  %v508 = vpack.c.b16 %v319, %v316
  %v509 = vpack.c.b16 %v323, %v320
  %v510 = vpack.c.b16 %v324, %v321
  %v511 = vpack.c.b16 %v325, %v322
  %v512 = vpack.c.b16 %v329, %v326
  %v513 = vpack.c.b16 %v330, %v327
  %v514 = vpack.c.b16 %v331, %v328
  %v515 = vpack.c.b16 %v335, %v332
  %v516 = vpack.c.b16 %v336, %v333
  %v517 = vpack.c.b16 %v337, %v334
  %v518 = vpack.c.b16 %v341, %v338
  %v519 = vpack.c.b16 %v342, %v339
  %v520 = vpack.c.b16 %v343, %v340
  %v521 = vpack.c.b16 %v347, %v344
  %v522 = vpack.c.b16 %v348, %v345
  %v523 = vpack.c.b16 %v349, %v346
  %v524 = vpack.c.b16 %v353, %v350
  %v525 = vpack.c.b16 %v354, %v351
  %v526 = vpack.c.b16 %v355, %v352
  %v527 = vpack.c.b16 %v359, %v356
  %v528 = vpack.c.b16 %v360, %v357
  %v529 = vpack.c.b16 %v361, %v358
  %v530 = vpack.c.b16 %v365, %v362
  %v531 = vpack.c.b16 %v366, %v363
  %v532 = vpack.c.b16 %v367, %v364
  %v533 = vpack.c.b16 %v371, %v368
  %v534 = vpack.c.b16 %v372, %v369
  %v535 = vpack.c.b16 %v373, %v370
  %v536 = vpack.c.b16 %v377, %v374
  %v537 = vpack.c.b16 %v378, %v375
  %v538 = vpack.c.b16 %v379, %v376
  %v539 = vpack.c.b16 %v383, %v380
  %v540 = vpack.c.b16 %v384, %v381
  %v541 = vpack.c.b16 %v385, %v382
  %v542 = vpack.c.b16 %v389, %v386
  %v543 = vpack.c.b16 %v390, %v387
  %v544 = vpack.c.b16 %v391, %v388
  %v545 = vpack.c.b16 %v395, %v392
  %v546 = vpack.c.b16 %v396, %v393
  %v547 = vpack.c.b16 %v397, %v394
  %v548 = vpack.c.b16 %v401, %v398
  %v549 = vpack.c.b16 %v402, %v399
  %v550 = vpack.c.b16 %v403, %v400
  %v551 = vpack.c.b16 %v407, %v404
  %v552 = vpack.c.b16 %v408, %v405
  %v553 = vpack.c.b16 %v409, %v406
  %v554 = vpack.c.b16 %v413, %v410
  %v555 = vpack.c.b16 %v414, %v411
  %v556 = vpack.c.b16 %v415, %v412
  %v557 = vpack.c.b16 %v419, %v416
  %v558 = vpack.c.b16 %v420, %v417
  %v559 = vpack.c.b16 %v421, %v418
  %v560 = vpack.c.b16 %v425, %v422
  %v561 = vpack.c.b16 %v426, %v423
  %v562 = vpack.c.b16 %v427, %v424
  %v563 = vpack.c.b16 %v431, %v428
  %v564 = vpack.c.b16 %v432, %v429
  %v565 = vpack.c.b16 %v433, %v430
  %v566 = vpack.c.b16 %v437, %v434
  %v567 = vpack.c.b16 %v438, %v435
  %v568 = vpack.c.b16 %v439, %v436
  %v569 = vpack.c.b16 %v443, %v440
  %v570 = vpack.c.b16 %v444, %v441
  %v571 = vpack.c.b16 %v445, %v442
  %v572 = vpack.c.b16 %v449, %v446
  %v573 = vpack.c.b16 %v450, %v447
  %v574 = vpack.c.b16 %v451, %v448
  %v575 = vpack.c.b16 %v455, %v452
  %v576 = vpack.c.b16 %v456, %v453
  %v577 = vpack.c.b16 %v457, %v454
  %v578 = vpack.c.b16 %v461, %v458
  %v579 = vpack.c.b16 %v462, %v459
  %v580 = vpack.c.b16 %v463, %v460
  %v581 = vpack.c.b16 %v467, %v464
  %v582 = vpack.c.b16 %v468, %v465
  %v583 = vpack.c.b16 %v469, %v466
  %v584 = vpack.c.b16 %v473, %v470
  %v585 = vpack.c.b16 %v474, %v471
  %v586 = vpack.c.b16 %v475, %v472
  %v587 = vpack.c.b16 %v479, %v476
  %v588 = vpack.c.b16 %v480, %v477
  %v589 = vpack.c.b16 %v481, %v478
  %v590 = vpack.c.b16 %v485, %v482
  %v591 = vpack.c.b16 %v486, %v483
  %v592 = vpack.c.b16 %v487, %v484
  %v593 = vpack.c.b16 %v491, %v488
  %v594 = vpack.c.b16 %v492, %v489
  %v595 = vpack.c.b16 %v493, %v490
  %v596 = vpack.c.b16 %v497, %v494
  %v597 = vpack.c.b16 %v498, %v495
  %v598 = vpack.c.b16 %v499, %v496
  %v599 = vpack.c.b16 %v503, %v500
  %v600 = vpack.c.b16 %v504, %v501
  %v601 = vpack.c.b16 %v505, %v502
  %v702 = vunpack.c.l.b16 %v143
  %v703 = vunpack.c.l.b16 %v144
  %v704 = vunpack.c.l.b16 %v145
  %v705 = vunpack.c.l.b16 %v146
  %v706 = vunpack.c.l.b16 %v147
  %v707 = vunpack.c.l.b16 %v148
  %v708 = vunpack.c.l.b16 %v149
  %v709 = vunpack.c.l.b16 %v150
  %v710 = vunpack.c.l.b16 %v151
  %v711 = vunpack.c.l.b16 %v152
  %v712 = vunpack.c.l.b16 %v153
  %v713 = vunpack.c.l.b16 %v154
  %v714 = vunpack.c.l.b16 %v155
  %v715 = vunpack.c.l.b16 %v156
  %v716 = vunpack.c.l.b16 %v157
  %v717 = vunpack.c.l.b16 %v158
  %v718 = vunpack.c.l.b16 %v159
  %v719 = vunpack.c.l.b16 %v160
  %v720 = vunpack.c.l.b16 %v161
  %v721 = vunpack.c.l.b16 %v162
  %v722 = vunpack.c.l.b16 %v163
  %v723 = vunpack.c.l.b16 %v164
  %v724 = vunpack.c.l.b16 %v165
  %v725 = vunpack.c.l.b16 %v166
  %v726 = vunpack.c.l.b16 %v167
  %v727 = vunpack.c.l.b16 %v168
  %v728 = vunpack.c.l.b16 %v169
  %v729 = vunpack.c.l.b16 %v170
  %v730 = vunpack.c.l.b16 %v171
  %v731 = vunpack.c.l.b16 %v172
  %v732 = vunpack.c.l.b16 %v173
  %v733 = vunpack.c.l.b16 %v174
  %v734 = vunpack.c.l.b16 %v175
  %v735 = vunpack.c.l.b16 %v176
  %v736 = vunpack.c.l.b16 %v177
  %v737 = vunpack.c.l.b16 %v178
  %v738 = vpack.c.b16 %v703, %v702
  %v739 = vpack.c.b16 %v705, %v704
  %v740 = vpack.c.b16 %v707, %v706
  %v741 = vpack.c.b16 %v709, %v708
  %v742 = vpack.c.b16 %v711, %v710
  %v743 = vpack.c.b16 %v713, %v712
  %v744 = vpack.c.b16 %v715, %v714
  %v745 = vpack.c.b16 %v717, %v716
  %v746 = vpack.c.b16 %v719, %v718
  %v747 = vpack.c.b16 %v721, %v720
  %v748 = vpack.c.b16 %v723, %v722
  %v749 = vpack.c.b16 %v725, %v724
  %v750 = vpack.c.b16 %v727, %v726
  %v751 = vpack.c.b16 %v729, %v728
  %v752 = vpack.c.b16 %v731, %v730
  %v753 = vpack.c.b16 %v733, %v732
  %v754 = vpack.c.b16 %v735, %v734
  %v755 = vpack.c.b16 %v737, %v736
  %vm774 = vcmask 261120
  %v776 = vsel %vm774, %v508, 0
  %v779 = vsel %vm774, %v511, 0
  %v782 = vsel %vm774, %v514, 0
  %v785 = vsel %vm774, %v517, 0
  %v788 = vsel %vm774, %v520, 0
  %v791 = vsel %vm774, %v523, 0
  %v794 = vsel %vm774, %v526, 0
  %v797 = vsel %vm774, %v529, 0
  %v800 = vsel %vm774, %v532, 0
  %v803 = vsel %vm774, %v535, 0
  %v806 = vsel %vm774, %v538, 0
  %v809 = vsel %vm774, %v541, 0
  %v812 = vsel %vm774, %v544, 0
  %v815 = vsel %vm774, %v547, 0
  %v818 = vsel %vm774, %v550, 0
  %v821 = vsel %vm774, %v553, 0
  %v824 = vsel %vm774, %v556, 0
  %v827 = vsel %vm774, %v559, 0
  %v830 = vsel %vm774, %v562, 0
  %v833 = vsel %vm774, %v565, 0
  %v836 = vsel %vm774, %v568, 0
  %v839 = vsel %vm774, %v571, 0
  %v842 = vsel %vm774, %v574, 0
  %v845 = vsel %vm774, %v577, 0
  %v848 = vsel %vm774, %v580, 0
  %v851 = vsel %vm774, %v583, 0
  %v854 = vsel %vm774, %v586, 0
  %v857 = vsel %vm774, %v589, 0
  %v860 = vsel %vm774, %v592, 0
  %v863 = vsel %vm774, %v595, 0
  %v866 = vsel %vm774, %v598, 0
  %v869 = vsel %vm774, %v601, 0
  %871 = vmatprep.subr.bf16.mxu0 0
  %872 = vmatpush1.bf16.msra.mxu0 %v738
  %873 = vmatprep.subr.bf16.mxu0 0
  %874 = vmatpush1.bf16.msra.mxu0 %v739
  %875 = vmatprep.subr.bf16.mxu0 0
  %876 = vmatpush1.bf16.msra.mxu0 %v740
  %877 = vmatprep.subr.bf16.mxu0 0
  %878 = vmatpush1.bf16.msra.mxu0 %v741
  %879 = vmatprep.subr.bf16.mxu0 0
  %880 = vmatpush1.bf16.msra.mxu0 %v742
  %881 = vmatprep.subr.bf16.mxu0 0
  %882 = vmatpush1.bf16.msra.mxu0 %v743
  %883 = vmatprep.subr.bf16.mxu0 0
  %884 = vmatpush1.bf16.msra.mxu0 %v744
  %885 = vmatprep.subr.bf16.mxu0 0
  %886 = vmatpush1.bf16.msra.mxu0 %v745
  %887 = vmatprep.subr.bf16.mxu0 0
  %888 = vmatpush1.bf16.msra.mxu0 %v746
  %889 = vmatprep.subr.bf16.mxu0 0
  %890 = vmatpush1.bf16.msra.mxu0 %v747
  %891 = vmatprep.subr.bf16.mxu0 0
  %892 = vmatpush1.bf16.msra.mxu0 %v748
  %893 = vmatprep.subr.bf16.mxu0 0
  %894 = vmatpush1.bf16.msra.mxu0 %v749
  %895 = vmatprep.subr.bf16.mxu0 0
  %896 = vmatpush1.bf16.msra.mxu0 %v750
  %897 = vmatprep.subr.bf16.mxu0 0
  %898 = vmatpush1.bf16.msra.mxu0 %v751
  %899 = vmatprep.subr.bf16.mxu0 0
  %900 = vmatpush1.bf16.msra.mxu0 %v752
  %901 = vmatprep.subr.bf16.mxu0 0
  %902 = vmatpush1.bf16.msra.mxu0 %v753
  %903 = vmatprep.mubr.bf16.mxu0 %v507
  %904 = vmatmul.mubr.bf16.gmra.mrb[0].mxu0 %v506
  %v905 = vpop.f32.mrb[0].mxu0
  %v906 = vadd.f32 %v184, %v905
  %v907 = vpop.f32.mrb[0].mxu0
  %v908 = vpop.f32.mrb[0].mxu0
  %v909 = vadd.f32 %v184, %v908
  %v910 = vpop.f32.mrb[0].mxu0
  %911 = vmatprep.mubr.bf16.mxu0 %v510
  %912 = vmatmul.mubr.bf16.gmra.mrb[0].mxu0 %v509
  %v913 = vpop.f32.mrb[0].mxu0
  %v914 = vadd.f32 %v184, %v913
  %v915 = vpop.f32.mrb[0].mxu0
  %v916 = vpop.f32.mrb[0].mxu0
  %v917 = vadd.f32 %v184, %v916
  %v918 = vpop.f32.mrb[0].mxu0
  %919 = vmatprep.mubr.bf16.mxu0 %v513
  %920 = vmatmul.mubr.bf16.gmra.mrb[0].mxu0 %v512
  %v921 = vpop.f32.mrb[0].mxu0
  %v922 = vadd.f32 %v184, %v921
  %v923 = vpop.f32.mrb[0].mxu0
  %v924 = vpop.f32.mrb[0].mxu0
  %v925 = vadd.f32 %v184, %v924
  %v926 = vpop.f32.mrb[0].mxu0
  %927 = vmatprep.mubr.bf16.mxu0 %v516
  %928 = vmatmul.mubr.bf16.gmra.mrb[0].mxu0 %v515
  %v929 = vpop.f32.mrb[0].mxu0
  %v930 = vadd.f32 %v184, %v929
  %v931 = vpop.f32.mrb[0].mxu0
  %v932 = vpop.f32.mrb[0].mxu0
  %v933 = vadd.f32 %v184, %v932
  %v934 = vpop.f32.mrb[0].mxu0
  %935 = vmatprep.mubr.bf16.mxu0 %v519
  %936 = vmatmul.mubr.bf16.gmra.mrb[0].mxu0 %v518
  %v937 = vpop.f32.mrb[0].mxu0
  %v938 = vadd.f32 %v184, %v937
  %v939 = vpop.f32.mrb[0].mxu0
  %v940 = vpop.f32.mrb[0].mxu0
  %v941 = vadd.f32 %v184, %v940
  %v942 = vpop.f32.mrb[0].mxu0
  %943 = vmatprep.mubr.bf16.mxu0 %v522
  %944 = vmatmul.mubr.bf16.gmra.mrb[0].mxu0 %v521
  %v945 = vpop.f32.mrb[0].mxu0
  %v946 = vadd.f32 %v184, %v945
  %v947 = vpop.f32.mrb[0].mxu0
  %v948 = vpop.f32.mrb[0].mxu0
  %v949 = vadd.f32 %v184, %v948
  %v950 = vpop.f32.mrb[0].mxu0
  %951 = vmatprep.mubr.bf16.mxu0 %v525
  %952 = vmatmul.mubr.bf16.gmra.mrb[0].mxu0 %v524
  %v953 = vpop.f32.mrb[0].mxu0
  %v954 = vadd.f32 %v184, %v953
  %v955 = vpop.f32.mrb[0].mxu0
  %v956 = vpop.f32.mrb[0].mxu0
  %v957 = vadd.f32 %v184, %v956
  %v958 = vpop.f32.mrb[0].mxu0
  %959 = vmatprep.mubr.bf16.mxu0 %v528
  %960 = vmatmul.mubr.bf16.gmra.mrb[0].mxu0 %v527
  %v961 = vpop.f32.mrb[0].mxu0
  %v962 = vadd.f32 %v184, %v961
  %v963 = vpop.f32.mrb[0].mxu0
  %v964 = vpop.f32.mrb[0].mxu0
  %v965 = vadd.f32 %v184, %v964
  %v966 = vpop.f32.mrb[0].mxu0
  %967 = vmatprep.mubr.bf16.mxu0 %v531
  %968 = vmatmul.mubr.bf16.gmra.mrb[0].mxu0 %v530
  %v969 = vpop.f32.mrb[0].mxu0
  %v970 = vadd.f32 %v184, %v969
  %v971 = vpop.f32.mrb[0].mxu0
  %v972 = vpop.f32.mrb[0].mxu0
  %v973 = vadd.f32 %v184, %v972
  %v974 = vpop.f32.mrb[0].mxu0
  %975 = vmatprep.mubr.bf16.mxu0 %v534
  %976 = vmatmul.mubr.bf16.gmra.mrb[0].mxu0 %v533
  %v977 = vpop.f32.mrb[0].mxu0
  %v978 = vadd.f32 %v184, %v977
  %v979 = vpop.f32.mrb[0].mxu0
  %v980 = vpop.f32.mrb[0].mxu0
  %v981 = vadd.f32 %v184, %v980
  %v982 = vpop.f32.mrb[0].mxu0
  %983 = vmatprep.mubr.bf16.mxu0 %v537
  %984 = vmatmul.mubr.bf16.gmra.mrb[0].mxu0 %v536
  %v985 = vpop.f32.mrb[0].mxu0
  %v986 = vadd.f32 %v184, %v985
  %v987 = vpop.f32.mrb[0].mxu0
  %v988 = vpop.f32.mrb[0].mxu0
  %v989 = vadd.f32 %v184, %v988
  %v990 = vpop.f32.mrb[0].mxu0
  %991 = vmatprep.mubr.bf16.mxu0 %v540
  %992 = vmatmul.mubr.bf16.gmra.mrb[0].mxu0 %v539
  %v993 = vpop.f32.mrb[0].mxu0
  %v994 = vadd.f32 %v184, %v993
  %v995 = vpop.f32.mrb[0].mxu0
  %v996 = vpop.f32.mrb[0].mxu0
  %v997 = vadd.f32 %v184, %v996
  %v998 = vpop.f32.mrb[0].mxu0
  %999 = vmatprep.mubr.bf16.mxu0 %v543
  %1000 = vmatmul.mubr.bf16.gmra.mrb[0].mxu0 %v542
  %v1001 = vpop.f32.mrb[0].mxu0
  %v1002 = vadd.f32 %v184, %v1001
  %v1003 = vpop.f32.mrb[0].mxu0
  %v1004 = vpop.f32.mrb[0].mxu0
  %v1005 = vadd.f32 %v184, %v1004
  %v1006 = vpop.f32.mrb[0].mxu0
  %1007 = vmatprep.mubr.bf16.mxu0 %v546
  %1008 = vmatmul.mubr.bf16.gmra.mrb[0].mxu0 %v545
  %v1009 = vpop.f32.mrb[0].mxu0
  %v1010 = vadd.f32 %v184, %v1009
  %v1011 = vpop.f32.mrb[0].mxu0
  %v1012 = vpop.f32.mrb[0].mxu0
  %v1013 = vadd.f32 %v184, %v1012
  %v1014 = vpop.f32.mrb[0].mxu0
  %1015 = vmatprep.mubr.bf16.mxu0 %v549
  %1016 = vmatmul.mubr.bf16.gmra.mrb[0].mxu0 %v548
  %v1017 = vpop.f32.mrb[0].mxu0
  %v1018 = vadd.f32 %v184, %v1017
  %v1019 = vpop.f32.mrb[0].mxu0
  %v1020 = vpop.f32.mrb[0].mxu0
  %v1021 = vadd.f32 %v184, %v1020
  %v1022 = vpop.f32.mrb[0].mxu0
  %1023 = vmatprep.mubr.bf16.mxu0 %v552
  %1024 = vmatmul.mubr.bf16.gmra.mrb[0].mxu0 %v551
  %v1025 = vpop.f32.mrb[0].mxu0
  %v1026 = vadd.f32 %v184, %v1025
  %v1027 = vpop.f32.mrb[0].mxu0
  %v1028 = vpop.f32.mrb[0].mxu0
  %v1029 = vadd.f32 %v184, %v1028
  %v1030 = vpop.f32.mrb[0].mxu0
  %1031 = vmatprep.mubr.bf16.mxu0 %v555
  %1032 = vmatmul.mubr.bf16.gmra.mrb[0].mxu0 %v554
  %v1033 = vpop.f32.mrb[0].mxu0
  %v1034 = vadd.f32 %v184, %v1033
  %v1035 = vpop.f32.mrb[0].mxu0
  %v1036 = vpop.f32.mrb[0].mxu0
  %v1037 = vadd.f32 %v184, %v1036
  %v1038 = vpop.f32.mrb[0].mxu0
  %1039 = vmatprep.mubr.bf16.mxu0 %v558
  %1040 = vmatmul.mubr.bf16.gmra.mrb[0].mxu0 %v557
  %v1041 = vpop.f32.mrb[0].mxu0
  %v1042 = vadd.f32 %v184, %v1041
  %v1043 = vpop.f32.mrb[0].mxu0
  %v1044 = vpop.f32.mrb[0].mxu0
  %v1045 = vadd.f32 %v184, %v1044
  %v1046 = vpop.f32.mrb[0].mxu0
  %1047 = vmatprep.mubr.bf16.mxu0 %v561
  %1048 = vmatmul.mubr.bf16.gmra.mrb[0].mxu0 %v560
  %v1049 = vpop.f32.mrb[0].mxu0
  %v1050 = vadd.f32 %v184, %v1049
  %v1051 = vpop.f32.mrb[0].mxu0
  %v1052 = vpop.f32.mrb[0].mxu0
  %v1053 = vadd.f32 %v184, %v1052
  %v1054 = vpop.f32.mrb[0].mxu0
  %1055 = vmatprep.mubr.bf16.mxu0 %v564
  %1056 = vmatmul.mubr.bf16.gmra.mrb[0].mxu0 %v563
  %v1057 = vpop.f32.mrb[0].mxu0
  %v1058 = vadd.f32 %v184, %v1057
  %v1059 = vpop.f32.mrb[0].mxu0
  %v1060 = vpop.f32.mrb[0].mxu0
  %v1061 = vadd.f32 %v184, %v1060
  %v1062 = vpop.f32.mrb[0].mxu0
  %1063 = vmatprep.mubr.bf16.mxu0 %v567
  %1064 = vmatmul.mubr.bf16.gmra.mrb[0].mxu0 %v566
  %v1065 = vpop.f32.mrb[0].mxu0
  %v1066 = vadd.f32 %v184, %v1065
  %v1067 = vpop.f32.mrb[0].mxu0
  %v1068 = vpop.f32.mrb[0].mxu0
  %v1069 = vadd.f32 %v184, %v1068
  %v1070 = vpop.f32.mrb[0].mxu0
  %1071 = vmatprep.mubr.bf16.mxu0 %v570
  %1072 = vmatmul.mubr.bf16.gmra.mrb[0].mxu0 %v569
  %v1073 = vpop.f32.mrb[0].mxu0
  %v1074 = vadd.f32 %v184, %v1073
  %v1075 = vpop.f32.mrb[0].mxu0
  %v1076 = vpop.f32.mrb[0].mxu0
  %v1077 = vadd.f32 %v184, %v1076
  %v1078 = vpop.f32.mrb[0].mxu0
  %1079 = vmatprep.mubr.bf16.mxu0 %v573
  %1080 = vmatmul.mubr.bf16.gmra.mrb[0].mxu0 %v572
  %v1081 = vpop.f32.mrb[0].mxu0
  %v1082 = vadd.f32 %v184, %v1081
  %v1083 = vpop.f32.mrb[0].mxu0
  %v1084 = vpop.f32.mrb[0].mxu0
  %v1085 = vadd.f32 %v184, %v1084
  %v1086 = vpop.f32.mrb[0].mxu0
  %1087 = vmatprep.mubr.bf16.mxu0 %v576
  %1088 = vmatmul.mubr.bf16.gmra.mrb[0].mxu0 %v575
  %v1089 = vpop.f32.mrb[0].mxu0
  %v1090 = vadd.f32 %v184, %v1089
  %v1091 = vpop.f32.mrb[0].mxu0
  %v1092 = vpop.f32.mrb[0].mxu0
  %v1093 = vadd.f32 %v184, %v1092
  %v1094 = vpop.f32.mrb[0].mxu0
  %1095 = vmatprep.mubr.bf16.mxu0 %v579
  %1096 = vmatmul.mubr.bf16.gmra.mrb[0].mxu0 %v578
  %v1097 = vpop.f32.mrb[0].mxu0
  %v1098 = vadd.f32 %v184, %v1097
  %v1099 = vpop.f32.mrb[0].mxu0
  %v1100 = vpop.f32.mrb[0].mxu0
  %v1101 = vadd.f32 %v184, %v1100
  %v1102 = vpop.f32.mrb[0].mxu0
  %1103 = vmatprep.mubr.bf16.mxu0 %v582
  %1104 = vmatmul.mubr.bf16.gmra.mrb[0].mxu0 %v581
  %v1105 = vpop.f32.mrb[0].mxu0
  %v1106 = vadd.f32 %v184, %v1105
  %v1107 = vpop.f32.mrb[0].mxu0
  %v1108 = vpop.f32.mrb[0].mxu0
  %v1109 = vadd.f32 %v184, %v1108
  %v1110 = vpop.f32.mrb[0].mxu0
  %1111 = vmatprep.mubr.bf16.mxu0 %v585
  %1112 = vmatmul.mubr.bf16.gmra.mrb[0].mxu0 %v584
  %v1113 = vpop.f32.mrb[0].mxu0
  %v1114 = vadd.f32 %v184, %v1113
  %v1115 = vpop.f32.mrb[0].mxu0
  %v1116 = vpop.f32.mrb[0].mxu0
  %v1117 = vadd.f32 %v184, %v1116
  %v1118 = vpop.f32.mrb[0].mxu0
  %1119 = vmatprep.mubr.bf16.mxu0 %v588
  %1120 = vmatmul.mubr.bf16.gmra.mrb[0].mxu0 %v587
  %v1121 = vpop.f32.mrb[0].mxu0
  %v1122 = vadd.f32 %v184, %v1121
  %v1123 = vpop.f32.mrb[0].mxu0
  %v1124 = vpop.f32.mrb[0].mxu0
  %v1125 = vadd.f32 %v184, %v1124
  %v1126 = vpop.f32.mrb[0].mxu0
  %1127 = vmatprep.mubr.bf16.mxu0 %v591
  %1128 = vmatmul.mubr.bf16.gmra.mrb[0].mxu0 %v590
  %v1129 = vpop.f32.mrb[0].mxu0
  %v1130 = vadd.f32 %v184, %v1129
  %v1131 = vpop.f32.mrb[0].mxu0
  %v1132 = vpop.f32.mrb[0].mxu0
  %v1133 = vadd.f32 %v184, %v1132
  %v1134 = vpop.f32.mrb[0].mxu0
  %1135 = vmatprep.mubr.bf16.mxu0 %v594
  %1136 = vmatmul.mubr.bf16.gmra.mrb[0].mxu0 %v593
  %v1137 = vpop.f32.mrb[0].mxu0
  %v1138 = vadd.f32 %v184, %v1137
  %v1139 = vpop.f32.mrb[0].mxu0
  %v1140 = vpop.f32.mrb[0].mxu0
  %v1141 = vadd.f32 %v184, %v1140
  %v1142 = vpop.f32.mrb[0].mxu0
  %1143 = vmatprep.mubr.bf16.mxu0 %v597
  %1144 = vmatmul.mubr.bf16.gmra.mrb[0].mxu0 %v596
  %v1145 = vpop.f32.mrb[0].mxu0
  %v1146 = vadd.f32 %v184, %v1145
  %v1147 = vpop.f32.mrb[0].mxu0
  %v1148 = vpop.f32.mrb[0].mxu0
  %v1149 = vadd.f32 %v184, %v1148
  %v1150 = vpop.f32.mrb[0].mxu0
  %1151 = vmatprep.mubr.bf16.mxu0 %v600
  %1152 = vmatmul.mubr.bf16.gmra.mrb[0].mxu0 %v599
  %v1153 = vpop.f32.mrb[0].mxu0
  %v1154 = vadd.f32 %v184, %v1153
  %v1155 = vpop.f32.mrb[0].mxu0
  %v1156 = vpop.f32.mrb[0].mxu0
  %v1157 = vadd.f32 %v184, %v1156
  %v1158 = vpop.f32.mrb[0].mxu0
  %1159 = vdwg.mxu0
  %1160 = vmatprep.subr.bf16.mxu0 0
  %1161 = vmatpush1.bf16.msra.mxu0 %v754
  %1162 = vmatprep.subr.bf16.mxu0 0
  %1163 = vmatpush1.bf16.msra.mxu0 %v755
  %1164 = vmatprep.subr.bf16.mxu0 0
  %1165 = vmatpush1.bf16.msra.mxu0 0
  %1166 = vmatprep.subr.bf16.mxu0 0
  %1167 = vmatpush1.bf16.msra.mxu0 0
  %1168 = vmatprep.subr.bf16.mxu0 0
  %1169 = vmatpush1.bf16.msra.mxu0 0
  %1170 = vmatprep.subr.bf16.mxu0 0
  %1171 = vmatpush1.bf16.msra.mxu0 0
  %1172 = vmatprep.subr.bf16.mxu0 0
  %1173 = vmatpush1.bf16.msra.mxu0 0
  %1174 = vmatprep.subr.bf16.mxu0 0
  %1175 = vmatpush1.bf16.msra.mxu0 0
  %1176 = vmatprep.subr.bf16.mxu0 0
  %1177 = vmatpush1.bf16.msra.mxu0 0
  %1178 = vmatprep.subr.bf16.mxu0 0
  %1179 = vmatpush1.bf16.msra.mxu0 0
  %1180 = vmatprep.subr.bf16.mxu0 0
  %1181 = vmatpush1.bf16.msra.mxu0 0
  %1182 = vmatprep.subr.bf16.mxu0 0
  %1183 = vmatpush1.bf16.msra.mxu0 0
  %1184 = vmatprep.subr.bf16.mxu0 0
  %1185 = vmatpush1.bf16.msra.mxu0 0
  %1186 = vmatprep.subr.bf16.mxu0 0
  %1187 = vmatpush1.bf16.msra.mxu0 0
  %1188 = vmatprep.subr.bf16.mxu0 0
  %1189 = vmatpush1.bf16.msra.mxu0 0
  %1190 = vmatprep.subr.bf16.mxu0 0
  %1191 = vmatpush1.bf16.msra.mxu0 0
  %1192 = vmatprep.mubr.bf16.mxu0 0
  %1193 = vmatmul.mubr.bf16.gmra.mrb[0].mxu0 %v776
  %v1194 = vpop.f32.mrb[0].mxu0
  %v1195 = vadd.f32 %v906, %v1194
  %v1196 = vpop.f32.mrb[0].mxu0
  %v1197 = vpop.f32.mrb[0].mxu0
  %v1198 = vadd.f32 %v909, %v1197
  %v1199 = vpop.f32.mrb[0].mxu0
  %1200 = vmatprep.mubr.bf16.mxu0 0
  %1201 = vmatmul.mubr.bf16.gmra.mrb[0].mxu0 %v779
  %v1202 = vpop.f32.mrb[0].mxu0
  %v1203 = vadd.f32 %v914, %v1202
  %v1204 = vpop.f32.mrb[0].mxu0
  %v1205 = vpop.f32.mrb[0].mxu0
  %v1206 = vadd.f32 %v917, %v1205
  %v1207 = vpop.f32.mrb[0].mxu0
  %1208 = vmatprep.mubr.bf16.mxu0 0
  %1209 = vmatmul.mubr.bf16.gmra.mrb[0].mxu0 %v782
  %v1210 = vpop.f32.mrb[0].mxu0
  %v1211 = vadd.f32 %v922, %v1210
  %v1212 = vpop.f32.mrb[0].mxu0
  %v1213 = vpop.f32.mrb[0].mxu0
  %v1214 = vadd.f32 %v925, %v1213
  %v1215 = vpop.f32.mrb[0].mxu0
  %1216 = vmatprep.mubr.bf16.mxu0 0
  %1217 = vmatmul.mubr.bf16.gmra.mrb[0].mxu0 %v785
  %v1218 = vpop.f32.mrb[0].mxu0
  %v1219 = vadd.f32 %v930, %v1218
  %v1220 = vpop.f32.mrb[0].mxu0
  %v1221 = vpop.f32.mrb[0].mxu0
  %v1222 = vadd.f32 %v933, %v1221
  %v1223 = vpop.f32.mrb[0].mxu0
  %1224 = vmatprep.mubr.bf16.mxu0 0
  %1225 = vmatmul.mubr.bf16.gmra.mrb[0].mxu0 %v788
  %v1226 = vpop.f32.mrb[0].mxu0
  %v1227 = vadd.f32 %v938, %v1226
  %v1228 = vpop.f32.mrb[0].mxu0
  %v1229 = vpop.f32.mrb[0].mxu0
  %v1230 = vadd.f32 %v941, %v1229
  %v1231 = vpop.f32.mrb[0].mxu0
  %1232 = vmatprep.mubr.bf16.mxu0 0
  %1233 = vmatmul.mubr.bf16.gmra.mrb[0].mxu0 %v791
  %v1234 = vpop.f32.mrb[0].mxu0
  %v1235 = vadd.f32 %v946, %v1234
  %v1236 = vpop.f32.mrb[0].mxu0
  %v1237 = vpop.f32.mrb[0].mxu0
  %v1238 = vadd.f32 %v949, %v1237
  %v1239 = vpop.f32.mrb[0].mxu0
  %1240 = vmatprep.mubr.bf16.mxu0 0
  %1241 = vmatmul.mubr.bf16.gmra.mrb[0].mxu0 %v794
  %v1242 = vpop.f32.mrb[0].mxu0
  %v1243 = vadd.f32 %v954, %v1242
  %v1244 = vpop.f32.mrb[0].mxu0
  %v1245 = vpop.f32.mrb[0].mxu0
  %v1246 = vadd.f32 %v957, %v1245
  %v1247 = vpop.f32.mrb[0].mxu0
  %1248 = vmatprep.mubr.bf16.mxu0 0
  %1249 = vmatmul.mubr.bf16.gmra.mrb[0].mxu0 %v797
  %v1250 = vpop.f32.mrb[0].mxu0
  %v1251 = vadd.f32 %v962, %v1250
  %v1252 = vpop.f32.mrb[0].mxu0
  %v1253 = vpop.f32.mrb[0].mxu0
  %v1254 = vadd.f32 %v965, %v1253
  %v1255 = vpop.f32.mrb[0].mxu0
  %1256 = vmatprep.mubr.bf16.mxu0 0
  %1257 = vmatmul.mubr.bf16.gmra.mrb[0].mxu0 %v800
  %v1258 = vpop.f32.mrb[0].mxu0
  %v1259 = vadd.f32 %v970, %v1258
  %v1260 = vpop.f32.mrb[0].mxu0
  %v1261 = vpop.f32.mrb[0].mxu0
  %v1262 = vadd.f32 %v973, %v1261
  %v1263 = vpop.f32.mrb[0].mxu0
  %1264 = vmatprep.mubr.bf16.mxu0 0
  %1265 = vmatmul.mubr.bf16.gmra.mrb[0].mxu0 %v803
  %v1266 = vpop.f32.mrb[0].mxu0
  %v1267 = vadd.f32 %v978, %v1266
  %v1268 = vpop.f32.mrb[0].mxu0
  %v1269 = vpop.f32.mrb[0].mxu0
  %v1270 = vadd.f32 %v981, %v1269
  %v1271 = vpop.f32.mrb[0].mxu0
  %1272 = vmatprep.mubr.bf16.mxu0 0
  %1273 = vmatmul.mubr.bf16.gmra.mrb[0].mxu0 %v806
  %v1274 = vpop.f32.mrb[0].mxu0
  %v1275 = vadd.f32 %v986, %v1274
  %v1276 = vpop.f32.mrb[0].mxu0
  %v1277 = vpop.f32.mrb[0].mxu0
  %v1278 = vadd.f32 %v989, %v1277
  %v1279 = vpop.f32.mrb[0].mxu0
  %1280 = vmatprep.mubr.bf16.mxu0 0
  %1281 = vmatmul.mubr.bf16.gmra.mrb[0].mxu0 %v809
  %v1282 = vpop.f32.mrb[0].mxu0
  %v1283 = vadd.f32 %v994, %v1282
  %v1284 = vpop.f32.mrb[0].mxu0
  %v1285 = vpop.f32.mrb[0].mxu0
  %v1286 = vadd.f32 %v997, %v1285
  %v1287 = vpop.f32.mrb[0].mxu0
  %1288 = vmatprep.mubr.bf16.mxu0 0
  %1289 = vmatmul.mubr.bf16.gmra.mrb[0].mxu0 %v812
  %v1290 = vpop.f32.mrb[0].mxu0
  %v1291 = vadd.f32 %v1002, %v1290
  %v1292 = vpop.f32.mrb[0].mxu0
  %v1293 = vpop.f32.mrb[0].mxu0
  %v1294 = vadd.f32 %v1005, %v1293
  %v1295 = vpop.f32.mrb[0].mxu0
  %1296 = vmatprep.mubr.bf16.mxu0 0
  %1297 = vmatmul.mubr.bf16.gmra.mrb[0].mxu0 %v815
  %v1298 = vpop.f32.mrb[0].mxu0
  %v1299 = vadd.f32 %v1010, %v1298
  %v1300 = vpop.f32.mrb[0].mxu0
  %v1301 = vpop.f32.mrb[0].mxu0
  %v1302 = vadd.f32 %v1013, %v1301
  %v1303 = vpop.f32.mrb[0].mxu0
  %1304 = vmatprep.mubr.bf16.mxu0 0
  %1305 = vmatmul.mubr.bf16.gmra.mrb[0].mxu0 %v818
  %v1306 = vpop.f32.mrb[0].mxu0
  %v1307 = vadd.f32 %v1018, %v1306
  %v1308 = vpop.f32.mrb[0].mxu0
  %v1309 = vpop.f32.mrb[0].mxu0
  %v1310 = vadd.f32 %v1021, %v1309
  %v1311 = vpop.f32.mrb[0].mxu0
  %1312 = vmatprep.mubr.bf16.mxu0 0
  %1313 = vmatmul.mubr.bf16.gmra.mrb[0].mxu0 %v821
  %v1314 = vpop.f32.mrb[0].mxu0
  %v1315 = vadd.f32 %v1026, %v1314
  %v1316 = vpop.f32.mrb[0].mxu0
  %v1317 = vpop.f32.mrb[0].mxu0
  %v1318 = vadd.f32 %v1029, %v1317
  %v1319 = vpop.f32.mrb[0].mxu0
  %1320 = vmatprep.mubr.bf16.mxu0 0
  %1321 = vmatmul.mubr.bf16.gmra.mrb[0].mxu0 %v824
  %v1322 = vpop.f32.mrb[0].mxu0
  %v1323 = vadd.f32 %v1034, %v1322
  %v1324 = vpop.f32.mrb[0].mxu0
  %v1325 = vpop.f32.mrb[0].mxu0
  %v1326 = vadd.f32 %v1037, %v1325
  %v1327 = vpop.f32.mrb[0].mxu0
  %1328 = vmatprep.mubr.bf16.mxu0 0
  %1329 = vmatmul.mubr.bf16.gmra.mrb[0].mxu0 %v827
  %v1330 = vpop.f32.mrb[0].mxu0
  %v1331 = vadd.f32 %v1042, %v1330
  %v1332 = vpop.f32.mrb[0].mxu0
  %v1333 = vpop.f32.mrb[0].mxu0
  %v1334 = vadd.f32 %v1045, %v1333
  %v1335 = vpop.f32.mrb[0].mxu0
  %1336 = vmatprep.mubr.bf16.mxu0 0
  %1337 = vmatmul.mubr.bf16.gmra.mrb[0].mxu0 %v830
  %v1338 = vpop.f32.mrb[0].mxu0
  %v1339 = vadd.f32 %v1050, %v1338
  %v1340 = vpop.f32.mrb[0].mxu0
  %v1341 = vpop.f32.mrb[0].mxu0
  %v1342 = vadd.f32 %v1053, %v1341
  %v1343 = vpop.f32.mrb[0].mxu0
  %1344 = vmatprep.mubr.bf16.mxu0 0
  %1345 = vmatmul.mubr.bf16.gmra.mrb[0].mxu0 %v833
  %v1346 = vpop.f32.mrb[0].mxu0
  %v1347 = vadd.f32 %v1058, %v1346
  %v1348 = vpop.f32.mrb[0].mxu0
  %v1349 = vpop.f32.mrb[0].mxu0
  %v1350 = vadd.f32 %v1061, %v1349
  %v1351 = vpop.f32.mrb[0].mxu0
  %1352 = vmatprep.mubr.bf16.mxu0 0
  %1353 = vmatmul.mubr.bf16.gmra.mrb[0].mxu0 %v836
  %v1354 = vpop.f32.mrb[0].mxu0
  %v1355 = vadd.f32 %v1066, %v1354
  %v1356 = vpop.f32.mrb[0].mxu0
  %v1357 = vpop.f32.mrb[0].mxu0
  %v1358 = vadd.f32 %v1069, %v1357
  %v1359 = vpop.f32.mrb[0].mxu0
  %1360 = vmatprep.mubr.bf16.mxu0 0
  %1361 = vmatmul.mubr.bf16.gmra.mrb[0].mxu0 %v839
  %v1362 = vpop.f32.mrb[0].mxu0
  %v1363 = vadd.f32 %v1074, %v1362
  %v1364 = vpop.f32.mrb[0].mxu0
  %v1365 = vpop.f32.mrb[0].mxu0
  %v1366 = vadd.f32 %v1077, %v1365
  %v1367 = vpop.f32.mrb[0].mxu0
  %1368 = vmatprep.mubr.bf16.mxu0 0
  %1369 = vmatmul.mubr.bf16.gmra.mrb[0].mxu0 %v842
  %v1370 = vpop.f32.mrb[0].mxu0
  %v1371 = vadd.f32 %v1082, %v1370
  %v1372 = vpop.f32.mrb[0].mxu0
  %v1373 = vpop.f32.mrb[0].mxu0
  %v1374 = vadd.f32 %v1085, %v1373
  %v1375 = vpop.f32.mrb[0].mxu0
  %1376 = vmatprep.mubr.bf16.mxu0 0
  %1377 = vmatmul.mubr.bf16.gmra.mrb[0].mxu0 %v845
  %v1378 = vpop.f32.mrb[0].mxu0
  %v1379 = vadd.f32 %v1090, %v1378
  %v1380 = vpop.f32.mrb[0].mxu0
  %v1381 = vpop.f32.mrb[0].mxu0
  %v1382 = vadd.f32 %v1093, %v1381
  %v1383 = vpop.f32.mrb[0].mxu0
  %1384 = vmatprep.mubr.bf16.mxu0 0
  %1385 = vmatmul.mubr.bf16.gmra.mrb[0].mxu0 %v848
  %v1386 = vpop.f32.mrb[0].mxu0
  %v1387 = vadd.f32 %v1098, %v1386
  %v1388 = vpop.f32.mrb[0].mxu0
  %v1389 = vpop.f32.mrb[0].mxu0
  %v1390 = vadd.f32 %v1101, %v1389
  %v1391 = vpop.f32.mrb[0].mxu0
  %1392 = vmatprep.mubr.bf16.mxu0 0
  %1393 = vmatmul.mubr.bf16.gmra.mrb[0].mxu0 %v851
  %v1394 = vpop.f32.mrb[0].mxu0
  %v1395 = vadd.f32 %v1106, %v1394
  %v1396 = vpop.f32.mrb[0].mxu0
  %v1397 = vpop.f32.mrb[0].mxu0
  %v1398 = vadd.f32 %v1109, %v1397
  %v1399 = vpop.f32.mrb[0].mxu0
  %1400 = vmatprep.mubr.bf16.mxu0 0
  %1401 = vmatmul.mubr.bf16.gmra.mrb[0].mxu0 %v854
  %v1402 = vpop.f32.mrb[0].mxu0
  %v1403 = vadd.f32 %v1114, %v1402
  %v1404 = vpop.f32.mrb[0].mxu0
  %v1405 = vpop.f32.mrb[0].mxu0
  %v1406 = vadd.f32 %v1117, %v1405
  %v1407 = vpop.f32.mrb[0].mxu0
  %1408 = vmatprep.mubr.bf16.mxu0 0
  %1409 = vmatmul.mubr.bf16.gmra.mrb[0].mxu0 %v857
  %v1410 = vpop.f32.mrb[0].mxu0
  %v1411 = vadd.f32 %v1122, %v1410
  %v1412 = vpop.f32.mrb[0].mxu0
  %v1413 = vpop.f32.mrb[0].mxu0
  %v1414 = vadd.f32 %v1125, %v1413
  %v1415 = vpop.f32.mrb[0].mxu0
  %1416 = vmatprep.mubr.bf16.mxu0 0
  %1417 = vmatmul.mubr.bf16.gmra.mrb[0].mxu0 %v860
  %v1418 = vpop.f32.mrb[0].mxu0
  %v1419 = vadd.f32 %v1130, %v1418
  %v1420 = vpop.f32.mrb[0].mxu0
  %v1421 = vpop.f32.mrb[0].mxu0
  %v1422 = vadd.f32 %v1133, %v1421
  %v1423 = vpop.f32.mrb[0].mxu0
  %1424 = vmatprep.mubr.bf16.mxu0 0
  %1425 = vmatmul.mubr.bf16.gmra.mrb[0].mxu0 %v863
  %v1426 = vpop.f32.mrb[0].mxu0
  %v1427 = vadd.f32 %v1138, %v1426
  %v1428 = vpop.f32.mrb[0].mxu0
  %v1429 = vpop.f32.mrb[0].mxu0
  %v1430 = vadd.f32 %v1141, %v1429
  %v1431 = vpop.f32.mrb[0].mxu0
  %1432 = vmatprep.mubr.bf16.mxu0 0
  %1433 = vmatmul.mubr.bf16.gmra.mrb[0].mxu0 %v866
  %v1434 = vpop.f32.mrb[0].mxu0
  %v1435 = vadd.f32 %v1146, %v1434
  %v1436 = vpop.f32.mrb[0].mxu0
  %v1437 = vpop.f32.mrb[0].mxu0
  %v1438 = vadd.f32 %v1149, %v1437
  %v1439 = vpop.f32.mrb[0].mxu0
  %1440 = vmatprep.mubr.bf16.mxu0 0
  %1441 = vmatmul.mubr.bf16.gmra.mrb[0].mxu0 %v869
  %v1442 = vpop.f32.mrb[0].mxu0
  %v1443 = vadd.f32 %v1154, %v1442
  %v1444 = vpop.f32.mrb[0].mxu0
  %v1445 = vpop.f32.mrb[0].mxu0
  %v1446 = vadd.f32 %v1157, %v1445
  %v1447 = vpop.f32.mrb[0].mxu0
  %1448 = vdwg.mxu0
  %v1449 = vmax.f32 %v1195, 0.0
  %v1450 = vmax.f32 %v1198, 0.0
  %v1451 = vmax.f32 %v1203, 0.0
  %v1452 = vmax.f32 %v1206, 0.0
  %v1453 = vmax.f32 %v1211, 0.0
  %v1454 = vmax.f32 %v1214, 0.0
  %v1455 = vmax.f32 %v1219, 0.0
  %v1456 = vmax.f32 %v1222, 0.0
  %v1457 = vmax.f32 %v1227, 0.0
  %v1458 = vmax.f32 %v1230, 0.0
  %v1459 = vmax.f32 %v1235, 0.0
  %v1460 = vmax.f32 %v1238, 0.0
  %v1461 = vmax.f32 %v1243, 0.0
  %v1462 = vmax.f32 %v1246, 0.0
  %v1463 = vmax.f32 %v1251, 0.0
  %v1464 = vmax.f32 %v1254, 0.0
  %v1465 = vmax.f32 %v1259, 0.0
  %v1466 = vmax.f32 %v1262, 0.0
  %v1467 = vmax.f32 %v1267, 0.0
  %v1468 = vmax.f32 %v1270, 0.0
  %v1469 = vmax.f32 %v1275, 0.0
  %v1470 = vmax.f32 %v1278, 0.0
  %v1471 = vmax.f32 %v1283, 0.0
  %v1472 = vmax.f32 %v1286, 0.0
  %v1473 = vmax.f32 %v1291, 0.0
  %v1474 = vmax.f32 %v1294, 0.0
  %v1475 = vmax.f32 %v1299, 0.0
  %v1476 = vmax.f32 %v1302, 0.0
  %v1477 = vmax.f32 %v1307, 0.0
  %v1478 = vmax.f32 %v1310, 0.0
  %v1479 = vmax.f32 %v1315, 0.0
  %v1480 = vmax.f32 %v1318, 0.0
  %v1481 = vmax.f32 %v1323, 0.0
  %v1482 = vmax.f32 %v1326, 0.0
  %v1483 = vmax.f32 %v1331, 0.0
  %v1484 = vmax.f32 %v1334, 0.0
  %v1485 = vmax.f32 %v1339, 0.0
  %v1486 = vmax.f32 %v1342, 0.0
  %v1487 = vmax.f32 %v1347, 0.0
  %v1488 = vmax.f32 %v1350, 0.0
  %v1489 = vmax.f32 %v1355, 0.0
  %v1490 = vmax.f32 %v1358, 0.0
  %v1491 = vmax.f32 %v1363, 0.0
  %v1492 = vmax.f32 %v1366, 0.0
  %v1493 = vmax.f32 %v1371, 0.0
  %v1494 = vmax.f32 %v1374, 0.0
  %v1495 = vmax.f32 %v1379, 0.0
  %v1496 = vmax.f32 %v1382, 0.0
  %v1497 = vmax.f32 %v1387, 0.0
  %v1498 = vmax.f32 %v1390, 0.0
  %v1499 = vmax.f32 %v1395, 0.0
  %v1500 = vmax.f32 %v1398, 0.0
  %v1501 = vmax.f32 %v1403, 0.0
  %v1502 = vmax.f32 %v1406, 0.0
  %v1503 = vmax.f32 %v1411, 0.0
  %v1504 = vmax.f32 %v1414, 0.0
  %v1505 = vmax.f32 %v1419, 0.0
  %v1506 = vmax.f32 %v1422, 0.0
  %v1507 = vmax.f32 %v1427, 0.0
  %v1508 = vmax.f32 %v1430, 0.0
  %v1509 = vmax.f32 %v1435, 0.0
  %v1510 = vmax.f32 %v1438, 0.0
  %v1511 = vmax.f32 %v1443, 0.0
  %v1512 = vmax.f32 %v1446, 0.0
  %vm1513 = vcmask 130048
  %1514 = vst.msk [vmem:[%s3] sm:$0xff] %vm1513, %v1449
  %1515 = vst.msk [vmem:[%s3 + $0x8] sm:$0xff] %vm1513, %v1450
  %1516 = vst.msk [vmem:[%s3 + $0x10] sm:$0xff] %vm1513, %v1451
  %1517 = vst.msk [vmem:[%s3 + $0x18] sm:$0xff] %vm1513, %v1452
  %1518 = vst.msk [vmem:[%s3 + $0x20] sm:$0xff] %vm1513, %v1453
  %1519 = vst.msk [vmem:[%s3 + $0x28] sm:$0xff] %vm1513, %v1454
  %1520 = vst.msk [vmem:[%s3 + $0x30] sm:$0xff] %vm1513, %v1455
  %1521 = vst.msk [vmem:[%s3 + $0x38] sm:$0xff] %vm1513, %v1456
  %1522 = vst.msk [vmem:[%s3 + $0x40] sm:$0xff] %vm1513, %v1457
  %1523 = vst.msk [vmem:[%s3 + $0x48] sm:$0xff] %vm1513, %v1458
  %1524 = vst.msk [vmem:[%s3 + $0x50] sm:$0xff] %vm1513, %v1459
  %1525 = vst.msk [vmem:[%s3 + $0x58] sm:$0xff] %vm1513, %v1460
  %1526 = vst.msk [vmem:[%s3 + $0x60] sm:$0xff] %vm1513, %v1461
  %1527 = vst.msk [vmem:[%s3 + $0x68] sm:$0xff] %vm1513, %v1462
  %1528 = vst.msk [vmem:[%s3 + $0x70] sm:$0xff] %vm1513, %v1463
  %1529 = vst.msk [vmem:[%s3 + $0x78] sm:$0xff] %vm1513, %v1464
  %1530 = vst.msk [vmem:[%s3 + $0x80] sm:$0xff] %vm1513, %v1465
  %1531 = vst.msk [vmem:[%s3 + $0x88] sm:$0xff] %vm1513, %v1466
  %1532 = vst.msk [vmem:[%s3 + $0x90] sm:$0xff] %vm1513, %v1467
  %1533 = vst.msk [vmem:[%s3 + $0x98] sm:$0xff] %vm1513, %v1468
  %1534 = vst.msk [vmem:[%s3 + $0xa0] sm:$0xff] %vm1513, %v1469
  %1535 = vst.msk [vmem:[%s3 + $0xa8] sm:$0xff] %vm1513, %v1470
  %1536 = vst.msk [vmem:[%s3 + $0xb0] sm:$0xff] %vm1513, %v1471
  %1537 = vst.msk [vmem:[%s3 + $0xb8] sm:$0xff] %vm1513, %v1472
  %1538 = vst.msk [vmem:[%s3 + $0xc0] sm:$0xff] %vm1513, %v1473
  %1539 = vst.msk [vmem:[%s3 + $0xc8] sm:$0xff] %vm1513, %v1474
  %1540 = vst.msk [vmem:[%s3 + $0xd0] sm:$0xff] %vm1513, %v1475
  %1541 = vst.msk [vmem:[%s3 + $0xd8] sm:$0xff] %vm1513, %v1476
  %1542 = vst.msk [vmem:[%s3 + $0xe0] sm:$0xff] %vm1513, %v1477
  %1543 = vst.msk [vmem:[%s3 + $0xe8] sm:$0xff] %vm1513, %v1478
  %1544 = vst.msk [vmem:[%s3 + $0xf0] sm:$0xff] %vm1513, %v1479
  %1545 = vst.msk [vmem:[%s3 + $0xf8] sm:$0xff] %vm1513, %v1480
  %1546 = vst.msk [vmem:[%s3 + $0x100] sm:$0xff] %vm1513, %v1481
  %1547 = vst.msk [vmem:[%s3 + $0x108] sm:$0xff] %vm1513, %v1482
  %1548 = vst.msk [vmem:[%s3 + $0x110] sm:$0xff] %vm1513, %v1483
  %1549 = vst.msk [vmem:[%s3 + $0x118] sm:$0xff] %vm1513, %v1484
  %1550 = vst.msk [vmem:[%s3 + $0x120] sm:$0xff] %vm1513, %v1485
  %1551 = vst.msk [vmem:[%s3 + $0x128] sm:$0xff] %vm1513, %v1486
  %1552 = vst.msk [vmem:[%s3 + $0x130] sm:$0xff] %vm1513, %v1487
  %1553 = vst.msk [vmem:[%s3 + $0x138] sm:$0xff] %vm1513, %v1488
  %1554 = vst.msk [vmem:[%s3 + $0x140] sm:$0xff] %vm1513, %v1489
  %1555 = vst.msk [vmem:[%s3 + $0x148] sm:$0xff] %vm1513, %v1490
  %1556 = vst.msk [vmem:[%s3 + $0x150] sm:$0xff] %vm1513, %v1491
  %1557 = vst.msk [vmem:[%s3 + $0x158] sm:$0xff] %vm1513, %v1492
  %1558 = vst.msk [vmem:[%s3 + $0x160] sm:$0xff] %vm1513, %v1493
  %1559 = vst.msk [vmem:[%s3 + $0x168] sm:$0xff] %vm1513, %v1494
  %1560 = vst.msk [vmem:[%s3 + $0x170] sm:$0xff] %vm1513, %v1495
  %1561 = vst.msk [vmem:[%s3 + $0x178] sm:$0xff] %vm1513, %v1496
  %1562 = vst.msk [vmem:[%s3 + $0x180] sm:$0xff] %vm1513, %v1497
  %1563 = vst.msk [vmem:[%s3 + $0x188] sm:$0xff] %vm1513, %v1498
  %1564 = vst.msk [vmem:[%s3 + $0x190] sm:$0xff] %vm1513, %v1499
  %1565 = vst.msk [vmem:[%s3 + $0x198] sm:$0xff] %vm1513, %v1500
  %1566 = vst.msk [vmem:[%s3 + $0x1a0] sm:$0xff] %vm1513, %v1501
  %1567 = vst.msk [vmem:[%s3 + $0x1a8] sm:$0xff] %vm1513, %v1502
  %1568 = vst.msk [vmem:[%s3 + $0x1b0] sm:$0xff] %vm1513, %v1503
  %1569 = vst.msk [vmem:[%s3 + $0x1b8] sm:$0xff] %vm1513, %v1504
  %1570 = vst.msk [vmem:[%s3 + $0x1c0] sm:$0xff] %vm1513, %v1505
  %1571 = vst.msk [vmem:[%s3 + $0x1c8] sm:$0xff] %vm1513, %v1506
  %1572 = vst.msk [vmem:[%s3 + $0x1d0] sm:$0xff] %vm1513, %v1507
  %1573 = vst.msk [vmem:[%s3 + $0x1d8] sm:$0xff] %vm1513, %v1508
  %1574 = vst.msk [vmem:[%s3 + $0x1e0] sm:$0xff] %vm1513, %v1509
  %1575 = vst.msk [vmem:[%s3 + $0x1e8] sm:$0xff] %vm1513, %v1510
  %1576 = vst.msk [vmem:[%s3 + $0x1f0] sm:$0xff] %vm1513, %v1511
  %1577 = vst.msk [vmem:[%s3 + $0x1f8] sm:$0xff] %vm1513, %v1512
  // Predicated region
  $region14: #{resnet_autoencoder.14} parent=0 // pred_check
    _
  $region15: #{resnet_autoencoder.14} parent=0 // pred_check_branch
    %1579 = sbr.rel (0) target = $region17
  $region16: #{resnet_autoencoder.14} parent=0 // pred_region
    _
  $region17: #{resnet_autoencoder.14} parent=0 // pred_fallthru
    _
  // Predicated region
  $region18: #{resnet_autoencoder.14} parent=0 // pred_check
    _
  $region19: #{resnet_autoencoder.14} parent=0 // pred_check_branch
    %1581 = sbr.rel (0) target = $region21
  $region20: #{resnet_autoencoder.14} parent=0 // pred_region
    _
  $region21: #{resnet_autoencoder.14} parent=0 // pred_fallthru
    _

// kernel: resnet_autoencoder.15
$region0: #{resnet_autoencoder.15}
  #allocation0 [shape = 'u32[]', space=smem, size = 0x4, offset = 0x4, fixed_abs, tag = 'smem constant byte address 0x4 - core index']
  #allocation1 [shape = 'u32[144,128]{1,0:T(1,128)}', space=vmem, size = 0x12000, scoped, tag = 'internal scratch']
  #allocation2 [shape = 'f32[1,1]{1,0:T(1,128)S(1)}', space=vmem, size = 0x200, scoped, tag = 'scoped memory for resnet_autoencoder.15']
  %s0 = inlined_call_operand.vmem [shape: bf16[512,144], index: 0, kind: input, shape index: {}]
  %s1 = inlined_call_operand.vmem [shape: bf16[144,1], index: 1, kind: input, shape index: {}]
  %s2 = inlined_call_operand.<no memory space> [shape: f32[1,1], index: 2, kind: input, shape index: {}]
  %s3 = inlined_call_operand.vmem [shape: f32[512,1], index: 3, kind: output, shape index: {}]
  %s4 = sld [smem:[#allocation0]]
  $region22: #{resnet_autoencoder.15} parent=0
    _
  %s6 = ssub.s32 1, %s4
  %s7 = scalar_select 0, %s6, %s4
  %v8 = vstv %s2
  %9 = vst [vmem:[#allocation2] sm:$0x1] %v8
  // Predicated region
  $region2: #{resnet_autoencoder.15} parent=0 // pred_check
    _
  $region3: #{resnet_autoencoder.15} parent=0 // pred_check_branch
    %11 = sbr.rel (0) target = $region5
  $region4: #{resnet_autoencoder.15} parent=0 // pred_region
    _
  $region5: #{resnet_autoencoder.15} parent=0 // pred_fallthru
    _
  // Predicated region
  $region6: #{resnet_autoencoder.15} parent=0 // pred_check
    _
  $region7: #{resnet_autoencoder.15} parent=0 // pred_check_branch
    %13 = sbr.rel (0) target = $region9
  $region8: #{resnet_autoencoder.15} parent=0 // pred_region
    _
  $region9: #{resnet_autoencoder.15} parent=0 // pred_fallthru
    _
  // Predicated region
  $region10: #{resnet_autoencoder.15} parent=0 // pred_check
    _
  $region11: #{resnet_autoencoder.15} parent=0 // pred_check_branch
    %15 = sbr.rel (0) target = $region13
  $region12: #{resnet_autoencoder.15} parent=0 // pred_region
    _
  $region13: #{resnet_autoencoder.15} parent=0 // pred_fallthru
    _
  %v17 = vld [vmem:[%s0] sm:$0xff]
  %v18 = vld [vmem:[%s0 + $0x8] sm:$0xff]
  %v19 = vld [vmem:[%s0 + $0x10] sm:$0xff]
  %v20 = vld [vmem:[%s0 + $0x18] sm:$0xff]
  %v21 = vld [vmem:[%s0 + $0x20] sm:$0xff]
  %v22 = vld [vmem:[%s0 + $0x28] sm:$0xff]
  %v23 = vld [vmem:[%s0 + $0x30] sm:$0xff]
  %v24 = vld [vmem:[%s0 + $0x38] sm:$0xff]
  %v25 = vld [vmem:[%s0 + $0x40] sm:$0xff]
  %v26 = vld [vmem:[%s0 + $0x48] sm:$0xff]
  %v27 = vld [vmem:[%s0 + $0x50] sm:$0xff]
  %v28 = vld [vmem:[%s0 + $0x58] sm:$0xff]
  %v29 = vld [vmem:[%s0 + $0x60] sm:$0xff]
  %v30 = vld [vmem:[%s0 + $0x68] sm:$0xff]
  %v31 = vld [vmem:[%s0 + $0x70] sm:$0xff]
  %v32 = vld [vmem:[%s0 + $0x78] sm:$0xff]
  %v33 = vld [vmem:[%s0 + $0x80] sm:$0xff]
  %v34 = vld [vmem:[%s0 + $0x88] sm:$0xff]
  %v35 = vld [vmem:[%s0 + $0x90] sm:$0xff]
  %v36 = vld [vmem:[%s0 + $0x98] sm:$0xff]
  %v37 = vld [vmem:[%s0 + $0xa0] sm:$0xff]
  %v38 = vld [vmem:[%s0 + $0xa8] sm:$0xff]
  %v39 = vld [vmem:[%s0 + $0xb0] sm:$0xff]
  %v40 = vld [vmem:[%s0 + $0xb8] sm:$0xff]
  %v41 = vld [vmem:[%s0 + $0xc0] sm:$0xff]
  %v42 = vld [vmem:[%s0 + $0xc8] sm:$0xff]
  %v43 = vld [vmem:[%s0 + $0xd0] sm:$0xff]
  %v44 = vld [vmem:[%s0 + $0xd8] sm:$0xff]
  %v45 = vld [vmem:[%s0 + $0xe0] sm:$0xff]
  %v46 = vld [vmem:[%s0 + $0xe8] sm:$0xff]
  %v47 = vld [vmem:[%s0 + $0xf0] sm:$0xff]
  %v48 = vld [vmem:[%s0 + $0xf8] sm:$0xff]
  %v49 = vld [vmem:[%s0 + $0x100] sm:$0xff]
  %v50 = vld [vmem:[%s0 + $0x108] sm:$0xff]
  %v51 = vld [vmem:[%s0 + $0x110] sm:$0xff]
  %v52 = vld [vmem:[%s0 + $0x118] sm:$0xff]
  %v53 = vld [vmem:[%s0 + $0x120] sm:$0xff]
  %v54 = vld [vmem:[%s0 + $0x128] sm:$0xff]
  %v55 = vld [vmem:[%s0 + $0x130] sm:$0xff]
  %v56 = vld [vmem:[%s0 + $0x138] sm:$0xff]
  %v57 = vld [vmem:[%s0 + $0x140] sm:$0xff]
  %v58 = vld [vmem:[%s0 + $0x148] sm:$0xff]
  %v59 = vld [vmem:[%s0 + $0x150] sm:$0xff]
  %v60 = vld [vmem:[%s0 + $0x158] sm:$0xff]
  %v61 = vld [vmem:[%s0 + $0x160] sm:$0xff]
  %v62 = vld [vmem:[%s0 + $0x168] sm:$0xff]
  %v63 = vld [vmem:[%s0 + $0x170] sm:$0xff]
  %v64 = vld [vmem:[%s0 + $0x178] sm:$0xff]
  %v65 = vld [vmem:[%s0 + $0x180] sm:$0xff]
  %v66 = vld [vmem:[%s0 + $0x188] sm:$0xff]
  %v67 = vld [vmem:[%s0 + $0x190] sm:$0xff]
  %v68 = vld [vmem:[%s0 + $0x198] sm:$0xff]
  %v69 = vld [vmem:[%s0 + $0x1a0] sm:$0xff]
  %v70 = vld [vmem:[%s0 + $0x1a8] sm:$0xff]
  %v71 = vld [vmem:[%s0 + $0x1b0] sm:$0xff]
  %v72 = vld [vmem:[%s0 + $0x1b8] sm:$0xff]
  %v73 = vld [vmem:[%s0 + $0x1c0] sm:$0xff]
  %v74 = vld [vmem:[%s0 + $0x1c8] sm:$0xff]
  %v75 = vld [vmem:[%s0 + $0x1d0] sm:$0xff]
  %v76 = vld [vmem:[%s0 + $0x1d8] sm:$0xff]
  %v77 = vld [vmem:[%s0 + $0x1e0] sm:$0xff]
  %v78 = vld [vmem:[%s0 + $0x1e8] sm:$0xff]
  %v79 = vld [vmem:[%s0 + $0x1f0] sm:$0xff]
  %v80 = vld [vmem:[%s0 + $0x1f8] sm:$0xff]
  %v81 = vld [vmem:[%s1] sm:$0xf]
  %v82 = vld [vmem:[%s1 + $0x4] sm:$0xf]
  %v83 = vld [vmem:[%s1 + $0x8] sm:$0xf]
  %v84 = vld [vmem:[%s1 + $0xc] sm:$0xf]
  %v85 = vld [vmem:[%s1 + $0x10] sm:$0xf]
  %v86 = vld [vmem:[%s1 + $0x14] sm:$0xf]
  %v87 = vld [vmem:[%s1 + $0x18] sm:$0xf]
  %v88 = vld [vmem:[%s1 + $0x1c] sm:$0xf]
  %v89 = vld [vmem:[%s1 + $0x20] sm:$0xf]
  %v90 = vld [vmem:[%s1 + $0x24] sm:$0xf]
  %v91 = vld [vmem:[%s1 + $0x28] sm:$0xf]
  %v92 = vld [vmem:[%s1 + $0x2c] sm:$0xf]
  %v93 = vld [vmem:[%s1 + $0x30] sm:$0xf]
  %v94 = vld [vmem:[%s1 + $0x34] sm:$0xf]
  %v95 = vld [vmem:[%s1 + $0x38] sm:$0xf]
  %v96 = vld [vmem:[%s1 + $0x3c] sm:$0xf]
  %v97 = vld [vmem:[%s1 + $0x40] sm:$0xf]
  %v98 = vld [vmem:[%s1 + $0x44] sm:$0xf]
  %v99 = vld [vmem:[#allocation2] sm:$0x1]
  %v101 = vlaneseq
  %v102 = vshrl.u32 %v101, 7
  %v103 = vsub.s32 0, %v102
  %v104 = vrot.slane %v99, %v103
  %v170 = vunpack.c.l.b16 %v17
  %v171 = vunpack.c.h.b16 %v17
  %v172 = vunpack.c.l.b16 %v18
  %v173 = vunpack.c.h.b16 %v18
  %v174 = vunpack.c.l.b16 %v19
  %v175 = vunpack.c.h.b16 %v19
  %v176 = vunpack.c.l.b16 %v20
  %v177 = vunpack.c.h.b16 %v20
  %v178 = vunpack.c.l.b16 %v21
  %v179 = vunpack.c.h.b16 %v21
  %v180 = vunpack.c.l.b16 %v22
  %v181 = vunpack.c.h.b16 %v22
  %v182 = vunpack.c.l.b16 %v23
  %v183 = vunpack.c.h.b16 %v23
  %v184 = vunpack.c.l.b16 %v24
  %v185 = vunpack.c.h.b16 %v24
  %v186 = vunpack.c.l.b16 %v25
  %v187 = vunpack.c.h.b16 %v25
  %v188 = vunpack.c.l.b16 %v26
  %v189 = vunpack.c.h.b16 %v26
  %v190 = vunpack.c.l.b16 %v27
  %v191 = vunpack.c.h.b16 %v27
  %v192 = vunpack.c.l.b16 %v28
  %v193 = vunpack.c.h.b16 %v28
  %v194 = vunpack.c.l.b16 %v29
  %v195 = vunpack.c.h.b16 %v29
  %v196 = vunpack.c.l.b16 %v30
  %v197 = vunpack.c.h.b16 %v30
  %v198 = vunpack.c.l.b16 %v31
  %v199 = vunpack.c.h.b16 %v31
  %v200 = vunpack.c.l.b16 %v32
  %v201 = vunpack.c.h.b16 %v32
  %v202 = vunpack.c.l.b16 %v33
  %v203 = vunpack.c.h.b16 %v33
  %v204 = vunpack.c.l.b16 %v34
  %v205 = vunpack.c.h.b16 %v34
  %v206 = vunpack.c.l.b16 %v35
  %v207 = vunpack.c.h.b16 %v35
  %v208 = vunpack.c.l.b16 %v36
  %v209 = vunpack.c.h.b16 %v36
  %v210 = vunpack.c.l.b16 %v37
  %v211 = vunpack.c.h.b16 %v37
  %v212 = vunpack.c.l.b16 %v38
  %v213 = vunpack.c.h.b16 %v38
  %v214 = vunpack.c.l.b16 %v39
  %v215 = vunpack.c.h.b16 %v39
  %v216 = vunpack.c.l.b16 %v40
  %v217 = vunpack.c.h.b16 %v40
  %v218 = vunpack.c.l.b16 %v41
  %v219 = vunpack.c.h.b16 %v41
  %v220 = vunpack.c.l.b16 %v42
  %v221 = vunpack.c.h.b16 %v42
  %v222 = vunpack.c.l.b16 %v43
  %v223 = vunpack.c.h.b16 %v43
  %v224 = vunpack.c.l.b16 %v44
  %v225 = vunpack.c.h.b16 %v44
  %v226 = vunpack.c.l.b16 %v45
  %v227 = vunpack.c.h.b16 %v45
  %v228 = vunpack.c.l.b16 %v46
  %v229 = vunpack.c.h.b16 %v46
  %v230 = vunpack.c.l.b16 %v47
  %v231 = vunpack.c.h.b16 %v47
  %v232 = vunpack.c.l.b16 %v48
  %v233 = vunpack.c.h.b16 %v48
  %v234 = vunpack.c.l.b16 %v49
  %v235 = vunpack.c.h.b16 %v49
  %v236 = vunpack.c.l.b16 %v50
  %v237 = vunpack.c.h.b16 %v50
  %v238 = vunpack.c.l.b16 %v51
  %v239 = vunpack.c.h.b16 %v51
  %v240 = vunpack.c.l.b16 %v52
  %v241 = vunpack.c.h.b16 %v52
  %v242 = vunpack.c.l.b16 %v53
  %v243 = vunpack.c.h.b16 %v53
  %v244 = vunpack.c.l.b16 %v54
  %v245 = vunpack.c.h.b16 %v54
  %v246 = vunpack.c.l.b16 %v55
  %v247 = vunpack.c.h.b16 %v55
  %v248 = vunpack.c.l.b16 %v56
  %v249 = vunpack.c.h.b16 %v56
  %v250 = vunpack.c.l.b16 %v57
  %v251 = vunpack.c.h.b16 %v57
  %v252 = vunpack.c.l.b16 %v58
  %v253 = vunpack.c.h.b16 %v58
  %v254 = vunpack.c.l.b16 %v59
  %v255 = vunpack.c.h.b16 %v59
  %v256 = vunpack.c.l.b16 %v60
  %v257 = vunpack.c.h.b16 %v60
  %v258 = vunpack.c.l.b16 %v61
  %v259 = vunpack.c.h.b16 %v61
  %v260 = vunpack.c.l.b16 %v62
  %v261 = vunpack.c.h.b16 %v62
  %v262 = vunpack.c.l.b16 %v63
  %v263 = vunpack.c.h.b16 %v63
  %v264 = vunpack.c.l.b16 %v64
  %v265 = vunpack.c.h.b16 %v64
  %v266 = vunpack.c.l.b16 %v65
  %v267 = vunpack.c.h.b16 %v65
  %v268 = vunpack.c.l.b16 %v66
  %v269 = vunpack.c.h.b16 %v66
  %v270 = vunpack.c.l.b16 %v67
  %v271 = vunpack.c.h.b16 %v67
  %v272 = vunpack.c.l.b16 %v68
  %v273 = vunpack.c.h.b16 %v68
  %v274 = vunpack.c.l.b16 %v69
  %v275 = vunpack.c.h.b16 %v69
  %v276 = vunpack.c.l.b16 %v70
  %v277 = vunpack.c.h.b16 %v70
  %v278 = vunpack.c.l.b16 %v71
  %v279 = vunpack.c.h.b16 %v71
  %v280 = vunpack.c.l.b16 %v72
  %v281 = vunpack.c.h.b16 %v72
  %v282 = vunpack.c.l.b16 %v73
  %v283 = vunpack.c.h.b16 %v73
  %v284 = vunpack.c.l.b16 %v74
  %v285 = vunpack.c.h.b16 %v74
  %v286 = vunpack.c.l.b16 %v75
  %v287 = vunpack.c.h.b16 %v75
  %v288 = vunpack.c.l.b16 %v76
  %v289 = vunpack.c.h.b16 %v76
  %v290 = vunpack.c.l.b16 %v77
  %v291 = vunpack.c.h.b16 %v77
  %v292 = vunpack.c.l.b16 %v78
  %v293 = vunpack.c.h.b16 %v78
  %v294 = vunpack.c.l.b16 %v79
  %v295 = vunpack.c.h.b16 %v79
  %v296 = vunpack.c.l.b16 %v80
  %v297 = vunpack.c.h.b16 %v80
  %v298 = vpack.c.b16 %v172, %v170
  %v299 = vpack.c.b16 %v173, %v171
  %v300 = vpack.c.b16 %v176, %v174
  %v301 = vpack.c.b16 %v177, %v175
  %v302 = vpack.c.b16 %v180, %v178
  %v303 = vpack.c.b16 %v181, %v179
  %v304 = vpack.c.b16 %v184, %v182
  %v305 = vpack.c.b16 %v185, %v183
  %v306 = vpack.c.b16 %v188, %v186
  %v307 = vpack.c.b16 %v189, %v187
  %v308 = vpack.c.b16 %v192, %v190
  %v309 = vpack.c.b16 %v193, %v191
  %v310 = vpack.c.b16 %v196, %v194
  %v311 = vpack.c.b16 %v197, %v195
  %v312 = vpack.c.b16 %v200, %v198
  %v313 = vpack.c.b16 %v201, %v199
  %v314 = vpack.c.b16 %v204, %v202
  %v315 = vpack.c.b16 %v205, %v203
  %v316 = vpack.c.b16 %v208, %v206
  %v317 = vpack.c.b16 %v209, %v207
  %v318 = vpack.c.b16 %v212, %v210
  %v319 = vpack.c.b16 %v213, %v211
  %v320 = vpack.c.b16 %v216, %v214
  %v321 = vpack.c.b16 %v217, %v215
  %v322 = vpack.c.b16 %v220, %v218
  %v323 = vpack.c.b16 %v221, %v219
  %v324 = vpack.c.b16 %v224, %v222
  %v325 = vpack.c.b16 %v225, %v223
  %v326 = vpack.c.b16 %v228, %v226
  %v327 = vpack.c.b16 %v229, %v227
  %v328 = vpack.c.b16 %v232, %v230
  %v329 = vpack.c.b16 %v233, %v231
  %v330 = vpack.c.b16 %v236, %v234
  %v331 = vpack.c.b16 %v237, %v235
  %v332 = vpack.c.b16 %v240, %v238
  %v333 = vpack.c.b16 %v241, %v239
  %v334 = vpack.c.b16 %v244, %v242
  %v335 = vpack.c.b16 %v245, %v243
  %v336 = vpack.c.b16 %v248, %v246
  %v337 = vpack.c.b16 %v249, %v247
  %v338 = vpack.c.b16 %v252, %v250
  %v339 = vpack.c.b16 %v253, %v251
  %v340 = vpack.c.b16 %v256, %v254
  %v341 = vpack.c.b16 %v257, %v255
  %v342 = vpack.c.b16 %v260, %v258
  %v343 = vpack.c.b16 %v261, %v259
  %v344 = vpack.c.b16 %v264, %v262
  %v345 = vpack.c.b16 %v265, %v263
  %v346 = vpack.c.b16 %v268, %v266
  %v347 = vpack.c.b16 %v269, %v267
  %v348 = vpack.c.b16 %v272, %v270
  %v349 = vpack.c.b16 %v273, %v271
  %v350 = vpack.c.b16 %v276, %v274
  %v351 = vpack.c.b16 %v277, %v275
  %v352 = vpack.c.b16 %v280, %v278
  %v353 = vpack.c.b16 %v281, %v279
  %v354 = vpack.c.b16 %v284, %v282
  %v355 = vpack.c.b16 %v285, %v283
  %v356 = vpack.c.b16 %v288, %v286
  %v357 = vpack.c.b16 %v289, %v287
  %v358 = vpack.c.b16 %v292, %v290
  %v359 = vpack.c.b16 %v293, %v291
  %v360 = vpack.c.b16 %v296, %v294
  %v361 = vpack.c.b16 %v297, %v295
  %v412 = vunpack.c.l.b16 %v81
  %v413 = vunpack.c.l.b16 %v82
  %v414 = vunpack.c.l.b16 %v83
  %v415 = vunpack.c.l.b16 %v84
  %v416 = vunpack.c.l.b16 %v85
  %v417 = vunpack.c.l.b16 %v86
  %v418 = vunpack.c.l.b16 %v87
  %v419 = vunpack.c.l.b16 %v88
  %v420 = vunpack.c.l.b16 %v89
  %v421 = vunpack.c.l.b16 %v90
  %v422 = vunpack.c.l.b16 %v91
  %v423 = vunpack.c.l.b16 %v92
  %v424 = vunpack.c.l.b16 %v93
  %v425 = vunpack.c.l.b16 %v94
  %v426 = vunpack.c.l.b16 %v95
  %v427 = vunpack.c.l.b16 %v96
  %v428 = vunpack.c.l.b16 %v97
  %v429 = vunpack.c.l.b16 %v98
  %v430 = vpack.c.b16 %v413, %v412
  %v431 = vpack.c.b16 %v415, %v414
  %v432 = vpack.c.b16 %v417, %v416
  %v433 = vpack.c.b16 %v419, %v418
  %v434 = vpack.c.b16 %v421, %v420
  %v435 = vpack.c.b16 %v423, %v422
  %v436 = vpack.c.b16 %v425, %v424
  %v437 = vpack.c.b16 %v427, %v426
  %v438 = vpack.c.b16 %v429, %v428
  %vm448 = vcmask 130048
  %v450 = vsel %vm448, %v299, 0
  %v453 = vsel %vm448, %v301, 0
  %v456 = vsel %vm448, %v303, 0
  %v459 = vsel %vm448, %v305, 0
  %v462 = vsel %vm448, %v307, 0
  %v465 = vsel %vm448, %v309, 0
  %v468 = vsel %vm448, %v311, 0
  %v471 = vsel %vm448, %v313, 0
  %v474 = vsel %vm448, %v315, 0
  %v477 = vsel %vm448, %v317, 0
  %v480 = vsel %vm448, %v319, 0
  %v483 = vsel %vm448, %v321, 0
  %v486 = vsel %vm448, %v323, 0
  %v489 = vsel %vm448, %v325, 0
  %v492 = vsel %vm448, %v327, 0
  %v495 = vsel %vm448, %v329, 0
  %v498 = vsel %vm448, %v331, 0
  %v501 = vsel %vm448, %v333, 0
  %v504 = vsel %vm448, %v335, 0
  %v507 = vsel %vm448, %v337, 0
  %v510 = vsel %vm448, %v339, 0
  %v513 = vsel %vm448, %v341, 0
  %v516 = vsel %vm448, %v343, 0
  %v519 = vsel %vm448, %v345, 0
  %v522 = vsel %vm448, %v347, 0
  %v525 = vsel %vm448, %v349, 0
  %v528 = vsel %vm448, %v351, 0
  %v531 = vsel %vm448, %v353, 0
  %v534 = vsel %vm448, %v355, 0
  %v537 = vsel %vm448, %v357, 0
  %v540 = vsel %vm448, %v359, 0
  %v543 = vsel %vm448, %v361, 0
  %545 = vmatprep.subr.bf16.mxu0 0
  %546 = vmatpush1.bf16.msra.mxu0 %v430
  %547 = vmatprep.subr.bf16.mxu0 0
  %548 = vmatpush1.bf16.msra.mxu0 %v431
  %549 = vmatprep.subr.bf16.mxu0 0
  %550 = vmatpush1.bf16.msra.mxu0 %v432
  %551 = vmatprep.subr.bf16.mxu0 0
  %552 = vmatpush1.bf16.msra.mxu0 %v433
  %553 = vmatprep.subr.bf16.mxu0 0
  %554 = vmatpush1.bf16.msra.mxu0 %v434
  %555 = vmatprep.subr.bf16.mxu0 0
  %556 = vmatpush1.bf16.msra.mxu0 %v435
  %557 = vmatprep.subr.bf16.mxu0 0
  %558 = vmatpush1.bf16.msra.mxu0 %v436
  %559 = vmatprep.subr.bf16.mxu0 0
  %560 = vmatpush1.bf16.msra.mxu0 %v437
  %561 = vmatprep.subr.bf16.mxu0 0
  %562 = vmatpush1.bf16.msra.mxu0 %v438
  %563 = vmatprep.subr.bf16.mxu0 0
  %564 = vmatpush1.bf16.msra.mxu0 0
  %565 = vmatprep.subr.bf16.mxu0 0
  %566 = vmatpush1.bf16.msra.mxu0 0
  %567 = vmatprep.subr.bf16.mxu0 0
  %568 = vmatpush1.bf16.msra.mxu0 0
  %569 = vmatprep.subr.bf16.mxu0 0
  %570 = vmatpush1.bf16.msra.mxu0 0
  %571 = vmatprep.subr.bf16.mxu0 0
  %572 = vmatpush1.bf16.msra.mxu0 0
  %573 = vmatprep.subr.bf16.mxu0 0
  %574 = vmatpush1.bf16.msra.mxu0 0
  %575 = vmatprep.subr.bf16.mxu0 0
  %576 = vmatpush1.bf16.msra.mxu0 0
  %577 = vmatprep.mubr.bf16.mxu0 %v450
  %578 = vmatmul.mubr.bf16.gmra.mrb[0].mxu0 %v298
  %v579 = vpop.f32.mrb[0].mxu0
  %v580 = vadd.f32 %v104, %v579
  %v581 = vpop.f32.mrb[0].mxu0
  %v582 = vpop.f32.mrb[0].mxu0
  %v583 = vadd.f32 %v104, %v582
  %v584 = vpop.f32.mrb[0].mxu0
  %585 = vmatprep.mubr.bf16.mxu0 %v453
  %586 = vmatmul.mubr.bf16.gmra.mrb[0].mxu0 %v300
  %v587 = vpop.f32.mrb[0].mxu0
  %v588 = vadd.f32 %v104, %v587
  %v589 = vpop.f32.mrb[0].mxu0
  %v590 = vpop.f32.mrb[0].mxu0
  %v591 = vadd.f32 %v104, %v590
  %v592 = vpop.f32.mrb[0].mxu0
  %593 = vmatprep.mubr.bf16.mxu0 %v456
  %594 = vmatmul.mubr.bf16.gmra.mrb[0].mxu0 %v302
  %v595 = vpop.f32.mrb[0].mxu0
  %v596 = vadd.f32 %v104, %v595
  %v597 = vpop.f32.mrb[0].mxu0
  %v598 = vpop.f32.mrb[0].mxu0
  %v599 = vadd.f32 %v104, %v598
  %v600 = vpop.f32.mrb[0].mxu0
  %601 = vmatprep.mubr.bf16.mxu0 %v459
  %602 = vmatmul.mubr.bf16.gmra.mrb[0].mxu0 %v304
  %v603 = vpop.f32.mrb[0].mxu0
  %v604 = vadd.f32 %v104, %v603
  %v605 = vpop.f32.mrb[0].mxu0
  %v606 = vpop.f32.mrb[0].mxu0
  %v607 = vadd.f32 %v104, %v606
  %v608 = vpop.f32.mrb[0].mxu0
  %609 = vmatprep.mubr.bf16.mxu0 %v462
  %610 = vmatmul.mubr.bf16.gmra.mrb[0].mxu0 %v306
  %v611 = vpop.f32.mrb[0].mxu0
  %v612 = vadd.f32 %v104, %v611
  %v613 = vpop.f32.mrb[0].mxu0
  %v614 = vpop.f32.mrb[0].mxu0
  %v615 = vadd.f32 %v104, %v614
  %v616 = vpop.f32.mrb[0].mxu0
  %617 = vmatprep.mubr.bf16.mxu0 %v465
  %618 = vmatmul.mubr.bf16.gmra.mrb[0].mxu0 %v308
  %v619 = vpop.f32.mrb[0].mxu0
  %v620 = vadd.f32 %v104, %v619
  %v621 = vpop.f32.mrb[0].mxu0
  %v622 = vpop.f32.mrb[0].mxu0
  %v623 = vadd.f32 %v104, %v622
  %v624 = vpop.f32.mrb[0].mxu0
  %625 = vmatprep.mubr.bf16.mxu0 %v468
  %626 = vmatmul.mubr.bf16.gmra.mrb[0].mxu0 %v310
  %v627 = vpop.f32.mrb[0].mxu0
  %v628 = vadd.f32 %v104, %v627
  %v629 = vpop.f32.mrb[0].mxu0
  %v630 = vpop.f32.mrb[0].mxu0
  %v631 = vadd.f32 %v104, %v630
  %v632 = vpop.f32.mrb[0].mxu0
  %633 = vmatprep.mubr.bf16.mxu0 %v471
  %634 = vmatmul.mubr.bf16.gmra.mrb[0].mxu0 %v312
  %v635 = vpop.f32.mrb[0].mxu0
  %v636 = vadd.f32 %v104, %v635
  %v637 = vpop.f32.mrb[0].mxu0
  %v638 = vpop.f32.mrb[0].mxu0
  %v639 = vadd.f32 %v104, %v638
  %v640 = vpop.f32.mrb[0].mxu0
  %641 = vmatprep.mubr.bf16.mxu0 %v474
  %642 = vmatmul.mubr.bf16.gmra.mrb[0].mxu0 %v314
  %v643 = vpop.f32.mrb[0].mxu0
  %v644 = vadd.f32 %v104, %v643
  %v645 = vpop.f32.mrb[0].mxu0
  %v646 = vpop.f32.mrb[0].mxu0
  %v647 = vadd.f32 %v104, %v646
  %v648 = vpop.f32.mrb[0].mxu0
  %649 = vmatprep.mubr.bf16.mxu0 %v477
  %650 = vmatmul.mubr.bf16.gmra.mrb[0].mxu0 %v316
  %v651 = vpop.f32.mrb[0].mxu0
  %v652 = vadd.f32 %v104, %v651
  %v653 = vpop.f32.mrb[0].mxu0
  %v654 = vpop.f32.mrb[0].mxu0
  %v655 = vadd.f32 %v104, %v654
  %v656 = vpop.f32.mrb[0].mxu0
  %657 = vmatprep.mubr.bf16.mxu0 %v480
  %658 = vmatmul.mubr.bf16.gmra.mrb[0].mxu0 %v318
  %v659 = vpop.f32.mrb[0].mxu0
  %v660 = vadd.f32 %v104, %v659
  %v661 = vpop.f32.mrb[0].mxu0
  %v662 = vpop.f32.mrb[0].mxu0
  %v663 = vadd.f32 %v104, %v662
  %v664 = vpop.f32.mrb[0].mxu0
  %665 = vmatprep.mubr.bf16.mxu0 %v483
  %666 = vmatmul.mubr.bf16.gmra.mrb[0].mxu0 %v320
  %v667 = vpop.f32.mrb[0].mxu0
  %v668 = vadd.f32 %v104, %v667
  %v669 = vpop.f32.mrb[0].mxu0
  %v670 = vpop.f32.mrb[0].mxu0
  %v671 = vadd.f32 %v104, %v670
  %v672 = vpop.f32.mrb[0].mxu0
  %673 = vmatprep.mubr.bf16.mxu0 %v486
  %674 = vmatmul.mubr.bf16.gmra.mrb[0].mxu0 %v322
  %v675 = vpop.f32.mrb[0].mxu0
  %v676 = vadd.f32 %v104, %v675
  %v677 = vpop.f32.mrb[0].mxu0
  %v678 = vpop.f32.mrb[0].mxu0
  %v679 = vadd.f32 %v104, %v678
  %v680 = vpop.f32.mrb[0].mxu0
  %681 = vmatprep.mubr.bf16.mxu0 %v489
  %682 = vmatmul.mubr.bf16.gmra.mrb[0].mxu0 %v324
  %v683 = vpop.f32.mrb[0].mxu0
  %v684 = vadd.f32 %v104, %v683
  %v685 = vpop.f32.mrb[0].mxu0
  %v686 = vpop.f32.mrb[0].mxu0
  %v687 = vadd.f32 %v104, %v686
  %v688 = vpop.f32.mrb[0].mxu0
  %689 = vmatprep.mubr.bf16.mxu0 %v492
  %690 = vmatmul.mubr.bf16.gmra.mrb[0].mxu0 %v326
  %v691 = vpop.f32.mrb[0].mxu0
  %v692 = vadd.f32 %v104, %v691
  %v693 = vpop.f32.mrb[0].mxu0
  %v694 = vpop.f32.mrb[0].mxu0
  %v695 = vadd.f32 %v104, %v694
  %v696 = vpop.f32.mrb[0].mxu0
  %697 = vmatprep.mubr.bf16.mxu0 %v495
  %698 = vmatmul.mubr.bf16.gmra.mrb[0].mxu0 %v328
  %v699 = vpop.f32.mrb[0].mxu0
  %v700 = vadd.f32 %v104, %v699
  %v701 = vpop.f32.mrb[0].mxu0
  %v702 = vpop.f32.mrb[0].mxu0
  %v703 = vadd.f32 %v104, %v702
  %v704 = vpop.f32.mrb[0].mxu0
  %705 = vmatprep.mubr.bf16.mxu0 %v498
  %706 = vmatmul.mubr.bf16.gmra.mrb[0].mxu0 %v330
  %v707 = vpop.f32.mrb[0].mxu0
  %v708 = vadd.f32 %v104, %v707
  %v709 = vpop.f32.mrb[0].mxu0
  %v710 = vpop.f32.mrb[0].mxu0
  %v711 = vadd.f32 %v104, %v710
  %v712 = vpop.f32.mrb[0].mxu0
  %713 = vmatprep.mubr.bf16.mxu0 %v501
  %714 = vmatmul.mubr.bf16.gmra.mrb[0].mxu0 %v332
  %v715 = vpop.f32.mrb[0].mxu0
  %v716 = vadd.f32 %v104, %v715
  %v717 = vpop.f32.mrb[0].mxu0
  %v718 = vpop.f32.mrb[0].mxu0
  %v719 = vadd.f32 %v104, %v718
  %v720 = vpop.f32.mrb[0].mxu0
  %721 = vmatprep.mubr.bf16.mxu0 %v504
  %722 = vmatmul.mubr.bf16.gmra.mrb[0].mxu0 %v334
  %v723 = vpop.f32.mrb[0].mxu0
  %v724 = vadd.f32 %v104, %v723
  %v725 = vpop.f32.mrb[0].mxu0
  %v726 = vpop.f32.mrb[0].mxu0
  %v727 = vadd.f32 %v104, %v726
  %v728 = vpop.f32.mrb[0].mxu0
  %729 = vmatprep.mubr.bf16.mxu0 %v507
  %730 = vmatmul.mubr.bf16.gmra.mrb[0].mxu0 %v336
  %v731 = vpop.f32.mrb[0].mxu0
  %v732 = vadd.f32 %v104, %v731
  %v733 = vpop.f32.mrb[0].mxu0
  %v734 = vpop.f32.mrb[0].mxu0
  %v735 = vadd.f32 %v104, %v734
  %v736 = vpop.f32.mrb[0].mxu0
  %737 = vmatprep.mubr.bf16.mxu0 %v510
  %738 = vmatmul.mubr.bf16.gmra.mrb[0].mxu0 %v338
  %v739 = vpop.f32.mrb[0].mxu0
  %v740 = vadd.f32 %v104, %v739
  %v741 = vpop.f32.mrb[0].mxu0
  %v742 = vpop.f32.mrb[0].mxu0
  %v743 = vadd.f32 %v104, %v742
  %v744 = vpop.f32.mrb[0].mxu0
  %745 = vmatprep.mubr.bf16.mxu0 %v513
  %746 = vmatmul.mubr.bf16.gmra.mrb[0].mxu0 %v340
  %v747 = vpop.f32.mrb[0].mxu0
  %v748 = vadd.f32 %v104, %v747
  %v749 = vpop.f32.mrb[0].mxu0
  %v750 = vpop.f32.mrb[0].mxu0
  %v751 = vadd.f32 %v104, %v750
  %v752 = vpop.f32.mrb[0].mxu0
  %753 = vmatprep.mubr.bf16.mxu0 %v516
  %754 = vmatmul.mubr.bf16.gmra.mrb[0].mxu0 %v342
  %v755 = vpop.f32.mrb[0].mxu0
  %v756 = vadd.f32 %v104, %v755
  %v757 = vpop.f32.mrb[0].mxu0
  %v758 = vpop.f32.mrb[0].mxu0
  %v759 = vadd.f32 %v104, %v758
  %v760 = vpop.f32.mrb[0].mxu0
  %761 = vmatprep.mubr.bf16.mxu0 %v519
  %762 = vmatmul.mubr.bf16.gmra.mrb[0].mxu0 %v344
  %v763 = vpop.f32.mrb[0].mxu0
  %v764 = vadd.f32 %v104, %v763
  %v765 = vpop.f32.mrb[0].mxu0
  %v766 = vpop.f32.mrb[0].mxu0
  %v767 = vadd.f32 %v104, %v766
  %v768 = vpop.f32.mrb[0].mxu0
  %769 = vmatprep.mubr.bf16.mxu0 %v522
  %770 = vmatmul.mubr.bf16.gmra.mrb[0].mxu0 %v346
  %v771 = vpop.f32.mrb[0].mxu0
  %v772 = vadd.f32 %v104, %v771
  %v773 = vpop.f32.mrb[0].mxu0
  %v774 = vpop.f32.mrb[0].mxu0
  %v775 = vadd.f32 %v104, %v774
  %v776 = vpop.f32.mrb[0].mxu0
  %777 = vmatprep.mubr.bf16.mxu0 %v525
  %778 = vmatmul.mubr.bf16.gmra.mrb[0].mxu0 %v348
  %v779 = vpop.f32.mrb[0].mxu0
  %v780 = vadd.f32 %v104, %v779
  %v781 = vpop.f32.mrb[0].mxu0
  %v782 = vpop.f32.mrb[0].mxu0
  %v783 = vadd.f32 %v104, %v782
  %v784 = vpop.f32.mrb[0].mxu0
  %785 = vmatprep.mubr.bf16.mxu0 %v528
  %786 = vmatmul.mubr.bf16.gmra.mrb[0].mxu0 %v350
  %v787 = vpop.f32.mrb[0].mxu0
  %v788 = vadd.f32 %v104, %v787
  %v789 = vpop.f32.mrb[0].mxu0
  %v790 = vpop.f32.mrb[0].mxu0
  %v791 = vadd.f32 %v104, %v790
  %v792 = vpop.f32.mrb[0].mxu0
  %793 = vmatprep.mubr.bf16.mxu0 %v531
  %794 = vmatmul.mubr.bf16.gmra.mrb[0].mxu0 %v352
  %v795 = vpop.f32.mrb[0].mxu0
  %v796 = vadd.f32 %v104, %v795
  %v797 = vpop.f32.mrb[0].mxu0
  %v798 = vpop.f32.mrb[0].mxu0
  %v799 = vadd.f32 %v104, %v798
  %v800 = vpop.f32.mrb[0].mxu0
  %801 = vmatprep.mubr.bf16.mxu0 %v534
  %802 = vmatmul.mubr.bf16.gmra.mrb[0].mxu0 %v354
  %v803 = vpop.f32.mrb[0].mxu0
  %v804 = vadd.f32 %v104, %v803
  %v805 = vpop.f32.mrb[0].mxu0
  %v806 = vpop.f32.mrb[0].mxu0
  %v807 = vadd.f32 %v104, %v806
  %v808 = vpop.f32.mrb[0].mxu0
  %809 = vmatprep.mubr.bf16.mxu0 %v537
  %810 = vmatmul.mubr.bf16.gmra.mrb[0].mxu0 %v356
  %v811 = vpop.f32.mrb[0].mxu0
  %v812 = vadd.f32 %v104, %v811
  %v813 = vpop.f32.mrb[0].mxu0
  %v814 = vpop.f32.mrb[0].mxu0
  %v815 = vadd.f32 %v104, %v814
  %v816 = vpop.f32.mrb[0].mxu0
  %817 = vmatprep.mubr.bf16.mxu0 %v540
  %818 = vmatmul.mubr.bf16.gmra.mrb[0].mxu0 %v358
  %v819 = vpop.f32.mrb[0].mxu0
  %v820 = vadd.f32 %v104, %v819
  %v821 = vpop.f32.mrb[0].mxu0
  %v822 = vpop.f32.mrb[0].mxu0
  %v823 = vadd.f32 %v104, %v822
  %v824 = vpop.f32.mrb[0].mxu0
  %825 = vmatprep.mubr.bf16.mxu0 %v543
  %826 = vmatmul.mubr.bf16.gmra.mrb[0].mxu0 %v360
  %v827 = vpop.f32.mrb[0].mxu0
  %v828 = vadd.f32 %v104, %v827
  %v829 = vpop.f32.mrb[0].mxu0
  %v830 = vpop.f32.mrb[0].mxu0
  %v831 = vadd.f32 %v104, %v830
  %v832 = vpop.f32.mrb[0].mxu0
  %833 = vdwg.mxu0
  %v834 = vtanh.pop %v580
  %v835 = vtanh.pop %v583
  %v836 = vtanh.pop %v588
  %v837 = vtanh.pop %v591
  %v838 = vtanh.pop %v596
  %v839 = vtanh.pop %v599
  %v840 = vtanh.pop %v604
  %v841 = vtanh.pop %v607
  %v842 = vtanh.pop %v612
  %v843 = vtanh.pop %v615
  %v844 = vtanh.pop %v620
  %v845 = vtanh.pop %v623
  %v846 = vtanh.pop %v628
  %v847 = vtanh.pop %v631
  %v848 = vtanh.pop %v636
  %v849 = vtanh.pop %v639
  %v850 = vtanh.pop %v644
  %v851 = vtanh.pop %v647
  %v852 = vtanh.pop %v652
  %v853 = vtanh.pop %v655
  %v854 = vtanh.pop %v660
  %v855 = vtanh.pop %v663
  %v856 = vtanh.pop %v668
  %v857 = vtanh.pop %v671
  %v858 = vtanh.pop %v676
  %v859 = vtanh.pop %v679
  %v860 = vtanh.pop %v684
  %v861 = vtanh.pop %v687
  %v862 = vtanh.pop %v692
  %v863 = vtanh.pop %v695
  %v864 = vtanh.pop %v700
  %v865 = vtanh.pop %v703
  %v866 = vtanh.pop %v708
  %v867 = vtanh.pop %v711
  %v868 = vtanh.pop %v716
  %v869 = vtanh.pop %v719
  %v870 = vtanh.pop %v724
  %v871 = vtanh.pop %v727
  %v872 = vtanh.pop %v732
  %v873 = vtanh.pop %v735
  %v874 = vtanh.pop %v740
  %v875 = vtanh.pop %v743
  %v876 = vtanh.pop %v748
  %v877 = vtanh.pop %v751
  %v878 = vtanh.pop %v756
  %v879 = vtanh.pop %v759
  %v880 = vtanh.pop %v764
  %v881 = vtanh.pop %v767
  %v882 = vtanh.pop %v772
  %v883 = vtanh.pop %v775
  %v884 = vtanh.pop %v780
  %v885 = vtanh.pop %v783
  %v886 = vtanh.pop %v788
  %v887 = vtanh.pop %v791
  %v888 = vtanh.pop %v796
  %v889 = vtanh.pop %v799
  %v890 = vtanh.pop %v804
  %v891 = vtanh.pop %v807
  %v892 = vtanh.pop %v812
  %v893 = vtanh.pop %v815
  %v894 = vtanh.pop %v820
  %v895 = vtanh.pop %v823
  %v896 = vtanh.pop %v828
  %v897 = vtanh.pop %v831
  %vm898 = vcmask 7168
  %899 = vst.msk [vmem:[%s3] sm:$0xff] %vm898, %v834
  %900 = vst.msk [vmem:[%s3 + $0x8] sm:$0xff] %vm898, %v835
  %901 = vst.msk [vmem:[%s3 + $0x10] sm:$0xff] %vm898, %v836
  %902 = vst.msk [vmem:[%s3 + $0x18] sm:$0xff] %vm898, %v837
  %903 = vst.msk [vmem:[%s3 + $0x20] sm:$0xff] %vm898, %v838
  %904 = vst.msk [vmem:[%s3 + $0x28] sm:$0xff] %vm898, %v839
  %905 = vst.msk [vmem:[%s3 + $0x30] sm:$0xff] %vm898, %v840
  %906 = vst.msk [vmem:[%s3 + $0x38] sm:$0xff] %vm898, %v841
  %907 = vst.msk [vmem:[%s3 + $0x40] sm:$0xff] %vm898, %v842
  %908 = vst.msk [vmem:[%s3 + $0x48] sm:$0xff] %vm898, %v843
  %909 = vst.msk [vmem:[%s3 + $0x50] sm:$0xff] %vm898, %v844
  %910 = vst.msk [vmem:[%s3 + $0x58] sm:$0xff] %vm898, %v845
  %911 = vst.msk [vmem:[%s3 + $0x60] sm:$0xff] %vm898, %v846
  %912 = vst.msk [vmem:[%s3 + $0x68] sm:$0xff] %vm898, %v847
  %913 = vst.msk [vmem:[%s3 + $0x70] sm:$0xff] %vm898, %v848
  %914 = vst.msk [vmem:[%s3 + $0x78] sm:$0xff] %vm898, %v849
  %915 = vst.msk [vmem:[%s3 + $0x80] sm:$0xff] %vm898, %v850
  %916 = vst.msk [vmem:[%s3 + $0x88] sm:$0xff] %vm898, %v851
  %917 = vst.msk [vmem:[%s3 + $0x90] sm:$0xff] %vm898, %v852
  %918 = vst.msk [vmem:[%s3 + $0x98] sm:$0xff] %vm898, %v853
  %919 = vst.msk [vmem:[%s3 + $0xa0] sm:$0xff] %vm898, %v854
  %920 = vst.msk [vmem:[%s3 + $0xa8] sm:$0xff] %vm898, %v855
  %921 = vst.msk [vmem:[%s3 + $0xb0] sm:$0xff] %vm898, %v856
  %922 = vst.msk [vmem:[%s3 + $0xb8] sm:$0xff] %vm898, %v857
  %923 = vst.msk [vmem:[%s3 + $0xc0] sm:$0xff] %vm898, %v858
  %924 = vst.msk [vmem:[%s3 + $0xc8] sm:$0xff] %vm898, %v859
  %925 = vst.msk [vmem:[%s3 + $0xd0] sm:$0xff] %vm898, %v860
  %926 = vst.msk [vmem:[%s3 + $0xd8] sm:$0xff] %vm898, %v861
  %927 = vst.msk [vmem:[%s3 + $0xe0] sm:$0xff] %vm898, %v862
  %928 = vst.msk [vmem:[%s3 + $0xe8] sm:$0xff] %vm898, %v863
  %929 = vst.msk [vmem:[%s3 + $0xf0] sm:$0xff] %vm898, %v864
  %930 = vst.msk [vmem:[%s3 + $0xf8] sm:$0xff] %vm898, %v865
  %931 = vst.msk [vmem:[%s3 + $0x100] sm:$0xff] %vm898, %v866
  %932 = vst.msk [vmem:[%s3 + $0x108] sm:$0xff] %vm898, %v867
  %933 = vst.msk [vmem:[%s3 + $0x110] sm:$0xff] %vm898, %v868
  %934 = vst.msk [vmem:[%s3 + $0x118] sm:$0xff] %vm898, %v869
  %935 = vst.msk [vmem:[%s3 + $0x120] sm:$0xff] %vm898, %v870
  %936 = vst.msk [vmem:[%s3 + $0x128] sm:$0xff] %vm898, %v871
  %937 = vst.msk [vmem:[%s3 + $0x130] sm:$0xff] %vm898, %v872
  %938 = vst.msk [vmem:[%s3 + $0x138] sm:$0xff] %vm898, %v873
  %939 = vst.msk [vmem:[%s3 + $0x140] sm:$0xff] %vm898, %v874
  %940 = vst.msk [vmem:[%s3 + $0x148] sm:$0xff] %vm898, %v875
  %941 = vst.msk [vmem:[%s3 + $0x150] sm:$0xff] %vm898, %v876
  %942 = vst.msk [vmem:[%s3 + $0x158] sm:$0xff] %vm898, %v877
  %943 = vst.msk [vmem:[%s3 + $0x160] sm:$0xff] %vm898, %v878
  %944 = vst.msk [vmem:[%s3 + $0x168] sm:$0xff] %vm898, %v879
  %945 = vst.msk [vmem:[%s3 + $0x170] sm:$0xff] %vm898, %v880
  %946 = vst.msk [vmem:[%s3 + $0x178] sm:$0xff] %vm898, %v881
  %947 = vst.msk [vmem:[%s3 + $0x180] sm:$0xff] %vm898, %v882
  %948 = vst.msk [vmem:[%s3 + $0x188] sm:$0xff] %vm898, %v883
  %949 = vst.msk [vmem:[%s3 + $0x190] sm:$0xff] %vm898, %v884
  %950 = vst.msk [vmem:[%s3 + $0x198] sm:$0xff] %vm898, %v885
  %951 = vst.msk [vmem:[%s3 + $0x1a0] sm:$0xff] %vm898, %v886
  %952 = vst.msk [vmem:[%s3 + $0x1a8] sm:$0xff] %vm898, %v887
  %953 = vst.msk [vmem:[%s3 + $0x1b0] sm:$0xff] %vm898, %v888
  %954 = vst.msk [vmem:[%s3 + $0x1b8] sm:$0xff] %vm898, %v889
  %955 = vst.msk [vmem:[%s3 + $0x1c0] sm:$0xff] %vm898, %v890
  %956 = vst.msk [vmem:[%s3 + $0x1c8] sm:$0xff] %vm898, %v891
  %957 = vst.msk [vmem:[%s3 + $0x1d0] sm:$0xff] %vm898, %v892
  %958 = vst.msk [vmem:[%s3 + $0x1d8] sm:$0xff] %vm898, %v893
  %959 = vst.msk [vmem:[%s3 + $0x1e0] sm:$0xff] %vm898, %v894
  %960 = vst.msk [vmem:[%s3 + $0x1e8] sm:$0xff] %vm898, %v895
  %961 = vst.msk [vmem:[%s3 + $0x1f0] sm:$0xff] %vm898, %v896
  %962 = vst.msk [vmem:[%s3 + $0x1f8] sm:$0xff] %vm898, %v897
  // Predicated region
  $region14: #{resnet_autoencoder.15} parent=0 // pred_check
    _
  $region15: #{resnet_autoencoder.15} parent=0 // pred_check_branch
    %964 = sbr.rel (0) target = $region17
  $region16: #{resnet_autoencoder.15} parent=0 // pred_region
    _
  $region17: #{resnet_autoencoder.15} parent=0 // pred_fallthru
    _
  // Predicated region
  $region18: #{resnet_autoencoder.15} parent=0 // pred_check
    _
  $region19: #{resnet_autoencoder.15} parent=0 // pred_check_branch
    %966 = sbr.rel (0) target = $region21
  $region20: #{resnet_autoencoder.15} parent=0 // pred_region
    _
  $region21: #{resnet_autoencoder.15} parent=0 // pred_fallthru
    _

</llo_original>
